<compile_context>
chip_gen: v7x
topology: tpu7x:2x2x1
jax: 0.10.0
libtpu: 0.0.40
codegen_flags: <defaults>
</compile_context>

<pallas_src>
import numpy as np
import jax
import jax.numpy as jnp
from jax.experimental import pallas as pl
from jax.experimental.pallas import tpu as pltpu


# ----------------------------------------------------------------------------
# Kernel factory: one fused BasicBlock, one image per grid step.
# ----------------------------------------------------------------------------
def make_block_kernel(H, W, Cin, Cout, stride, has_down):
    Ho = (H - 1) // stride + 1          # 3x3 conv, padding 1
    Wo = (W - 1) // stride + 1
    WCi = W * Cin
    WCo = Wo * Cout
    assert stride in (1, 2)
    if not has_down:                    # identity shortcut must shape-match
        assert stride == 1 and Cin == Cout, "identity shortcut needs stride==1 and Cin==Cout"

    bf16, f32 = jnp.bfloat16, jnp.float32

    def kernel(*refs):
        it = iter(refs)
        if stride == 1:
            x_ref = next(it)                        # (1, H, W*Cin) f32
        else:
            xe_ref = next(it)                       # (1, Ho, W*Cin) f32  input rows 0,2,..
            xo_ref = next(it)                       # (1, Ho, W*Cin) f32  input rows 1,3,..
        r1_ref = next(it)                           # (3, W*Cin, Wo*Cout) bf16 Toeplitz
        s1_ref, b1_ref = next(it), next(it)         # (1, Wo*Cout) f32 folded BN
        r2_ref = next(it)                           # (3, Wo*Cout, Wo*Cout) bf16 Toeplitz
        s2_ref, b2_ref = next(it), next(it)
        if has_down:
            rd_ref = next(it)                       # (W*Cin, Wo*Cout) bf16 Toeplitz (1x1)
            sd_ref, bd_ref = next(it), next(it)
        o_ref = next(it)                            # (1, Ho, Wo*Cout) f32
        if stride == 1:
            xpad_s = next(it)                       # (H+2, W*Cin) bf16
        else:
            xe_s = next(it)                         # (Ho,   W*Cin) bf16
            xop_s = next(it)                        # (Ho+1, W*Cin) bf16
        mpad_s = next(it)                           # (Ho+2, Wo*Cout) bf16

        # --- stage input once in bf16 VMEM; zero only the 1-row halos -------
        if stride == 1:
            xpad_s[0:1, :] = jnp.zeros((1, WCi), bf16)
            xpad_s[H + 1:H + 2, :] = jnp.zeros((1, WCi), bf16)
            xpad_s[1:H + 1, :] = x_ref[0].astype(bf16)
            lhs1 = [xpad_s[ky:ky + Ho, :] for ky in range(3)]
            lhs_ds = xpad_s[1:H + 1, :] if has_down else None
        else:
            xe_s[...] = xe_ref[0].astype(bf16)
            xop_s[0:1, :] = jnp.zeros((1, WCi), bf16)
            xop_s[1:Ho + 1, :] = xo_ref[0].astype(bf16)
            # padded rows 2*y+ky needed by stride-2 conv1:
            #   ky=0 -> [0, x1, x3, ...], ky=1 -> [x0, x2, ...], ky=2 -> [x1, x3, ...]
            lhs1 = [xop_s[0:Ho, :], xe_s[...], xop_s[1:Ho + 1, :]]
            lhs_ds = xe_s[...]

        # --- conv1 (3 Toeplitz matmuls, K = W*Cin) -> BN1 -> ReLU -----------
        acc = jnp.dot(lhs1[0], r1_ref[0], preferred_element_type=f32)
        acc = acc + jnp.dot(lhs1[1], r1_ref[1], preferred_element_type=f32)
        acc = acc + jnp.dot(lhs1[2], r1_ref[2], preferred_element_type=f32)
        mid = jnp.maximum(acc * s1_ref[...] + b1_ref[...], 0.0)     # (Ho, Wo*Cout) f32

        # --- conv2 (stride 1): stage mid once in bf16, 3 more matmuls -------
        mpad_s[0:1, :] = jnp.zeros((1, WCo), bf16)
        mpad_s[Ho + 1:Ho + 2, :] = jnp.zeros((1, WCo), bf16)
        mpad_s[1:Ho + 1, :] = mid.astype(bf16)
        acc2 = jnp.dot(mpad_s[0:Ho, :], r2_ref[0], preferred_element_type=f32)
        acc2 = acc2 + jnp.dot(mpad_s[1:Ho + 1, :], r2_ref[1], preferred_element_type=f32)
        acc2 = acc2 + jnp.dot(mpad_s[2:Ho + 2, :], r2_ref[2], preferred_element_type=f32)
        out = acc2 * s2_ref[...] + b2_ref[...]

        # --- shortcut + residual add -> ReLU, lane-dense store --------------
        if has_down:
            identity = (jnp.dot(lhs_ds, rd_ref[...], preferred_element_type=f32)
                        * sd_ref[...] + bd_ref[...])
        else:
            identity = x_ref[0]                     # same flattened layout/shape
        o_ref[0] = jnp.maximum(out + identity, 0.0).astype(o_ref.dtype)

    return kernel


# ----------------------------------------------------------------------------
# Wrapper: one pallas_call per BasicBlock, flattened (N, H, W*C) activations.
# ----------------------------------------------------------------------------
def basic_block(x_flat, bp):
    """Fused BasicBlock forward.  x_flat: (N, H, W*Cin) f32 -> (N, Ho, Wo*Cout) f32."""
    N, H, WCi = x_flat.shape
    Cin, Cout, stride, has_down = bp["Cin"], bp["Cout"], bp["stride"], bp["has_down"]
    W = WCi // Cin
    assert W * Cin == WCi
    Ho = (H - 1) // stride + 1
    Wo = (W - 1) // stride + 1
    WCo = Wo * Cout

    def const_spec(arr):
        z = (0,) * arr.ndim
        return pl.BlockSpec(arr.shape, lambda n, _z=z: _z)

    args, in_specs = [], []
    if stride == 1:
        args.append(x_flat)
        in_specs.append(pl.BlockSpec((1, H, WCi), lambda n: (n, 0, 0)))
    else:
        assert H % 2 == 0
        # row-parity views only; column stride is absorbed by the Toeplitz weights
        args.append(x_flat[:, 0::2, :])
        args.append(x_flat[:, 1::2, :])
        in_specs.append(pl.BlockSpec((1, Ho, WCi), lambda n: (n, 0, 0)))
        in_specs.append(pl.BlockSpec((1, Ho, WCi), lambda n: (n, 0, 0)))

    names = ["r1", "s1", "b1", "r2", "s2", "b2"] + (["rd", "sd", "bd"] if has_down else [])
    for nm in names:
        args.append(bp[nm])
        in_specs.append(const_spec(bp[nm]))

    scratch = []
    if stride == 1:
        scratch.append(pltpu.VMEM((H + 2, WCi), jnp.bfloat16))
    else:
        scratch.append(pltpu.VMEM((Ho, WCi), jnp.bfloat16))
        scratch.append(pltpu.VMEM((Ho + 1, WCi), jnp.bfloat16))
    scratch.append(pltpu.VMEM((Ho + 2, WCo), jnp.bfloat16))

    return pl.pallas_call(
        make_block_kernel(H, W, Cin, Cout, stride, has_down),
        out_shape=jax.ShapeDtypeStruct((N, Ho, WCo), jnp.float32),
        grid=(N,),
        in_specs=in_specs,
        out_specs=pl.BlockSpec((1, Ho, WCo), lambda n: (n, 0, 0)),
        scratch_shapes=scratch,
        compiler_params=pltpu.CompilerParams(
            dimension_semantics=("parallel",)),     # batch axis -> both TCs on v7x
    )(*args)


# ----------------------------------------------------------------------------
# Parameter preparation (once, off the hot path): Toeplitz conv matrices +
# width-tiled folded-BN scale/bias, all matching the (x, c) channel-minor layout.
# ----------------------------------------------------------------------------
def _toeplitz_3x3(w_hwio, W_in, stride):
    kh, kw, Cin, Cout = w_hwio.shape
    Wo = (W_in - 1) // stride + 1
    R = np.zeros((kh, W_in * Cin, Wo * Cout), np.float32)
    for ky in range(kh):
        for xo in range(Wo):
            for kx in range(kw):
                xi = stride * xo + kx - 1           # padding=1 folded in (drop OOB taps)
                if 0 <= xi < W_in:
                    R[ky, xi * Cin:(xi + 1) * Cin, xo * Cout:(xo + 1) * Cout] = w_hwio[ky, kx]
    return jnp.asarray(R, jnp.bfloat16)


def _toeplitz_1x1(w_io, W_in, stride):
    Cin, Cout = w_io.shape
    Wo = (W_in - 1) // stride + 1
    R = np.zeros((W_in * Cin, Wo * Cout), np.float32)
    for xo in range(Wo):
        xi = stride * xo
        R[xi * Cin:(xi + 1) * Cin, xo * Cout:(xo + 1) * Cout] = w_io
    return jnp.asarray(R, jnp.bfloat16)


def _tile_wc(v, Wo):
    return jnp.tile(jnp.asarray(v, jnp.float32), (Wo,)).reshape(1, -1)


def prepare_basic_block(params, W_in):
    stride = int(params["stride"])
    _, _, Cin, Cout = params["w1"].shape
    Wo = (W_in - 1) // stride + 1
    has_down = "wd" in params
    bp = dict(Cin=Cin, Cout=Cout, stride=stride, has_down=has_down)
    w1 = np.asarray(jax.device_get(params["w1"]), np.float32)
    w2 = np.asarray(jax.device_get(params["w2"]), np.float32)
    bp["r1"] = _toeplitz_3x3(w1, W_in, stride)
    bp["r2"] = _toeplitz_3x3(w2, Wo, 1)
    bp["s1"], bp["b1"] = _tile_wc(params["s1"], Wo), _tile_wc(params["b1"], Wo)
    bp["s2"], bp["b2"] = _tile_wc(params["s2"], Wo), _tile_wc(params["b2"], Wo)
    if has_down:
        wd = np.asarray(jax.device_get(params["wd"]), np.float32).reshape(Cin, Cout)
        bp["rd"] = _toeplitz_1x1(wd, W_in, stride)
        bp["sd"], bp["bd"] = _tile_wc(params["sd"], Wo), _tile_wc(params["bd"], Wo)
    return bp


# ----------------------------------------------------------------------------
# Deterministic synthetic parameters (eval-mode folded BatchNorm) + f32 reference
# ----------------------------------------------------------------------------
def fold_bn(gamma, beta, mean, var, eps=1e-5):
    scale = gamma * jax.lax.rsqrt(var + eps)
    return scale, beta - mean * scale


def init_basic_block(key, inplanes, planes, stride=1):
    keys = iter(jax.random.split(key, 16))
    nk = lambda: next(keys)

    def conv(cin, cout, k):
        return 0.1 * jax.random.normal(nk(), (k, k, cin, cout), jnp.float32)

    def bn(c):
        gamma = 1.0 + 0.1 * jax.random.normal(nk(), (c,), jnp.float32)
        beta = 0.1 * jax.random.normal(nk(), (c,), jnp.float32)
        mean = 0.1 * jax.random.normal(nk(), (c,), jnp.float32)
        var = 1.0 + 0.1 * jnp.abs(jax.random.normal(nk(), (c,), jnp.float32))
        return fold_bn(gamma, beta, mean, var)

    p = {"stride": stride,
         "w1": conv(inplanes, planes, 3),
         "w2": conv(planes, planes, 3)}
    p["s1"], p["b1"] = bn(planes)
    p["s2"], p["b2"] = bn(planes)
    if inplanes > planes or stride > 1:        # same condition as the PyTorch module
        p["wd"] = conv(inplanes, planes, 1)
        p["sd"], p["bd"] = bn(planes)
    return p


def ref_basic_block(x_nhwc, params):
    """Pure-XLA f32 reference with the same eval-mode folded BN."""
    stride = int(params["stride"])

    def conv(x, w, s, pad):
        return jax.lax.conv_general_dilated(
            x, w, (s, s), ((pad, pad), (pad, pad)),
            dimension_numbers=("NHWC", "HWIO", "NHWC"))

    out = jnp.maximum(conv(x_nhwc, params["w1"], stride, 1) * params["s1"] + params["b1"], 0.0)
    out = conv(out, params["w2"], 1, 1) * params["s2"] + params["b2"]
    if "wd" in params:
        ident = conv(x_nhwc, params["wd"], stride, 0) * params["sd"] + params["bd"]
    else:
        ident = x_nhwc
    return jnp.maximum(out + ident, 0.0)


if __name__ == "__main__":
    key = jax.random.PRNGKey(0)
    k_x, k_b1, k_b2 = jax.random.split(key, 3)

    N, C, H, W = 2, 16, 16, 16
    x_nchw = jax.random.normal(k_x, (N, C, H, W), jnp.float32)       # PyTorch layout

    blk1 = init_basic_block(k_b1, inplanes=16, planes=16, stride=1)  # identity shortcut
    blk2 = init_basic_block(k_b2, inplanes=16, planes=32, stride=2)  # 1x1 downsample
    bp1 = prepare_basic_block(blk1, W_in=W)
    bp2 = prepare_basic_block(blk2, W_in=W)

    @jax.jit
    def fwd(x):
        # NCHW -> channel-minor width-flattened layout ONCE at the network boundary
        xf = jnp.transpose(x, (0, 2, 3, 1)).reshape(N, H, W * C)
        y = basic_block(xf, bp1)                       # (2, 16, 16*16)
        z = basic_block(y, bp2)                        # (2,  8,  8*32)
        return jnp.transpose(z.reshape(N, H // 2, W // 2, 32), (0, 3, 1, 2))

    out = jax.block_until_ready(fwd(x_nchw))
    assert out.shape == (N, 32, H // 2, W // 2) and out.dtype == jnp.float32
    assert bool(jnp.all(jnp.isfinite(out)))

    # loose correctness check vs an f32 XLA reference (kernel uses bf16 MXU inputs)
    x_nhwc = jnp.transpose(x_nchw, (0, 2, 3, 1))
    ref = jnp.transpose(ref_basic_block(ref_basic_block(x_nhwc, blk1), blk2), (0, 3, 1, 2))
    max_err = float(jnp.max(jnp.abs(out - ref)))
    assert max_err < 0.2, f"max abs err vs f32 reference: {max_err}"

    print("KERNEL_OK")
</pallas_src>

<mosaic_0001>
module attributes {stable_mosaic.version = 11 : i64} {
  func.func @kernel(%arg0: i32, %arg1: memref<1x16x256xf32, #tpu.memory_space<vmem>>, %arg2: memref<3x256x256xbf16, #tpu.memory_space<vmem>>, %arg3: memref<1x256xf32, #tpu.memory_space<vmem>>, %arg4: memref<1x256xf32, #tpu.memory_space<vmem>>, %arg5: memref<3x256x256xbf16, #tpu.memory_space<vmem>>, %arg6: memref<1x256xf32, #tpu.memory_space<vmem>>, %arg7: memref<1x256xf32, #tpu.memory_space<vmem>>, %arg8: memref<1x16x256xf32, #tpu.memory_space<vmem>>, %arg9: memref<18x256xbf16, #tpu.memory_space<vmem>>, %arg10: memref<18x256xbf16, #tpu.memory_space<vmem>>) attributes {dimension_semantics = [#tpu.dimension_semantics<parallel>], iteration_bounds = array<i64: 2>, scalar_prefetch = 0 : i64, scratch_operands = 2 : i64, tpu.core_type = #tpu.core_type<tc>, window_params = [{transform_indices = @transform_0, window_bounds = array<i64: 1, 16, 256>}, {pipeline_mode = #tpu.pipeline_mode<synchronous>, transform_indices = @transform_1, window_bounds = array<i64: 3, 256, 256>}, {pipeline_mode = #tpu.pipeline_mode<synchronous>, transform_indices = @transform_2, window_bounds = array<i64: 1, 256>}, {pipeline_mode = #tpu.pipeline_mode<synchronous>, transform_indices = @transform_3, window_bounds = array<i64: 1, 256>}, {pipeline_mode = #tpu.pipeline_mode<synchronous>, transform_indices = @transform_4, window_bounds = array<i64: 3, 256, 256>}, {pipeline_mode = #tpu.pipeline_mode<synchronous>, transform_indices = @transform_5, window_bounds = array<i64: 1, 256>}, {pipeline_mode = #tpu.pipeline_mode<synchronous>, transform_indices = @transform_6, window_bounds = array<i64: 1, 256>}, {transform_indices = @transform_7, window_bounds = array<i64: 1, 16, 256>}]} {
    %cst = arith.constant 0.000000e+00 : bf16
    %0 = vector.broadcast %cst : bf16 to vector<1x256xbf16>
    %c0 = arith.constant 0 : index
    %c0_0 = arith.constant 0 : index
    %1 = vector.load %arg9[%c0, %c0_0] : memref<18x256xbf16, #tpu.memory_space<vmem>>, vector<1x256xbf16>
    tpu.vector_store %arg9[%c0, %c0_0], %0 {strides = array<i32>} : memref<18x256xbf16, #tpu.memory_space<vmem>>, vector<1x256xbf16>,
    %cst_1 = arith.constant 0.000000e+00 : bf16
    %2 = vector.broadcast %cst_1 : bf16 to vector<1x256xbf16>
    %c17 = arith.constant 17 : index
    %c0_2 = arith.constant 0 : index
    %3 = vector.load %arg9[%c17, %c0_2] : memref<18x256xbf16, #tpu.memory_space<vmem>>, vector<1x256xbf16>
    tpu.vector_store %arg9[%c17, %c0_2], %2 {strides = array<i32>} : memref<18x256xbf16, #tpu.memory_space<vmem>>, vector<1x256xbf16>,
    %c0_3 = arith.constant 0 : index
    %c0_4 = arith.constant 0 : index
    %c0_5 = arith.constant 0 : index
    %4 = vector.load %arg1[%c0_3, %c0_4, %c0_5] : memref<1x16x256xf32, #tpu.memory_space<vmem>>, vector<1x16x256xf32>
    %5 = vector.shape_cast %4 : vector<1x16x256xf32> to vector<16x256xf32>
    %6 = arith.truncf %5 : vector<16x256xf32> to vector<16x256xbf16>
    %c1 = arith.constant 1 : index
    %c0_6 = arith.constant 0 : index
    %7 = vector.load %arg9[%c1, %c0_6] : memref<18x256xbf16, #tpu.memory_space<vmem>>, vector<16x256xbf16>
    tpu.vector_store %arg9[%c1, %c0_6], %6 {strides = array<i32>} : memref<18x256xbf16, #tpu.memory_space<vmem>>, vector<16x256xbf16>,
    %c0_7 = arith.constant 0 : index
    %c0_8 = arith.constant 0 : index
    %8 = vector.load %arg9[%c0_7, %c0_8] : memref<18x256xbf16, #tpu.memory_space<vmem>>, vector<16x256xbf16>
    %c1_9 = arith.constant 1 : index
    %c0_10 = arith.constant 0 : index
    %9 = vector.load %arg9[%c1_9, %c0_10] : memref<18x256xbf16, #tpu.memory_space<vmem>>, vector<16x256xbf16>
    %c2 = arith.constant 2 : index
    %c0_11 = arith.constant 0 : index
    %10 = vector.load %arg9[%c2, %c0_11] : memref<18x256xbf16, #tpu.memory_space<vmem>>, vector<16x256xbf16>
    %c0_12 = arith.constant 0 : index
    %c0_13 = arith.constant 0 : index
    %c0_14 = arith.constant 0 : index
    %11 = vector.load %arg2[%c0_12, %c0_13, %c0_14] : memref<3x256x256xbf16, #tpu.memory_space<vmem>>, vector<1x256x256xbf16>
    %12 = vector.shape_cast %11 : vector<1x256x256xbf16> to vector<256x256xbf16>
    %cst_15 = arith.constant dense<0.000000e+00> : vector<16x256xf32>
    %13 = tpu.matmul %8, %12, %cst_15 {dimension_numbers = #tpu.dot_dimension_numbers<[1], [0], [0], [1], [0, 0, 1, 1], [], []>} : vector<16x256xbf16>, vector<256x256xbf16>, vector<16x256xf32> -> vector<16x256xf32>
    %c1_16 = arith.constant 1 : index
    %c0_17 = arith.constant 0 : index
    %c0_18 = arith.constant 0 : index
    %14 = vector.load %arg2[%c1_16, %c0_17, %c0_18] : memref<3x256x256xbf16, #tpu.memory_space<vmem>>, vector<1x256x256xbf16>
    %15 = vector.shape_cast %14 : vector<1x256x256xbf16> to vector<256x256xbf16>
    %cst_19 = arith.constant dense<0.000000e+00> : vector<16x256xf32>
    %16 = tpu.matmul %9, %15, %cst_19 {dimension_numbers = #tpu.dot_dimension_numbers<[1], [0], [0], [1], [0, 0, 1, 1], [], []>} : vector<16x256xbf16>, vector<256x256xbf16>, vector<16x256xf32> -> vector<16x256xf32>
    %17 = arith.addf %13, %16 : vector<16x256xf32>
    %c2_20 = arith.constant 2 : index
    %c0_21 = arith.constant 0 : index
    %c0_22 = arith.constant 0 : index
    %18 = vector.load %arg2[%c2_20, %c0_21, %c0_22] : memref<3x256x256xbf16, #tpu.memory_space<vmem>>, vector<1x256x256xbf16>
    %19 = vector.shape_cast %18 : vector<1x256x256xbf16> to vector<256x256xbf16>
    %cst_23 = arith.constant dense<0.000000e+00> : vector<16x256xf32>
    %20 = tpu.matmul %10, %19, %cst_23 {dimension_numbers = #tpu.dot_dimension_numbers<[1], [0], [0], [1], [0, 0, 1, 1], [], []>} : vector<16x256xbf16>, vector<256x256xbf16>, vector<16x256xf32> -> vector<16x256xf32>
    %21 = arith.addf %17, %20 : vector<16x256xf32>
    %c0_24 = arith.constant 0 : index
    %c0_25 = arith.constant 0 : index
    %22 = vector.load %arg3[%c0_24, %c0_25] : memref<1x256xf32, #tpu.memory_space<vmem>>, vector<1x256xf32>
    %23 = vector.broadcast %22 : vector<1x256xf32> to vector<16x256xf32>
    %24 = arith.mulf %21, %23 : vector<16x256xf32>
    %c0_26 = arith.constant 0 : index
    %c0_27 = arith.constant 0 : index
    %25 = vector.load %arg4[%c0_26, %c0_27] : memref<1x256xf32, #tpu.memory_space<vmem>>, vector<1x256xf32>
    %26 = vector.broadcast %25 : vector<1x256xf32> to vector<16x256xf32>
    %27 = arith.addf %24, %26 : vector<16x256xf32>
    %cst_28 = arith.constant 0.000000e+00 : f32
    %28 = vector.broadcast %cst_28 : f32 to vector<16x256xf32>
    %29 = arith.maximumf %27, %28 : vector<16x256xf32>
    %cst_29 = arith.constant 0.000000e+00 : bf16
    %30 = vector.broadcast %cst_29 : bf16 to vector<1x256xbf16>
    %c0_30 = arith.constant 0 : index
    %c0_31 = arith.constant 0 : index
    %31 = vector.load %arg10[%c0_30, %c0_31] : memref<18x256xbf16, #tpu.memory_space<vmem>>, vector<1x256xbf16>
    tpu.vector_store %arg10[%c0_30, %c0_31], %30 {strides = array<i32>} : memref<18x256xbf16, #tpu.memory_space<vmem>>, vector<1x256xbf16>,
    %cst_32 = arith.constant 0.000000e+00 : bf16
    %32 = vector.broadcast %cst_32 : bf16 to vector<1x256xbf16>
    %c17_33 = arith.constant 17 : index
    %c0_34 = arith.constant 0 : index
    %33 = vector.load %arg10[%c17_33, %c0_34] : memref<18x256xbf16, #tpu.memory_space<vmem>>, vector<1x256xbf16>
    tpu.vector_store %arg10[%c17_33, %c0_34], %32 {strides = array<i32>} : memref<18x256xbf16, #tpu.memory_space<vmem>>, vector<1x256xbf16>,
    %34 = arith.truncf %29 : vector<16x256xf32> to vector<16x256xbf16>
    %c1_35 = arith.constant 1 : index
    %c0_36 = arith.constant 0 : index
    %35 = vector.load %arg10[%c1_35, %c0_36] : memref<18x256xbf16, #tpu.memory_space<vmem>>, vector<16x256xbf16>
    tpu.vector_store %arg10[%c1_35, %c0_36], %34 {strides = array<i32>} : memref<18x256xbf16, #tpu.memory_space<vmem>>, vector<16x256xbf16>,
    %c0_37 = arith.constant 0 : index
    %c0_38 = arith.constant 0 : index
    %36 = vector.load %arg10[%c0_37, %c0_38] : memref<18x256xbf16, #tpu.memory_space<vmem>>, vector<16x256xbf16>
    %c0_39 = arith.constant 0 : index
    %c0_40 = arith.constant 0 : index
    %c0_41 = arith.constant 0 : index
    %37 = vector.load %arg5[%c0_39, %c0_40, %c0_41] : memref<3x256x256xbf16, #tpu.memory_space<vmem>>, vector<1x256x256xbf16>
    %38 = vector.shape_cast %37 : vector<1x256x256xbf16> to vector<256x256xbf16>
    %cst_42 = arith.constant dense<0.000000e+00> : vector<16x256xf32>
    %39 = tpu.matmul %36, %38, %cst_42 {dimension_numbers = #tpu.dot_dimension_numbers<[1], [0], [0], [1], [0, 0, 1, 1], [], []>} : vector<16x256xbf16>, vector<256x256xbf16>, vector<16x256xf32> -> vector<16x256xf32>
    %c1_43 = arith.constant 1 : index
    %c0_44 = arith.constant 0 : index
    %40 = vector.load %arg10[%c1_43, %c0_44] : memref<18x256xbf16, #tpu.memory_space<vmem>>, vector<16x256xbf16>
    %c1_45 = arith.constant 1 : index
    %c0_46 = arith.constant 0 : index
    %c0_47 = arith.constant 0 : index
    %41 = vector.load %arg5[%c1_45, %c0_46, %c0_47] : memref<3x256x256xbf16, #tpu.memory_space<vmem>>, vector<1x256x256xbf16>
    %42 = vector.shape_cast %41 : vector<1x256x256xbf16> to vector<256x256xbf16>
    %cst_48 = arith.constant dense<0.000000e+00> : vector<16x256xf32>
    %43 = tpu.matmul %40, %42, %cst_48 {dimension_numbers = #tpu.dot_dimension_numbers<[1], [0], [0], [1], [0, 0, 1, 1], [], []>} : vector<16x256xbf16>, vector<256x256xbf16>, vector<16x256xf32> -> vector<16x256xf32>
    %44 = arith.addf %39, %43 : vector<16x256xf32>
    %c2_49 = arith.constant 2 : index
    %c0_50 = arith.constant 0 : index
    %45 = vector.load %arg10[%c2_49, %c0_50] : memref<18x256xbf16, #tpu.memory_space<vmem>>, vector<16x256xbf16>
    %c2_51 = arith.constant 2 : index
    %c0_52 = arith.constant 0 : index
    %c0_53 = arith.constant 0 : index
    %46 = vector.load %arg5[%c2_51, %c0_52, %c0_53] : memref<3x256x256xbf16, #tpu.memory_space<vmem>>, vector<1x256x256xbf16>
    %47 = vector.shape_cast %46 : vector<1x256x256xbf16> to vector<256x256xbf16>
    %cst_54 = arith.constant dense<0.000000e+00> : vector<16x256xf32>
    %48 = tpu.matmul %45, %47, %cst_54 {dimension_numbers = #tpu.dot_dimension_numbers<[1], [0], [0], [1], [0, 0, 1, 1], [], []>} : vector<16x256xbf16>, vector<256x256xbf16>, vector<16x256xf32> -> vector<16x256xf32>
    %49 = arith.addf %44, %48 : vector<16x256xf32>
    %c0_55 = arith.constant 0 : index
    %c0_56 = arith.constant 0 : index
    %50 = vector.load %arg6[%c0_55, %c0_56] : memref<1x256xf32, #tpu.memory_space<vmem>>, vector<1x256xf32>
    %51 = vector.broadcast %50 : vector<1x256xf32> to vector<16x256xf32>
    %52 = arith.mulf %49, %51 : vector<16x256xf32>
    %c0_57 = arith.constant 0 : index
    %c0_58 = arith.constant 0 : index
    %53 = vector.load %arg7[%c0_57, %c0_58] : memref<1x256xf32, #tpu.memory_space<vmem>>, vector<1x256xf32>
    %54 = vector.broadcast %53 : vector<1x256xf32> to vector<16x256xf32>
    %55 = arith.addf %52, %54 : vector<16x256xf32>
    %c0_59 = arith.constant 0 : index
    %c0_60 = arith.constant 0 : index
    %c0_61 = arith.constant 0 : index
    %56 = vector.load %arg1[%c0_59, %c0_60, %c0_61] : memref<1x16x256xf32, #tpu.memory_space<vmem>>, vector<1x16x256xf32>
    %57 = vector.shape_cast %56 : vector<1x16x256xf32> to vector<16x256xf32>
    %58 = arith.addf %55, %57 : vector<16x256xf32>
    %cst_62 = arith.constant 0.000000e+00 : f32
    %59 = vector.broadcast %cst_62 : f32 to vector<16x256xf32>
    %60 = arith.maximumf %58, %59 : vector<16x256xf32>
    %c0_63 = arith.constant 0 : index
    %c0_64 = arith.constant 0 : index
    %c0_65 = arith.constant 0 : index
    %61 = vector.load %arg8[%c0_63, %c0_64, %c0_65] : memref<1x16x256xf32, #tpu.memory_space<vmem>>, vector<1x16x256xf32>
    %62 = vector.shape_cast %61 : vector<1x16x256xf32> to vector<16x256xf32>
    %63 = vector.shape_cast %60 : vector<16x256xf32> to vector<1x16x256xf32>
    tpu.vector_store %arg8[%c0_63, %c0_64, %c0_65], %63 {strides = array<i32>} : memref<1x16x256xf32, #tpu.memory_space<vmem>>, vector<1x16x256xf32>,
    return
  }
  func.func @transform_0(%arg0: i32) -> (i32, i32, i32) {
    %c0_i32 = arith.constant 0 : i32
    %c0_i32_0 = arith.constant 0 : i32
    %c0_i32_1 = arith.constant 0 : i32
    return %arg0, %c0_i32, %c0_i32_0 : i32, i32, i32
  }
  func.func @transform_1(%arg0: i32) -> (i32, i32, i32) {
    %c0_i32 = arith.constant 0 : i32
    %c0_i32_0 = arith.constant 0 : i32
    %c0_i32_1 = arith.constant 0 : i32
    %c0_i32_2 = arith.constant 0 : i32
    return %c0_i32, %c0_i32_0, %c0_i32_1 : i32, i32, i32
  }
  func.func @transform_2(%arg0: i32) -> (i32, i32) {
    %c0_i32 = arith.constant 0 : i32
    %c0_i32_0 = arith.constant 0 : i32
    %c0_i32_1 = arith.constant 0 : i32
    return %c0_i32, %c0_i32_0 : i32, i32
  }
  func.func @transform_3(%arg0: i32) -> (i32, i32) {
    %c0_i32 = arith.constant 0 : i32
    %c0_i32_0 = arith.constant 0 : i32
    %c0_i32_1 = arith.constant 0 : i32
    return %c0_i32, %c0_i32_0 : i32, i32
  }
  func.func @transform_4(%arg0: i32) -> (i32, i32, i32) {
    %c0_i32 = arith.constant 0 : i32
    %c0_i32_0 = arith.constant 0 : i32
    %c0_i32_1 = arith.constant 0 : i32
    %c0_i32_2 = arith.constant 0 : i32
    return %c0_i32, %c0_i32_0, %c0_i32_1 : i32, i32, i32
  }
  func.func @transform_5(%arg0: i32) -> (i32, i32) {
    %c0_i32 = arith.constant 0 : i32
    %c0_i32_0 = arith.constant 0 : i32
    %c0_i32_1 = arith.constant 0 : i32
    return %c0_i32, %c0_i32_0 : i32, i32
  }
  func.func @transform_6(%arg0: i32) -> (i32, i32) {
    %c0_i32 = arith.constant 0 : i32
    %c0_i32_0 = arith.constant 0 : i32
    %c0_i32_1 = arith.constant 0 : i32
    return %c0_i32, %c0_i32_0 : i32, i32
  }
  func.func @transform_7(%arg0: i32) -> (i32, i32, i32) {
    %c0_i32 = arith.constant 0 : i32
    %c0_i32_0 = arith.constant 0 : i32
    %c0_i32_1 = arith.constant 0 : i32
    return %arg0, %c0_i32, %c0_i32_0 : i32, i32, i32
  }
}

module attributes {stable_mosaic.version = 11 : i64} {
  func.func @kernel(%arg0: i32, %arg1: memref<1x8x256xf32, #tpu.memory_space<vmem>>, %arg2: memref<1x8x256xf32, #tpu.memory_space<vmem>>, %arg3: memref<3x256x256xbf16, #tpu.memory_space<vmem>>, %arg4: memref<1x256xf32, #tpu.memory_space<vmem>>, %arg5: memref<1x256xf32, #tpu.memory_space<vmem>>, %arg6: memref<3x256x256xbf16, #tpu.memory_space<vmem>>, %arg7: memref<1x256xf32, #tpu.memory_space<vmem>>, %arg8: memref<1x256xf32, #tpu.memory_space<vmem>>, %arg9: memref<256x256xbf16, #tpu.memory_space<vmem>>, %arg10: memref<1x256xf32, #tpu.memory_space<vmem>>, %arg11: memref<1x256xf32, #tpu.memory_space<vmem>>, %arg12: memref<1x8x256xf32, #tpu.memory_space<vmem>>, %arg13: memref<8x256xbf16, #tpu.memory_space<vmem>>, %arg14: memref<9x256xbf16, #tpu.memory_space<vmem>>, %arg15: memref<10x256xbf16, #tpu.memory_space<vmem>>) attributes {dimension_semantics = [#tpu.dimension_semantics<parallel>], iteration_bounds = array<i64: 2>, scalar_prefetch = 0 : i64, scratch_operands = 3 : i64, tpu.core_type = #tpu.core_type<tc>, window_params = [{transform_indices = @transform_0, window_bounds = array<i64: 1, 8, 256>}, {transform_indices = @transform_1, window_bounds = array<i64: 1, 8, 256>}, {pipeline_mode = #tpu.pipeline_mode<synchronous>, transform_indices = @transform_2, window_bounds = array<i64: 3, 256, 256>}, {pipeline_mode = #tpu.pipeline_mode<synchronous>, transform_indices = @transform_3, window_bounds = array<i64: 1, 256>}, {pipeline_mode = #tpu.pipeline_mode<synchronous>, transform_indices = @transform_4, window_bounds = array<i64: 1, 256>}, {pipeline_mode = #tpu.pipeline_mode<synchronous>, transform_indices = @transform_5, window_bounds = array<i64: 3, 256, 256>}, {pipeline_mode = #tpu.pipeline_mode<synchronous>, transform_indices = @transform_6, window_bounds = array<i64: 1, 256>}, {pipeline_mode = #tpu.pipeline_mode<synchronous>, transform_indices = @transform_7, window_bounds = array<i64: 1, 256>}, {pipeline_mode = #tpu.pipeline_mode<synchronous>, transform_indices = @transform_8, window_bounds = array<i64: 256, 256>}, {pipeline_mode = #tpu.pipeline_mode<synchronous>, transform_indices = @transform_9, window_bounds = array<i64: 1, 256>}, {pipeline_mode = #tpu.pipeline_mode<synchronous>, transform_indices = @transform_10, window_bounds = array<i64: 1, 256>}, {transform_indices = @transform_11, window_bounds = array<i64: 1, 8, 256>}]} {
    %c0 = arith.constant 0 : index
    %c0_0 = arith.constant 0 : index
    %c0_1 = arith.constant 0 : index
    %0 = vector.load %arg1[%c0, %c0_0, %c0_1] : memref<1x8x256xf32, #tpu.memory_space<vmem>>, vector<1x8x256xf32>
    %1 = vector.shape_cast %0 : vector<1x8x256xf32> to vector<8x256xf32>
    %2 = arith.truncf %1 : vector<8x256xf32> to vector<8x256xbf16>
    %c0_2 = arith.constant 0 : index
    %c0_3 = arith.constant 0 : index
    %3 = vector.load %arg13[%c0_2, %c0_3] : memref<8x256xbf16, #tpu.memory_space<vmem>>, vector<8x256xbf16>
    tpu.vector_store %arg13[%c0_2, %c0_3], %2 {strides = array<i32>} : memref<8x256xbf16, #tpu.memory_space<vmem>>, vector<8x256xbf16>,
    %cst = arith.constant 0.000000e+00 : bf16
    %4 = vector.broadcast %cst : bf16 to vector<1x256xbf16>
    %c0_4 = arith.constant 0 : index
    %c0_5 = arith.constant 0 : index
    %5 = vector.load %arg14[%c0_4, %c0_5] : memref<9x256xbf16, #tpu.memory_space<vmem>>, vector<1x256xbf16>
    tpu.vector_store %arg14[%c0_4, %c0_5], %4 {strides = array<i32>} : memref<9x256xbf16, #tpu.memory_space<vmem>>, vector<1x256xbf16>,
    %c0_6 = arith.constant 0 : index
    %c0_7 = arith.constant 0 : index
    %c0_8 = arith.constant 0 : index
    %6 = vector.load %arg2[%c0_6, %c0_7, %c0_8] : memref<1x8x256xf32, #tpu.memory_space<vmem>>, vector<1x8x256xf32>
    %7 = vector.shape_cast %6 : vector<1x8x256xf32> to vector<8x256xf32>
    %8 = arith.truncf %7 : vector<8x256xf32> to vector<8x256xbf16>
    %c1 = arith.constant 1 : index
    %c0_9 = arith.constant 0 : index
    %9 = vector.load %arg14[%c1, %c0_9] : memref<9x256xbf16, #tpu.memory_space<vmem>>, vector<8x256xbf16>
    tpu.vector_store %arg14[%c1, %c0_9], %8 {strides = array<i32>} : memref<9x256xbf16, #tpu.memory_space<vmem>>, vector<8x256xbf16>,
    %c0_10 = arith.constant 0 : index
    %c0_11 = arith.constant 0 : index
    %10 = vector.load %arg14[%c0_10, %c0_11] : memref<9x256xbf16, #tpu.memory_space<vmem>>, vector<8x256xbf16>
    %c0_12 = arith.constant 0 : index
    %c0_13 = arith.constant 0 : index
    %11 = vector.load %arg13[%c0_12, %c0_13] : memref<8x256xbf16, #tpu.memory_space<vmem>>, vector<8x256xbf16>
    %c1_14 = arith.constant 1 : index
    %c0_15 = arith.constant 0 : index
    %12 = vector.load %arg14[%c1_14, %c0_15] : memref<9x256xbf16, #tpu.memory_space<vmem>>, vector<8x256xbf16>
    %c0_16 = arith.constant 0 : index
    %c0_17 = arith.constant 0 : index
    %13 = vector.load %arg13[%c0_16, %c0_17] : memref<8x256xbf16, #tpu.memory_space<vmem>>, vector<8x256xbf16>
    %c0_18 = arith.constant 0 : index
    %c0_19 = arith.constant 0 : index
    %c0_20 = arith.constant 0 : index
    %14 = vector.load %arg3[%c0_18, %c0_19, %c0_20] : memref<3x256x256xbf16, #tpu.memory_space<vmem>>, vector<1x256x256xbf16>
    %15 = vector.shape_cast %14 : vector<1x256x256xbf16> to vector<256x256xbf16>
    %cst_21 = arith.constant dense<0.000000e+00> : vector<8x256xf32>
    %16 = tpu.matmul %10, %15, %cst_21 {dimension_numbers = #tpu.dot_dimension_numbers<[1], [0], [0], [1], [0, 0, 1, 1], [], []>} : vector<8x256xbf16>, vector<256x256xbf16>, vector<8x256xf32> -> vector<8x256xf32>
    %c1_22 = arith.constant 1 : index
    %c0_23 = arith.constant 0 : index
    %c0_24 = arith.constant 0 : index
    %17 = vector.load %arg3[%c1_22, %c0_23, %c0_24] : memref<3x256x256xbf16, #tpu.memory_space<vmem>>, vector<1x256x256xbf16>
    %18 = vector.shape_cast %17 : vector<1x256x256xbf16> to vector<256x256xbf16>
    %cst_25 = arith.constant dense<0.000000e+00> : vector<8x256xf32>
    %19 = tpu.matmul %11, %18, %cst_25 {dimension_numbers = #tpu.dot_dimension_numbers<[1], [0], [0], [1], [0, 0, 1, 1], [], []>} : vector<8x256xbf16>, vector<256x256xbf16>, vector<8x256xf32> -> vector<8x256xf32>
    %20 = arith.addf %16, %19 : vector<8x256xf32>
    %c2 = arith.constant 2 : index
    %c0_26 = arith.constant 0 : index
    %c0_27 = arith.constant 0 : index
    %21 = vector.load %arg3[%c2, %c0_26, %c0_27] : memref<3x256x256xbf16, #tpu.memory_space<vmem>>, vector<1x256x256xbf16>
    %22 = vector.shape_cast %21 : vector<1x256x256xbf16> to vector<256x256xbf16>
    %cst_28 = arith.constant dense<0.000000e+00> : vector<8x256xf32>
    %23 = tpu.matmul %12, %22, %cst_28 {dimension_numbers = #tpu.dot_dimension_numbers<[1], [0], [0], [1], [0, 0, 1, 1], [], []>} : vector<8x256xbf16>, vector<256x256xbf16>, vector<8x256xf32> -> vector<8x256xf32>
    %24 = arith.addf %20, %23 : vector<8x256xf32>
    %c0_29 = arith.constant 0 : index
    %c0_30 = arith.constant 0 : index
    %25 = vector.load %arg4[%c0_29, %c0_30] : memref<1x256xf32, #tpu.memory_space<vmem>>, vector<1x256xf32>
    %26 = vector.broadcast %25 : vector<1x256xf32> to vector<8x256xf32>
    %27 = arith.mulf %24, %26 : vector<8x256xf32>
    %c0_31 = arith.constant 0 : index
    %c0_32 = arith.constant 0 : index
    %28 = vector.load %arg5[%c0_31, %c0_32] : memref<1x256xf32, #tpu.memory_space<vmem>>, vector<1x256xf32>
    %29 = vector.broadcast %28 : vector<1x256xf32> to vector<8x256xf32>
    %30 = arith.addf %27, %29 : vector<8x256xf32>
    %cst_33 = arith.constant 0.000000e+00 : f32
    %31 = vector.broadcast %cst_33 : f32 to vector<8x256xf32>
    %32 = arith.maximumf %30, %31 : vector<8x256xf32>
    %cst_34 = arith.constant 0.000000e+00 : bf16
    %33 = vector.broadcast %cst_34 : bf16 to vector<1x256xbf16>
    %c0_35 = arith.constant 0 : index
    %c0_36 = arith.constant 0 : index
    %34 = vector.load %arg15[%c0_35, %c0_36] : memref<10x256xbf16, #tpu.memory_space<vmem>>, vector<1x256xbf16>
    tpu.vector_store %arg15[%c0_35, %c0_36], %33 {strides = array<i32>} : memref<10x256xbf16, #tpu.memory_space<vmem>>, vector<1x256xbf16>,
    %cst_37 = arith.constant 0.000000e+00 : bf16
    %35 = vector.broadcast %cst_37 : bf16 to vector<1x256xbf16>
    %c9 = arith.constant 9 : index
    %c0_38 = arith.constant 0 : index
    %36 = vector.load %arg15[%c9, %c0_38] : memref<10x256xbf16, #tpu.memory_space<vmem>>, vector<1x256xbf16>
    tpu.vector_store %arg15[%c9, %c0_38], %35 {strides = array<i32>} : memref<10x256xbf16, #tpu.memory_space<vmem>>, vector<1x256xbf16>,
    %37 = arith.truncf %32 : vector<8x256xf32> to vector<8x256xbf16>
    %c1_39 = arith.constant 1 : index
    %c0_40 = arith.constant 0 : index
    %38 = vector.load %arg15[%c1_39, %c0_40] : memref<10x256xbf16, #tpu.memory_space<vmem>>, vector<8x256xbf16>
    tpu.vector_store %arg15[%c1_39, %c0_40], %37 {strides = array<i32>} : memref<10x256xbf16, #tpu.memory_space<vmem>>, vector<8x256xbf16>,
    %c0_41 = arith.constant 0 : index
    %c0_42 = arith.constant 0 : index
    %39 = vector.load %arg15[%c0_41, %c0_42] : memref<10x256xbf16, #tpu.memory_space<vmem>>, vector<8x256xbf16>
    %c0_43 = arith.constant 0 : index
    %c0_44 = arith.constant 0 : index
    %c0_45 = arith.constant 0 : index
    %40 = vector.load %arg6[%c0_43, %c0_44, %c0_45] : memref<3x256x256xbf16, #tpu.memory_space<vmem>>, vector<1x256x256xbf16>
    %41 = vector.shape_cast %40 : vector<1x256x256xbf16> to vector<256x256xbf16>
    %cst_46 = arith.constant dense<0.000000e+00> : vector<8x256xf32>
    %42 = tpu.matmul %39, %41, %cst_46 {dimension_numbers = #tpu.dot_dimension_numbers<[1], [0], [0], [1], [0, 0, 1, 1], [], []>} : vector<8x256xbf16>, vector<256x256xbf16>, vector<8x256xf32> -> vector<8x256xf32>
    %c1_47 = arith.constant 1 : index
    %c0_48 = arith.constant 0 : index
    %43 = vector.load %arg15[%c1_47, %c0_48] : memref<10x256xbf16, #tpu.memory_space<vmem>>, vector<8x256xbf16>
    %c1_49 = arith.constant 1 : index
    %c0_50 = arith.constant 0 : index
    %c0_51 = arith.constant 0 : index
    %44 = vector.load %arg6[%c1_49, %c0_50, %c0_51] : memref<3x256x256xbf16, #tpu.memory_space<vmem>>, vector<1x256x256xbf16>
    %45 = vector.shape_cast %44 : vector<1x256x256xbf16> to vector<256x256xbf16>
    %cst_52 = arith.constant dense<0.000000e+00> : vector<8x256xf32>
    %46 = tpu.matmul %43, %45, %cst_52 {dimension_numbers = #tpu.dot_dimension_numbers<[1], [0], [0], [1], [0, 0, 1, 1], [], []>} : vector<8x256xbf16>, vector<256x256xbf16>, vector<8x256xf32> -> vector<8x256xf32>
    %47 = arith.addf %42, %46 : vector<8x256xf32>
    %c2_53 = arith.constant 2 : index
    %c0_54 = arith.constant 0 : index
    %48 = vector.load %arg15[%c2_53, %c0_54] : memref<10x256xbf16, #tpu.memory_space<vmem>>, vector<8x256xbf16>
    %c2_55 = arith.constant 2 : index
    %c0_56 = arith.constant 0 : index
    %c0_57 = arith.constant 0 : index
    %49 = vector.load %arg6[%c2_55, %c0_56, %c0_57] : memref<3x256x256xbf16, #tpu.memory_space<vmem>>, vector<1x256x256xbf16>
    %50 = vector.shape_cast %49 : vector<1x256x256xbf16> to vector<256x256xbf16>
    %cst_58 = arith.constant dense<0.000000e+00> : vector<8x256xf32>
    %51 = tpu.matmul %48, %50, %cst_58 {dimension_numbers = #tpu.dot_dimension_numbers<[1], [0], [0], [1], [0, 0, 1, 1], [], []>} : vector<8x256xbf16>, vector<256x256xbf16>, vector<8x256xf32> -> vector<8x256xf32>
    %52 = arith.addf %47, %51 : vector<8x256xf32>
    %c0_59 = arith.constant 0 : index
    %c0_60 = arith.constant 0 : index
    %53 = vector.load %arg7[%c0_59, %c0_60] : memref<1x256xf32, #tpu.memory_space<vmem>>, vector<1x256xf32>
    %54 = vector.broadcast %53 : vector<1x256xf32> to vector<8x256xf32>
    %55 = arith.mulf %52, %54 : vector<8x256xf32>
    %c0_61 = arith.constant 0 : index
    %c0_62 = arith.constant 0 : index
    %56 = vector.load %arg8[%c0_61, %c0_62] : memref<1x256xf32, #tpu.memory_space<vmem>>, vector<1x256xf32>
    %57 = vector.broadcast %56 : vector<1x256xf32> to vector<8x256xf32>
    %58 = arith.addf %55, %57 : vector<8x256xf32>
    %c0_63 = arith.constant 0 : index
    %c0_64 = arith.constant 0 : index
    %59 = vector.load %arg9[%c0_63, %c0_64] : memref<256x256xbf16, #tpu.memory_space<vmem>>, vector<256x256xbf16>
    %cst_65 = arith.constant dense<0.000000e+00> : vector<8x256xf32>
    %60 = tpu.matmul %13, %59, %cst_65 {dimension_numbers = #tpu.dot_dimension_numbers<[1], [0], [0], [1], [0, 0, 1, 1], [], []>} : vector<8x256xbf16>, vector<256x256xbf16>, vector<8x256xf32> -> vector<8x256xf32>
    %c0_66 = arith.constant 0 : index
    %c0_67 = arith.constant 0 : index
    %61 = vector.load %arg10[%c0_66, %c0_67] : memref<1x256xf32, #tpu.memory_space<vmem>>, vector<1x256xf32>
    %62 = vector.broadcast %61 : vector<1x256xf32> to vector<8x256xf32>
    %63 = arith.mulf %60, %62 : vector<8x256xf32>
    %c0_68 = arith.constant 0 : index
    %c0_69 = arith.constant 0 : index
    %64 = vector.load %arg11[%c0_68, %c0_69] : memref<1x256xf32, #tpu.memory_space<vmem>>, vector<1x256xf32>
    %65 = vector.broadcast %64 : vector<1x256xf32> to vector<8x256xf32>
    %66 = arith.addf %63, %65 : vector<8x256xf32>
    %67 = arith.addf %58, %66 : vector<8x256xf32>
    %cst_70 = arith.constant 0.000000e+00 : f32
    %68 = vector.broadcast %cst_70 : f32 to vector<8x256xf32>
    %69 = arith.maximumf %67, %68 : vector<8x256xf32>
    %c0_71 = arith.constant 0 : index
    %c0_72 = arith.constant 0 : index
    %c0_73 = arith.constant 0 : index
    %70 = vector.load %arg12[%c0_71, %c0_72, %c0_73] : memref<1x8x256xf32, #tpu.memory_space<vmem>>, vector<1x8x256xf32>
    %71 = vector.shape_cast %70 : vector<1x8x256xf32> to vector<8x256xf32>
    %72 = vector.shape_cast %69 : vector<8x256xf32> to vector<1x8x256xf32>
    tpu.vector_store %arg12[%c0_71, %c0_72, %c0_73], %72 {strides = array<i32>} : memref<1x8x256xf32, #tpu.memory_space<vmem>>, vector<1x8x256xf32>,
    return
  }
  func.func @transform_0(%arg0: i32) -> (i32, i32, i32) {
    %c0_i32 = arith.constant 0 : i32
    %c0_i32_0 = arith.constant 0 : i32
    %c0_i32_1 = arith.constant 0 : i32
    return %arg0, %c0_i32, %c0_i32_0 : i32, i32, i32
  }
  func.func @transform_1(%arg0: i32) -> (i32, i32, i32) {
    %c0_i32 = arith.constant 0 : i32
    %c0_i32_0 = arith.constant 0 : i32
    %c0_i32_1 = arith.constant 0 : i32
    return %arg0, %c0_i32, %c0_i32_0 : i32, i32, i32
  }
  func.func @transform_2(%arg0: i32) -> (i32, i32, i32) {
    %c0_i32 = arith.constant 0 : i32
    %c0_i32_0 = arith.constant 0 : i32
    %c0_i32_1 = arith.constant 0 : i32
    %c0_i32_2 = arith.constant 0 : i32
    return %c0_i32, %c0_i32_0, %c0_i32_1 : i32, i32, i32
  }
  func.func @transform_3(%arg0: i32) -> (i32, i32) {
    %c0_i32 = arith.constant 0 : i32
    %c0_i32_0 = arith.constant 0 : i32
    %c0_i32_1 = arith.constant 0 : i32
    return %c0_i32, %c0_i32_0 : i32, i32
  }
  func.func @transform_4(%arg0: i32) -> (i32, i32) {
    %c0_i32 = arith.constant 0 : i32
    %c0_i32_0 = arith.constant 0 : i32
    %c0_i32_1 = arith.constant 0 : i32
    return %c0_i32, %c0_i32_0 : i32, i32
  }
  func.func @transform_5(%arg0: i32) -> (i32, i32, i32) {
    %c0_i32 = arith.constant 0 : i32
    %c0_i32_0 = arith.constant 0 : i32
    %c0_i32_1 = arith.constant 0 : i32
    %c0_i32_2 = arith.constant 0 : i32
    return %c0_i32, %c0_i32_0, %c0_i32_1 : i32, i32, i32
  }
  func.func @transform_6(%arg0: i32) -> (i32, i32) {
    %c0_i32 = arith.constant 0 : i32
    %c0_i32_0 = arith.constant 0 : i32
    %c0_i32_1 = arith.constant 0 : i32
    return %c0_i32, %c0_i32_0 : i32, i32
  }
  func.func @transform_7(%arg0: i32) -> (i32, i32) {
    %c0_i32 = arith.constant 0 : i32
    %c0_i32_0 = arith.constant 0 : i32
    %c0_i32_1 = arith.constant 0 : i32
    return %c0_i32, %c0_i32_0 : i32, i32
  }
  func.func @transform_8(%arg0: i32) -> (i32, i32) {
    %c0_i32 = arith.constant 0 : i32
    %c0_i32_0 = arith.constant 0 : i32
    %c0_i32_1 = arith.constant 0 : i32
    return %c0_i32, %c0_i32_0 : i32, i32
  }
  func.func @transform_9(%arg0: i32) -> (i32, i32) {
    %c0_i32 = arith.constant 0 : i32
    %c0_i32_0 = arith.constant 0 : i32
    %c0_i32_1 = arith.constant 0 : i32
    return %c0_i32, %c0_i32_0 : i32, i32
  }
  func.func @transform_10(%arg0: i32) -> (i32, i32) {
    %c0_i32 = arith.constant 0 : i32
    %c0_i32_0 = arith.constant 0 : i32
    %c0_i32_1 = arith.constant 0 : i32
    return %c0_i32, %c0_i32_0 : i32, i32
  }
  func.func @transform_11(%arg0: i32) -> (i32, i32, i32) {
    %c0_i32 = arith.constant 0 : i32
    %c0_i32_0 = arith.constant 0 : i32
    %c0_i32_1 = arith.constant 0 : i32
    return %arg0, %c0_i32, %c0_i32_0 : i32, i32, i32
  }
}

</mosaic_0001>

<llo_original>
// kernel: fwd.2
$region0: #{fwd.2}
  #allocation0 [shape = 'u32[]', space=smem, size = 0x4, offset = 0x4, fixed_abs, tag = 'smem constant byte address 0x4 - core index']
  #allocation1 [shape = 'u32[144,128]{1,0:T(1,128)}', space=vmem, size = 0x12000, scoped, tag = 'internal scratch']
  #allocation2 [shape = 'bf16[18,256]{1,0:T(8,128)(2,1)}', space=vmem, size = 0x3000, scoped, tag = 'scratch operand']
  #allocation3 [shape = 'bf16[18,256]{1,0:T(8,128)(2,1)}', space=vmem, size = 0x3000, scoped, tag = 'scratch operand']
  %s0 = inlined_call_operand.vmem [shape: f32[2,16,256], index: 0, kind: input, shape index: {}]
  %s1 = inlined_call_operand.vmem [shape: bf16[3,256,256], index: 1, kind: input, shape index: {}]
  %s2 = inlined_call_operand.vmem [shape: f32[1,256], index: 2, kind: input, shape index: {}]
  %s3 = inlined_call_operand.vmem [shape: f32[1,256], index: 3, kind: input, shape index: {}]
  %s4 = inlined_call_operand.vmem [shape: bf16[3,256,256], index: 4, kind: input, shape index: {}]
  %s5 = inlined_call_operand.vmem [shape: f32[1,256], index: 5, kind: input, shape index: {}]
  %s6 = inlined_call_operand.vmem [shape: f32[1,256], index: 6, kind: input, shape index: {}]
  %s7 = inlined_call_operand.vmem [shape: f32[2,16,256], index: 7, kind: output, shape index: {}]
  %s8 = sld [smem:[#allocation0]]
  $region61: #{fwd.2} parent=0
    _
  %s10 = ssub.s32 1, %s8
  %s11 = scalar_select 0, %s10, %s8
  loop: start=0, step=1, limit=4
  $region2: #{fwd.2} parent=0 // loop_pre_header
    _
  $region3: #{fwd.2} parent=0 // loop_header
    %s13 = sphi 0, %s17
    %p14 = scmp.ge.s32.totalorder %s13, 4
    %s23 = sphi 0, %s25
    %s26 = sphi 0, %s23
    %s27 = sphi 0, %s26
    %s43 = sphi 0, %s27
    %s47 = sphi 0, %s47
    %s49 = sphi 0, %s47
    %s50 = sphi 0, %s49
    %s64 = sphi 0, %s50
    %s68 = sphi 0, %s68
    %s70 = sphi 0, %s68
    %s71 = sphi 0, %s70
    %s85 = sphi 0, %s71
    %s89 = sphi 0, %s89
    %s91 = sphi 0, %s89
    %s92 = sphi 0, %s91
    %s106 = sphi 0, %s92
    %s110 = sphi 0, %s110
    %s112 = sphi 0, %s110
    %s113 = sphi 0, %s112
    %s127 = sphi 0, %s113
    %s131 = sphi 0, %s131
    %s133 = sphi 0, %s131
    %s134 = sphi 0, %s133
    %s148 = sphi 0, %s134
    %s152 = sphi 0, %s152
    %s154 = sphi 0, %s152
    %s155 = sphi 0, %s154
    %s169 = sphi 0, %s155
    %s175 = sphi 0, %s177
    %s178 = sphi 0, %s175
    %s179 = sphi 0, %s178
    %s195 = sphi 0, %s179
  $region4: #{fwd.2} parent=0 // loop_header_branch
    %16 = sbr.rel (%p14) target = $region8
  $region5: #{fwd.2} parent=0 // loop_body
    %s18 = ssub.s32 %s13, 1
    %s19 = ssub.s32 %s13, 2
    %s20 = sadd.s32 %s13, 1
    %s21 = ssub.s32 %s13, %s20
    %p22 = scmp.eq.s32.totalorder %s21, 0
    %s24 = sadd.s32 %s23, 1
    %s25 = scalar_select %p22, %s23, %s24
    %p28 = pneg %p22
    %p29 = scmp.eq.s32.totalorder %s13, 1
    %p30 = por %p28, %p29
    %p31 = scmp.ne.s32.totalorder %s23, %s26
    %p32 = scmp.eq.s32.totalorder %s13, 0
    %p33 = por %p31, %p32
    %p34 = scmp.ne.s32.totalorder %s23, %s26
    %p35 = scmp.eq.s32.totalorder %s18, 1
    %p36 = por %p34, %p35
    %p37 = scmp.ne.s32.totalorder %s26, %s27
    %p38 = scmp.eq.s32.totalorder %s18, 0
    %p39 = por %p37, %p38
    %p40 = scmp.ne.s32.totalorder %s26, %s27
    %p41 = scmp.eq.s32.totalorder %s19, 1
    %p42 = por %p40, %p41
    %p44 = scmp.ne.s32.totalorder %s27, %s43
    %p45 = scmp.eq.s32.totalorder %s19, 0
    %p46 = por %p44, %p45
    %s48 = sadd.s32 %s47, 1
    %p51 = scmp.eq.s32.totalorder %s13, 1
    %p52 = scmp.ne.s32.totalorder %s47, %s49
    %p53 = scmp.eq.s32.totalorder %s13, 0
    %p54 = por %p52, %p53
    %p55 = scmp.ne.s32.totalorder %s47, %s49
    %p56 = scmp.eq.s32.totalorder %s18, 1
    %p57 = por %p55, %p56
    %p58 = scmp.ne.s32.totalorder %s49, %s50
    %p59 = scmp.eq.s32.totalorder %s18, 0
    %p60 = por %p58, %p59
    %p61 = scmp.ne.s32.totalorder %s49, %s50
    %p62 = scmp.eq.s32.totalorder %s19, 1
    %p63 = por %p61, %p62
    %p65 = scmp.ne.s32.totalorder %s50, %s64
    %p66 = scmp.eq.s32.totalorder %s19, 0
    %p67 = por %p65, %p66
    %s69 = sadd.s32 %s68, 1
    %p72 = scmp.eq.s32.totalorder %s13, 1
    %p73 = scmp.ne.s32.totalorder %s68, %s70
    %p74 = scmp.eq.s32.totalorder %s13, 0
    %p75 = por %p73, %p74
    %p76 = scmp.ne.s32.totalorder %s68, %s70
    %p77 = scmp.eq.s32.totalorder %s18, 1
    %p78 = por %p76, %p77
    %p79 = scmp.ne.s32.totalorder %s70, %s71
    %p80 = scmp.eq.s32.totalorder %s18, 0
    %p81 = por %p79, %p80
    %p82 = scmp.ne.s32.totalorder %s70, %s71
    %p83 = scmp.eq.s32.totalorder %s19, 1
    %p84 = por %p82, %p83
    %p86 = scmp.ne.s32.totalorder %s71, %s85
    %p87 = scmp.eq.s32.totalorder %s19, 0
    %p88 = por %p86, %p87
    %s90 = sadd.s32 %s89, 1
    %p93 = scmp.eq.s32.totalorder %s13, 1
    %p94 = scmp.ne.s32.totalorder %s89, %s91
    %p95 = scmp.eq.s32.totalorder %s13, 0
    %p96 = por %p94, %p95
    %p97 = scmp.ne.s32.totalorder %s89, %s91
    %p98 = scmp.eq.s32.totalorder %s18, 1
    %p99 = por %p97, %p98
    %p100 = scmp.ne.s32.totalorder %s91, %s92
    %p101 = scmp.eq.s32.totalorder %s18, 0
    %p102 = por %p100, %p101
    %p103 = scmp.ne.s32.totalorder %s91, %s92
    %p104 = scmp.eq.s32.totalorder %s19, 1
    %p105 = por %p103, %p104
    %p107 = scmp.ne.s32.totalorder %s92, %s106
    %p108 = scmp.eq.s32.totalorder %s19, 0
    %p109 = por %p107, %p108
    %s111 = sadd.s32 %s110, 1
    %p114 = scmp.eq.s32.totalorder %s13, 1
    %p115 = scmp.ne.s32.totalorder %s110, %s112
    %p116 = scmp.eq.s32.totalorder %s13, 0
    %p117 = por %p115, %p116
    %p118 = scmp.ne.s32.totalorder %s110, %s112
    %p119 = scmp.eq.s32.totalorder %s18, 1
    %p120 = por %p118, %p119
    %p121 = scmp.ne.s32.totalorder %s112, %s113
    %p122 = scmp.eq.s32.totalorder %s18, 0
    %p123 = por %p121, %p122
    %p124 = scmp.ne.s32.totalorder %s112, %s113
    %p125 = scmp.eq.s32.totalorder %s19, 1
    %p126 = por %p124, %p125
    %p128 = scmp.ne.s32.totalorder %s113, %s127
    %p129 = scmp.eq.s32.totalorder %s19, 0
    %p130 = por %p128, %p129
    %s132 = sadd.s32 %s131, 1
    %p135 = scmp.eq.s32.totalorder %s13, 1
    %p136 = scmp.ne.s32.totalorder %s131, %s133
    %p137 = scmp.eq.s32.totalorder %s13, 0
    %p138 = por %p136, %p137
    %p139 = scmp.ne.s32.totalorder %s131, %s133
    %p140 = scmp.eq.s32.totalorder %s18, 1
    %p141 = por %p139, %p140
    %p142 = scmp.ne.s32.totalorder %s133, %s134
    %p143 = scmp.eq.s32.totalorder %s18, 0
    %p144 = por %p142, %p143
    %p145 = scmp.ne.s32.totalorder %s133, %s134
    %p146 = scmp.eq.s32.totalorder %s19, 1
    %p147 = por %p145, %p146
    %p149 = scmp.ne.s32.totalorder %s134, %s148
    %p150 = scmp.eq.s32.totalorder %s19, 0
    %p151 = por %p149, %p150
    %s153 = sadd.s32 %s152, 1
    %p156 = scmp.eq.s32.totalorder %s13, 1
    %p157 = scmp.ne.s32.totalorder %s152, %s154
    %p158 = scmp.eq.s32.totalorder %s13, 0
    %p159 = por %p157, %p158
    %p160 = scmp.ne.s32.totalorder %s152, %s154
    %p161 = scmp.eq.s32.totalorder %s18, 1
    %p162 = por %p160, %p161
    %p163 = scmp.ne.s32.totalorder %s154, %s155
    %p164 = scmp.eq.s32.totalorder %s18, 0
    %p165 = por %p163, %p164
    %p166 = scmp.ne.s32.totalorder %s154, %s155
    %p167 = scmp.eq.s32.totalorder %s19, 1
    %p168 = por %p166, %p167
    %p170 = scmp.ne.s32.totalorder %s155, %s169
    %p171 = scmp.eq.s32.totalorder %s19, 0
    %p172 = por %p170, %p171
    %s173 = ssub.s32 %s13, %s20
    %p174 = scmp.eq.s32.totalorder %s173, 0
    %s176 = sadd.s32 %s175, 1
    %s177 = scalar_select %p174, %s175, %s176
    %p180 = pneg %p174
    %p181 = scmp.eq.s32.totalorder %s13, 1
    %p182 = por %p180, %p181
    %p183 = scmp.ne.s32.totalorder %s175, %s178
    %p184 = scmp.eq.s32.totalorder %s13, 0
    %p185 = por %p183, %p184
    %p186 = scmp.ne.s32.totalorder %s175, %s178
    %p187 = scmp.eq.s32.totalorder %s18, 1
    %p188 = por %p186, %p187
    %p189 = scmp.ne.s32.totalorder %s178, %s179
    %p190 = scmp.eq.s32.totalorder %s18, 0
    %p191 = por %p189, %p190
    %p192 = scmp.ne.s32.totalorder %s178, %s179
    %p193 = scmp.eq.s32.totalorder %s19, 1
    %p194 = por %p192, %p193
    %p196 = scmp.ne.s32.totalorder %s179, %s195
    %p197 = scmp.eq.s32.totalorder %s19, 0
    %p198 = por %p196, %p197
    %p199 = scmp.le.s32.totalorder 1, %s13
    %p200 = scmp.lt.s32.totalorder %s13, 3
    %p201 = pnand %p199, %p200
    %p202 = pneg %p201
    // Predicated region
    $region9: #{fwd.2} parent=5 // pred_check
      _
    $region10: #{fwd.2} parent=5 // pred_check_branch
      %204 = sbr.rel (%p201) target = $region12
    $region11: #{fwd.2} parent=5 // pred_region
      %s205 = ssub.s32 %s13, 1
      // Predicated region
      $region13: #{fwd.2} parent=11 // pred_check
        %p206 = pneg %p60
      $region14: #{fwd.2} parent=11 // pred_check_branch
        %208 = sbr.rel (%p206) target = $region16
      $region15: #{fwd.2} parent=11 // pred_region
        _
      $region16: #{fwd.2} parent=11 // pred_fallthru
        _
      // Predicated region
      $region17: #{fwd.2} parent=11 // pred_check
        %p209 = pneg %p81
      $region18: #{fwd.2} parent=11 // pred_check_branch
        %211 = sbr.rel (%p209) target = $region20
      $region19: #{fwd.2} parent=11 // pred_region
        _
      $region20: #{fwd.2} parent=11 // pred_fallthru
        _
      // Predicated region
      $region21: #{fwd.2} parent=11 // pred_check
        %p212 = pneg %p102
      $region22: #{fwd.2} parent=11 // pred_check_branch
        %214 = sbr.rel (%p212) target = $region24
      $region23: #{fwd.2} parent=11 // pred_region
        _
      $region24: #{fwd.2} parent=11 // pred_fallthru
        _
      // Predicated region
      $region25: #{fwd.2} parent=11 // pred_check
        %p215 = pneg %p123
      $region26: #{fwd.2} parent=11 // pred_check_branch
        %217 = sbr.rel (%p215) target = $region28
      $region27: #{fwd.2} parent=11 // pred_region
        _
      $region28: #{fwd.2} parent=11 // pred_fallthru
        _
      // Predicated region
      $region29: #{fwd.2} parent=11 // pred_check
        %p218 = pneg %p144
      $region30: #{fwd.2} parent=11 // pred_check_branch
        %220 = sbr.rel (%p218) target = $region32
      $region31: #{fwd.2} parent=11 // pred_region
        _
      $region32: #{fwd.2} parent=11 // pred_fallthru
        _
      // Predicated region
      $region33: #{fwd.2} parent=11 // pred_check
        %p221 = pneg %p165
      $region34: #{fwd.2} parent=11 // pred_check_branch
        %223 = sbr.rel (%p221) target = $region36
      $region35: #{fwd.2} parent=11 // pred_region
        _
      $region36: #{fwd.2} parent=11 // pred_fallthru
        _
    $region12: #{fwd.2} parent=5 // pred_fallthru
      _
    %p224 = scmp.lt.s32.totalorder %s13, 2
    // Predicated region
    $region37: #{fwd.2} parent=5 // pred_check
      %p225 = pneg %p224
    $region38: #{fwd.2} parent=5 // pred_check_branch
      %227 = sbr.rel (%p225) target = $region40
    $region39: #{fwd.2} parent=5 // pred_region
      // Predicated region
      $region41: #{fwd.2} parent=39 // pred_check
        %p228 = pneg %p33
      $region42: #{fwd.2} parent=39 // pred_check_branch
        %230 = sbr.rel (%p228) target = $region44
      $region43: #{fwd.2} parent=39 // pred_region
        %p231 = scmp.lt.s32.totalorder %s13, 1
        %s232 = scalar_select %p231, %s13, 1
        %s233 = smul.addr %s232, 4
        %s234 = smul.addr %s233, 8
        %s235 = scalar_lea.vmem %s0, %s234
      $region44: #{fwd.2} parent=39 // pred_fallthru
        _
    $region40: #{fwd.2} parent=5 // pred_fallthru
      _
    %p236 = scmp.le.s32.totalorder 1, %s13
    %p237 = scmp.lt.s32.totalorder %s13, 3
    %p238 = pnand %p236, %p237
    %p239 = pneg %p238
    // Predicated region
    $region45: #{fwd.2} parent=5 // pred_check
      _
    $region46: #{fwd.2} parent=5 // pred_check_branch
      %241 = sbr.rel (%p238) target = $region48
    $region47: #{fwd.2} parent=5 // pred_region
      %s242 = ssub.s32 %s13, 1
      %p243 = scmp.lt.s32.totalorder %s18, 1
      %s244 = scalar_select %p243, %s18, 1
      %s245 = smul.addr %s244, 4
      %s246 = smul.addr %s245, 8
      %s247 = scalar_lea.vmem %s0, %s246
      %p248 = pneg %p39
      %p249 = pneg %p36
      %p250 = pneg %p60
      %p251 = pneg %p57
      %p252 = pneg %p81
      %p253 = pneg %p78
      %p254 = pneg %p102
      %p255 = pneg %p99
      %p256 = pneg %p123
      %p257 = pneg %p120
      %p258 = pneg %p144
      %p259 = pneg %p141
      %p260 = pneg %p165
      %p261 = pneg %p162
      %p262 = pneg %p191
      %p263 = pneg %p188
      %p264 = scmp.lt.s32.totalorder %s18, 1
      %s265 = scalar_select %p264, %s18, 1
      %s266 = smul.addr %s265, 4
      %s267 = smul.addr %s266, 8
      %s268 = scalar_lea.vmem %s7, %s267
      %p269 = scmp.lt.s32.totalorder %s18, 1
      %s270 = scalar_select %p269, %s18, 1
      %s271 = smul.addr %s270, 4
      %s272 = smul.addr %s271, 8
      %s273 = scalar_lea.vmem %s0, %s272
      %p274 = scmp.lt.s32.totalorder %s18, 1
      %s275 = scalar_select %p274, %s18, 1
      %s276 = smul.addr %s275, 4
      %s277 = smul.addr %s276, 8
      %s278 = scalar_lea.vmem %s7, %s277
      %vm280 = vcmask 1040384
      %vm281 = vsmask.f32 256
      %vm282 = vmand %vm280, %vm281
      %vm283 = vcmask 1044484
      %vm284 = vsmask.f32 4352
      %vm285 = vmand %vm283, %vm284
      %vm286 = vmor %vm285, %vm282
      %v287 = vld [vmem:[#allocation2] sm:$0x11]
      %v288 = vsel %vm286, 0, %v287
      %289 = vst [vmem:[#allocation2] sm:$0x11] %v288
      %vm290 = vsmask.f32 7938
      %vm291 = vmand %vm280, %vm290
      %vm292 = vsmask.f32 7954
      %vm293 = vmand %vm283, %vm292
      %vm294 = vmor %vm293, %vm291
      %v295 = vld [vmem:[#allocation2 + $0x10] sm:$0x11]
      %v296 = vsel %vm294, 0, %v295
      %297 = vst [vmem:[#allocation2 + $0x10] sm:$0x11] %v296
      %v298 = vld [vmem:[%s273] sm:$0xff]
      %v299 = vld [vmem:[%s273 + $0x8] sm:$0xff]
      %v300 = vld [vmem:[%s273 + $0x10] sm:$0xff]
      %v301 = vld [vmem:[%s273 + $0x18] sm:$0xff]
      %v302 = vpack.c.bf16 %v300, %v298
      %v303 = vpack.c.bf16 %v301, %v299
      %v306 = vunpack.c.l.b16 %v302
      %v307 = vunpack.c.l.b16 %v303
      %v308 = vunpack.c.h.b16 %v302
      %v309 = vunpack.c.h.b16 %v303
      %v310 = vpack.c.b16 %v307, %v306
      %v311 = vpack.c.b16 %v309, %v308
      %vm312 = vsmask.f32 4368
      %vm313 = vmor %vm281, %vm312
      %v315 = vshrl.u32 %v310, 16
      %v317 = vrot.slane %v315, 7
      %v318 = vshll.u32 %v310, 16
      %v320 = vor.u32 %v317, %v318
      %v321 = vrot.slane %v317, 4
      %v323 = vshrl.u32 %v311, 16
      %v325 = vrot.slane %v323, 7
      %v326 = vshll.u32 %v311, 16
      %v328 = vor.u32 %v325, %v326
      %v329 = vsel %vm313, %v321, %v328
      %v330 = vrot.slane %v325, 4
      %vm334 = vcmask 1043456
      %vm335 = vmand %vm334, %vm290
      %vm336 = vcmask 1047556
      %vm337 = vmand %vm336, %vm292
      %vm338 = vmor %vm337, %vm335
      %v339 = vld [vmem:[#allocation2] sm:$0xff]
      %v340 = vsel %vm338, %v320, %v339
      %341 = vst [vmem:[#allocation2] sm:$0xff] %v340
      %342 = vst [vmem:[#allocation2 + $0x8] sm:$0xff] %v329
      %v343 = vld [vmem:[#allocation2 + $0x10] sm:$0x11]
      %v344 = vsel %vm286, %v330, %v343
      %345 = vst [vmem:[#allocation2 + $0x10] sm:$0x11] %v344
      %v346 = vld [vmem:[#allocation2] sm:$0xff]
      %v347 = vld [vmem:[#allocation2 + $0x8] sm:$0xff]
      %v348 = vld [vmem:[#allocation2 + $0x10] sm:$0x11]
      %v349 = vld [vmem:[#allocation2] sm:$0xee]
      %v350 = vld [vmem:[%s1] sm:$0xff]
      %v351 = vld [vmem:[%s1 + $0x8] sm:$0xff]
      %v352 = vld [vmem:[%s1 + $0x10] sm:$0xff]
      %v353 = vld [vmem:[%s1 + $0x18] sm:$0xff]
      %v354 = vld [vmem:[%s1 + $0x20] sm:$0xff]
      %v355 = vld [vmem:[%s1 + $0x28] sm:$0xff]
      %v356 = vld [vmem:[%s1 + $0x30] sm:$0xff]
      %v357 = vld [vmem:[%s1 + $0x38] sm:$0xff]
      %v358 = vld [vmem:[%s1 + $0x40] sm:$0xff]
      %v359 = vld [vmem:[%s1 + $0x48] sm:$0xff]
      %v360 = vld [vmem:[%s1 + $0x50] sm:$0xff]
      %v361 = vld [vmem:[%s1 + $0x58] sm:$0xff]
      %v362 = vld [vmem:[%s1 + $0x60] sm:$0xff]
      %v363 = vld [vmem:[%s1 + $0x68] sm:$0xff]
      %v364 = vld [vmem:[%s1 + $0x70] sm:$0xff]
      %v365 = vld [vmem:[%s1 + $0x78] sm:$0xff]
      %v366 = vld [vmem:[%s1 + $0x80] sm:$0xff]
      %v367 = vld [vmem:[%s1 + $0x88] sm:$0xff]
      %v368 = vld [vmem:[%s1 + $0x90] sm:$0xff]
      %v369 = vld [vmem:[%s1 + $0x98] sm:$0xff]
      %v370 = vld [vmem:[%s1 + $0xa0] sm:$0xff]
      %v371 = vld [vmem:[%s1 + $0xa8] sm:$0xff]
      %v372 = vld [vmem:[%s1 + $0xb0] sm:$0xff]
      %v373 = vld [vmem:[%s1 + $0xb8] sm:$0xff]
      %v374 = vld [vmem:[%s1 + $0xc0] sm:$0xff]
      %v375 = vld [vmem:[%s1 + $0xc8] sm:$0xff]
      %v376 = vld [vmem:[%s1 + $0xd0] sm:$0xff]
      %v377 = vld [vmem:[%s1 + $0xd8] sm:$0xff]
      %v378 = vld [vmem:[%s1 + $0xe0] sm:$0xff]
      %v379 = vld [vmem:[%s1 + $0xe8] sm:$0xff]
      %v380 = vld [vmem:[%s1 + $0xf0] sm:$0xff]
      %v381 = vld [vmem:[%s1 + $0xf8] sm:$0xff]
      %s382 = scalar_lea.vmem %s1, 256
      %v383 = vld [vmem:[%s382] sm:$0xff]
      %v384 = vld [vmem:[%s382 + $0x8] sm:$0xff]
      %v385 = vld [vmem:[%s382 + $0x10] sm:$0xff]
      %v386 = vld [vmem:[%s382 + $0x18] sm:$0xff]
      %v387 = vld [vmem:[%s382 + $0x20] sm:$0xff]
      %v388 = vld [vmem:[%s382 + $0x28] sm:$0xff]
      %v389 = vld [vmem:[%s382 + $0x30] sm:$0xff]
      %v390 = vld [vmem:[%s382 + $0x38] sm:$0xff]
      %v391 = vld [vmem:[%s382 + $0x40] sm:$0xff]
      %v392 = vld [vmem:[%s382 + $0x48] sm:$0xff]
      %v393 = vld [vmem:[%s382 + $0x50] sm:$0xff]
      %v394 = vld [vmem:[%s382 + $0x58] sm:$0xff]
      %v395 = vld [vmem:[%s382 + $0x60] sm:$0xff]
      %v396 = vld [vmem:[%s382 + $0x68] sm:$0xff]
      %v397 = vld [vmem:[%s382 + $0x70] sm:$0xff]
      %v398 = vld [vmem:[%s382 + $0x78] sm:$0xff]
      %v399 = vld [vmem:[%s382 + $0x80] sm:$0xff]
      %v400 = vld [vmem:[%s382 + $0x88] sm:$0xff]
      %v401 = vld [vmem:[%s382 + $0x90] sm:$0xff]
      %v402 = vld [vmem:[%s382 + $0x98] sm:$0xff]
      %v403 = vld [vmem:[%s382 + $0xa0] sm:$0xff]
      %v404 = vld [vmem:[%s382 + $0xa8] sm:$0xff]
      %v405 = vld [vmem:[%s382 + $0xb0] sm:$0xff]
      %v406 = vld [vmem:[%s382 + $0xb8] sm:$0xff]
      %v407 = vld [vmem:[%s382 + $0xc0] sm:$0xff]
      %v408 = vld [vmem:[%s382 + $0xc8] sm:$0xff]
      %v409 = vld [vmem:[%s382 + $0xd0] sm:$0xff]
      %v410 = vld [vmem:[%s382 + $0xd8] sm:$0xff]
      %v411 = vld [vmem:[%s382 + $0xe0] sm:$0xff]
      %v412 = vld [vmem:[%s382 + $0xe8] sm:$0xff]
      %v413 = vld [vmem:[%s382 + $0xf0] sm:$0xff]
      %v414 = vld [vmem:[%s382 + $0xf8] sm:$0xff]
      %v418 = vunpack.c.l.b16 %v346
      %v419 = vunpack.c.h.b16 %v346
      %v420 = vunpack.c.l.b16 %v347
      %v421 = vunpack.c.h.b16 %v347
      %v422 = vunpack.c.l.b16 %v348
      %v423 = vunpack.c.h.b16 %v348
      %v424 = vpack.c.b16 %v420, %v418
      %v425 = vpack.c.b16 %v421, %v419
      %v426 = vpack.c.b16 %v422, %v422
      %v427 = vpack.c.b16 %v423, %v423
      %vm428 = vsmask.f32 7424
      %v430 = vshrl.u32 %v424, 16
      %v432 = vshll.u32 %v424, 16
      %v434 = vrot.slane %v432, 1
      %v435 = vor.u32 %v430, %v434
      %v437 = vshll.u32 %v426, 16
      %v439 = vrot.slane %v437, 1
      %v440 = vsel %vm428, %v435, %v439
      %v442 = vshrl.u32 %v425, 16
      %v444 = vshll.u32 %v425, 16
      %v446 = vrot.slane %v444, 1
      %v447 = vor.u32 %v442, %v446
      %v449 = vshll.u32 %v427, 16
      %v451 = vrot.slane %v449, 1
      %v452 = vsel %vm428, %v447, %v451
      %v487 = vunpack.c.l.b16 %v383
      %v488 = vunpack.c.h.b16 %v383
      %v489 = vunpack.c.l.b16 %v384
      %v490 = vunpack.c.h.b16 %v384
      %v491 = vunpack.c.l.b16 %v385
      %v492 = vunpack.c.h.b16 %v385
      %v493 = vunpack.c.l.b16 %v386
      %v494 = vunpack.c.h.b16 %v386
      %v495 = vunpack.c.l.b16 %v387
      %v496 = vunpack.c.h.b16 %v387
      %v497 = vunpack.c.l.b16 %v388
      %v498 = vunpack.c.h.b16 %v388
      %v499 = vunpack.c.l.b16 %v389
      %v500 = vunpack.c.h.b16 %v389
      %v501 = vunpack.c.l.b16 %v390
      %v502 = vunpack.c.h.b16 %v390
      %v503 = vunpack.c.l.b16 %v391
      %v504 = vunpack.c.h.b16 %v391
      %v505 = vunpack.c.l.b16 %v392
      %v506 = vunpack.c.h.b16 %v392
      %v507 = vunpack.c.l.b16 %v393
      %v508 = vunpack.c.h.b16 %v393
      %v509 = vunpack.c.l.b16 %v394
      %v510 = vunpack.c.h.b16 %v394
      %v511 = vunpack.c.l.b16 %v395
      %v512 = vunpack.c.h.b16 %v395
      %v513 = vunpack.c.l.b16 %v396
      %v514 = vunpack.c.h.b16 %v396
      %v515 = vunpack.c.l.b16 %v397
      %v516 = vunpack.c.h.b16 %v397
      %v517 = vunpack.c.l.b16 %v398
      %v518 = vunpack.c.h.b16 %v398
      %v519 = vunpack.c.l.b16 %v399
      %v520 = vunpack.c.h.b16 %v399
      %v521 = vunpack.c.l.b16 %v400
      %v522 = vunpack.c.h.b16 %v400
      %v523 = vunpack.c.l.b16 %v401
      %v524 = vunpack.c.h.b16 %v401
      %v525 = vunpack.c.l.b16 %v402
      %v526 = vunpack.c.h.b16 %v402
      %v527 = vunpack.c.l.b16 %v403
      %v528 = vunpack.c.h.b16 %v403
      %v529 = vunpack.c.l.b16 %v404
      %v530 = vunpack.c.h.b16 %v404
      %v531 = vunpack.c.l.b16 %v405
      %v532 = vunpack.c.h.b16 %v405
      %v533 = vunpack.c.l.b16 %v406
      %v534 = vunpack.c.h.b16 %v406
      %v535 = vunpack.c.l.b16 %v407
      %v536 = vunpack.c.h.b16 %v407
      %v537 = vunpack.c.l.b16 %v408
      %v538 = vunpack.c.h.b16 %v408
      %v539 = vunpack.c.l.b16 %v409
      %v540 = vunpack.c.h.b16 %v409
      %v541 = vunpack.c.l.b16 %v410
      %v542 = vunpack.c.h.b16 %v410
      %v543 = vunpack.c.l.b16 %v411
      %v544 = vunpack.c.h.b16 %v411
      %v545 = vunpack.c.l.b16 %v412
      %v546 = vunpack.c.h.b16 %v412
      %v547 = vunpack.c.l.b16 %v413
      %v548 = vunpack.c.h.b16 %v413
      %v549 = vunpack.c.l.b16 %v414
      %v550 = vunpack.c.h.b16 %v414
      %v551 = vpack.c.b16 %v489, %v487
      %v552 = vpack.c.b16 %v490, %v488
      %v553 = vpack.c.b16 %v493, %v491
      %v554 = vpack.c.b16 %v494, %v492
      %v555 = vpack.c.b16 %v497, %v495
      %v556 = vpack.c.b16 %v498, %v496
      %v557 = vpack.c.b16 %v501, %v499
      %v558 = vpack.c.b16 %v502, %v500
      %v559 = vpack.c.b16 %v505, %v503
      %v560 = vpack.c.b16 %v506, %v504
      %v561 = vpack.c.b16 %v509, %v507
      %v562 = vpack.c.b16 %v510, %v508
      %v563 = vpack.c.b16 %v513, %v511
      %v564 = vpack.c.b16 %v514, %v512
      %v565 = vpack.c.b16 %v517, %v515
      %v566 = vpack.c.b16 %v518, %v516
      %v567 = vpack.c.b16 %v521, %v519
      %v568 = vpack.c.b16 %v522, %v520
      %v569 = vpack.c.b16 %v525, %v523
      %v570 = vpack.c.b16 %v526, %v524
      %v571 = vpack.c.b16 %v529, %v527
      %v572 = vpack.c.b16 %v530, %v528
      %v573 = vpack.c.b16 %v533, %v531
      %v574 = vpack.c.b16 %v534, %v532
      %v575 = vpack.c.b16 %v537, %v535
      %v576 = vpack.c.b16 %v538, %v536
      %v577 = vpack.c.b16 %v541, %v539
      %v578 = vpack.c.b16 %v542, %v540
      %v579 = vpack.c.b16 %v545, %v543
      %v580 = vpack.c.b16 %v546, %v544
      %v581 = vpack.c.b16 %v549, %v547
      %v582 = vpack.c.b16 %v550, %v548
      %615 = vmatprep.subr.bf16.mxu0 %v552
      %616 = vmatpush1.bf16.msra.mxu0 %v551
      %617 = vmatprep.subr.bf16.mxu0 %v554
      %618 = vmatpush1.bf16.msra.mxu0 %v553
      %619 = vmatprep.subr.bf16.mxu0 %v556
      %620 = vmatpush1.bf16.msra.mxu0 %v555
      %621 = vmatprep.subr.bf16.mxu0 %v558
      %622 = vmatpush1.bf16.msra.mxu0 %v557
      %623 = vmatprep.subr.bf16.mxu0 %v560
      %624 = vmatpush1.bf16.msra.mxu0 %v559
      %625 = vmatprep.subr.bf16.mxu0 %v562
      %626 = vmatpush1.bf16.msra.mxu0 %v561
      %627 = vmatprep.subr.bf16.mxu0 %v564
      %628 = vmatpush1.bf16.msra.mxu0 %v563
      %629 = vmatprep.subr.bf16.mxu0 %v566
      %630 = vmatpush1.bf16.msra.mxu0 %v565
      %631 = vmatprep.subr.bf16.mxu0 %v568
      %632 = vmatpush1.bf16.msra.mxu0 %v567
      %633 = vmatprep.subr.bf16.mxu0 %v570
      %634 = vmatpush1.bf16.msra.mxu0 %v569
      %635 = vmatprep.subr.bf16.mxu0 %v572
      %636 = vmatpush1.bf16.msra.mxu0 %v571
      %637 = vmatprep.subr.bf16.mxu0 %v574
      %638 = vmatpush1.bf16.msra.mxu0 %v573
      %639 = vmatprep.subr.bf16.mxu0 %v576
      %640 = vmatpush1.bf16.msra.mxu0 %v575
      %641 = vmatprep.subr.bf16.mxu0 %v578
      %642 = vmatpush1.bf16.msra.mxu0 %v577
      %643 = vmatprep.subr.bf16.mxu0 %v580
      %644 = vmatpush1.bf16.msra.mxu0 %v579
      %645 = vmatprep.subr.bf16.mxu0 %v582
      %646 = vmatpush1.bf16.msra.mxu0 %v581
      %647 = vmatprep.mubr.bf16.mxu0 %v452
      %648 = vmatmul.mubr.bf16.gmra.mrb[0].mxu0 %v440
      %v649 = vpop.f32.mrb[0].mxu0
      %v650 = vadd.f32 0.0, %v649
      %v651 = vpop.f32.mrb[0].mxu0
      %v652 = vadd.f32 0.0, %v651
      %v653 = vpop.f32.mrb[0].mxu0
      %v654 = vadd.f32 0.0, %v653
      %v655 = vpop.f32.mrb[0].mxu0
      %v656 = vadd.f32 0.0, %v655
      %657 = vdwg.mxu0
      %v692 = vunpack.c.l.b16 %v350
      %v693 = vunpack.c.h.b16 %v350
      %v694 = vunpack.c.l.b16 %v351
      %v695 = vunpack.c.h.b16 %v351
      %v696 = vunpack.c.l.b16 %v352
      %v697 = vunpack.c.h.b16 %v352
      %v698 = vunpack.c.l.b16 %v353
      %v699 = vunpack.c.h.b16 %v353
      %v700 = vunpack.c.l.b16 %v354
      %v701 = vunpack.c.h.b16 %v354
      %v702 = vunpack.c.l.b16 %v355
      %v703 = vunpack.c.h.b16 %v355
      %v704 = vunpack.c.l.b16 %v356
      %v705 = vunpack.c.h.b16 %v356
      %v706 = vunpack.c.l.b16 %v357
      %v707 = vunpack.c.h.b16 %v357
      %v708 = vunpack.c.l.b16 %v358
      %v709 = vunpack.c.h.b16 %v358
      %v710 = vunpack.c.l.b16 %v359
      %v711 = vunpack.c.h.b16 %v359
      %v712 = vunpack.c.l.b16 %v360
      %v713 = vunpack.c.h.b16 %v360
      %v714 = vunpack.c.l.b16 %v361
      %v715 = vunpack.c.h.b16 %v361
      %v716 = vunpack.c.l.b16 %v362
      %v717 = vunpack.c.h.b16 %v362
      %v718 = vunpack.c.l.b16 %v363
      %v719 = vunpack.c.h.b16 %v363
      %v720 = vunpack.c.l.b16 %v364
      %v721 = vunpack.c.h.b16 %v364
      %v722 = vunpack.c.l.b16 %v365
      %v723 = vunpack.c.h.b16 %v365
      %v724 = vunpack.c.l.b16 %v366
      %v725 = vunpack.c.h.b16 %v366
      %v726 = vunpack.c.l.b16 %v367
      %v727 = vunpack.c.h.b16 %v367
      %v728 = vunpack.c.l.b16 %v368
      %v729 = vunpack.c.h.b16 %v368
      %v730 = vunpack.c.l.b16 %v369
      %v731 = vunpack.c.h.b16 %v369
      %v732 = vunpack.c.l.b16 %v370
      %v733 = vunpack.c.h.b16 %v370
      %v734 = vunpack.c.l.b16 %v371
      %v735 = vunpack.c.h.b16 %v371
      %v736 = vunpack.c.l.b16 %v372
      %v737 = vunpack.c.h.b16 %v372
      %v738 = vunpack.c.l.b16 %v373
      %v739 = vunpack.c.h.b16 %v373
      %v740 = vunpack.c.l.b16 %v374
      %v741 = vunpack.c.h.b16 %v374
      %v742 = vunpack.c.l.b16 %v375
      %v743 = vunpack.c.h.b16 %v375
      %v744 = vunpack.c.l.b16 %v376
      %v745 = vunpack.c.h.b16 %v376
      %v746 = vunpack.c.l.b16 %v377
      %v747 = vunpack.c.h.b16 %v377
      %v748 = vunpack.c.l.b16 %v378
      %v749 = vunpack.c.h.b16 %v378
      %v750 = vunpack.c.l.b16 %v379
      %v751 = vunpack.c.h.b16 %v379
      %v752 = vunpack.c.l.b16 %v380
      %v753 = vunpack.c.h.b16 %v380
      %v754 = vunpack.c.l.b16 %v381
      %v755 = vunpack.c.h.b16 %v381
      %v756 = vpack.c.b16 %v694, %v692
      %v757 = vpack.c.b16 %v695, %v693
      %v758 = vpack.c.b16 %v698, %v696
      %v759 = vpack.c.b16 %v699, %v697
      %v760 = vpack.c.b16 %v702, %v700
      %v761 = vpack.c.b16 %v703, %v701
      %v762 = vpack.c.b16 %v706, %v704
      %v763 = vpack.c.b16 %v707, %v705
      %v764 = vpack.c.b16 %v710, %v708
      %v765 = vpack.c.b16 %v711, %v709
      %v766 = vpack.c.b16 %v714, %v712
      %v767 = vpack.c.b16 %v715, %v713
      %v768 = vpack.c.b16 %v718, %v716
      %v769 = vpack.c.b16 %v719, %v717
      %v770 = vpack.c.b16 %v722, %v720
      %v771 = vpack.c.b16 %v723, %v721
      %v772 = vpack.c.b16 %v726, %v724
      %v773 = vpack.c.b16 %v727, %v725
      %v774 = vpack.c.b16 %v730, %v728
      %v775 = vpack.c.b16 %v731, %v729
      %v776 = vpack.c.b16 %v734, %v732
      %v777 = vpack.c.b16 %v735, %v733
      %v778 = vpack.c.b16 %v738, %v736
      %v779 = vpack.c.b16 %v739, %v737
      %v780 = vpack.c.b16 %v742, %v740
      %v781 = vpack.c.b16 %v743, %v741
      %v782 = vpack.c.b16 %v746, %v744
      %v783 = vpack.c.b16 %v747, %v745
      %v784 = vpack.c.b16 %v750, %v748
      %v785 = vpack.c.b16 %v751, %v749
      %v786 = vpack.c.b16 %v754, %v752
      %v787 = vpack.c.b16 %v755, %v753
      %820 = vmatprep.subr.bf16.mxu0 %v757
      %821 = vmatpush1.bf16.msra.mxu0 %v756
      %822 = vmatprep.subr.bf16.mxu0 %v759
      %823 = vmatpush1.bf16.msra.mxu0 %v758
      %824 = vmatprep.subr.bf16.mxu0 %v761
      %825 = vmatpush1.bf16.msra.mxu0 %v760
      %826 = vmatprep.subr.bf16.mxu0 %v763
      %827 = vmatpush1.bf16.msra.mxu0 %v762
      %828 = vmatprep.subr.bf16.mxu0 %v765
      %829 = vmatpush1.bf16.msra.mxu0 %v764
      %830 = vmatprep.subr.bf16.mxu0 %v767
      %831 = vmatpush1.bf16.msra.mxu0 %v766
      %832 = vmatprep.subr.bf16.mxu0 %v769
      %833 = vmatpush1.bf16.msra.mxu0 %v768
      %834 = vmatprep.subr.bf16.mxu0 %v771
      %835 = vmatpush1.bf16.msra.mxu0 %v770
      %836 = vmatprep.subr.bf16.mxu0 %v773
      %837 = vmatpush1.bf16.msra.mxu0 %v772
      %838 = vmatprep.subr.bf16.mxu0 %v775
      %839 = vmatpush1.bf16.msra.mxu0 %v774
      %840 = vmatprep.subr.bf16.mxu0 %v777
      %841 = vmatpush1.bf16.msra.mxu0 %v776
      %842 = vmatprep.subr.bf16.mxu0 %v779
      %843 = vmatpush1.bf16.msra.mxu0 %v778
      %844 = vmatprep.subr.bf16.mxu0 %v781
      %845 = vmatpush1.bf16.msra.mxu0 %v780
      %846 = vmatprep.subr.bf16.mxu0 %v783
      %847 = vmatpush1.bf16.msra.mxu0 %v782
      %848 = vmatprep.subr.bf16.mxu0 %v785
      %849 = vmatpush1.bf16.msra.mxu0 %v784
      %850 = vmatprep.subr.bf16.mxu0 %v787
      %851 = vmatpush1.bf16.msra.mxu0 %v786
      %852 = vmatprep.mubr.bf16.mxu0 %v425
      %853 = vmatmul.mubr.bf16.gmra.mrb[0].mxu0 %v424
      %v854 = vpop.f32.mrb[0].mxu0
      %v855 = vadd.f32 %v650, %v854
      %v856 = vpop.f32.mrb[0].mxu0
      %v857 = vadd.f32 %v652, %v856
      %v858 = vpop.f32.mrb[0].mxu0
      %v859 = vadd.f32 %v654, %v858
      %v860 = vpop.f32.mrb[0].mxu0
      %v861 = vadd.f32 %v656, %v860
      %862 = vdwg.mxu0
      %s863 = scalar_lea.vmem %s1, 512
      %v864 = vld [vmem:[%s863] sm:$0xff]
      %v865 = vld [vmem:[%s863 + $0x8] sm:$0xff]
      %v866 = vld [vmem:[%s863 + $0x10] sm:$0xff]
      %v867 = vld [vmem:[%s863 + $0x18] sm:$0xff]
      %v868 = vld [vmem:[%s863 + $0x20] sm:$0xff]
      %v869 = vld [vmem:[%s863 + $0x28] sm:$0xff]
      %v870 = vld [vmem:[%s863 + $0x30] sm:$0xff]
      %v871 = vld [vmem:[%s863 + $0x38] sm:$0xff]
      %v872 = vld [vmem:[%s863 + $0x40] sm:$0xff]
      %v873 = vld [vmem:[%s863 + $0x48] sm:$0xff]
      %v874 = vld [vmem:[%s863 + $0x50] sm:$0xff]
      %v875 = vld [vmem:[%s863 + $0x58] sm:$0xff]
      %v876 = vld [vmem:[%s863 + $0x60] sm:$0xff]
      %v877 = vld [vmem:[%s863 + $0x68] sm:$0xff]
      %v878 = vld [vmem:[%s863 + $0x70] sm:$0xff]
      %v879 = vld [vmem:[%s863 + $0x78] sm:$0xff]
      %v880 = vld [vmem:[%s863 + $0x80] sm:$0xff]
      %v881 = vld [vmem:[%s863 + $0x88] sm:$0xff]
      %v882 = vld [vmem:[%s863 + $0x90] sm:$0xff]
      %v883 = vld [vmem:[%s863 + $0x98] sm:$0xff]
      %v884 = vld [vmem:[%s863 + $0xa0] sm:$0xff]
      %v885 = vld [vmem:[%s863 + $0xa8] sm:$0xff]
      %v886 = vld [vmem:[%s863 + $0xb0] sm:$0xff]
      %v887 = vld [vmem:[%s863 + $0xb8] sm:$0xff]
      %v888 = vld [vmem:[%s863 + $0xc0] sm:$0xff]
      %v889 = vld [vmem:[%s863 + $0xc8] sm:$0xff]
      %v890 = vld [vmem:[%s863 + $0xd0] sm:$0xff]
      %v891 = vld [vmem:[%s863 + $0xd8] sm:$0xff]
      %v892 = vld [vmem:[%s863 + $0xe0] sm:$0xff]
      %v893 = vld [vmem:[%s863 + $0xe8] sm:$0xff]
      %v894 = vld [vmem:[%s863 + $0xf0] sm:$0xff]
      %v895 = vld [vmem:[%s863 + $0xf8] sm:$0xff]
      %v897 = vunpack.c.l.b16 %v349
      %v898 = vunpack.c.h.b16 %v349
      %v899 = vpack.c.b16 %v420, %v897
      %v900 = vpack.c.b16 %v421, %v898
      %vm901 = vcmask 1046528
      %v902 = vrot.slane %v899, 1
      %v903 = vrot.slane %v426, 1
      %v904 = vsel %vm901, %v902, %v903
      %v905 = vrot.slane %v900, 1
      %v906 = vrot.slane %v427, 1
      %v907 = vsel %vm901, %v905, %v906
      %v942 = vunpack.c.l.b16 %v864
      %v943 = vunpack.c.h.b16 %v864
      %v944 = vunpack.c.l.b16 %v865
      %v945 = vunpack.c.h.b16 %v865
      %v946 = vunpack.c.l.b16 %v866
      %v947 = vunpack.c.h.b16 %v866
      %v948 = vunpack.c.l.b16 %v867
      %v949 = vunpack.c.h.b16 %v867
      %v950 = vunpack.c.l.b16 %v868
      %v951 = vunpack.c.h.b16 %v868
      %v952 = vunpack.c.l.b16 %v869
      %v953 = vunpack.c.h.b16 %v869
      %v954 = vunpack.c.l.b16 %v870
      %v955 = vunpack.c.h.b16 %v870
      %v956 = vunpack.c.l.b16 %v871
      %v957 = vunpack.c.h.b16 %v871
      %v958 = vunpack.c.l.b16 %v872
      %v959 = vunpack.c.h.b16 %v872
      %v960 = vunpack.c.l.b16 %v873
      %v961 = vunpack.c.h.b16 %v873
      %v962 = vunpack.c.l.b16 %v874
      %v963 = vunpack.c.h.b16 %v874
      %v964 = vunpack.c.l.b16 %v875
      %v965 = vunpack.c.h.b16 %v875
      %v966 = vunpack.c.l.b16 %v876
      %v967 = vunpack.c.h.b16 %v876
      %v968 = vunpack.c.l.b16 %v877
      %v969 = vunpack.c.h.b16 %v877
      %v970 = vunpack.c.l.b16 %v878
      %v971 = vunpack.c.h.b16 %v878
      %v972 = vunpack.c.l.b16 %v879
      %v973 = vunpack.c.h.b16 %v879
      %v974 = vunpack.c.l.b16 %v880
      %v975 = vunpack.c.h.b16 %v880
      %v976 = vunpack.c.l.b16 %v881
      %v977 = vunpack.c.h.b16 %v881
      %v978 = vunpack.c.l.b16 %v882
      %v979 = vunpack.c.h.b16 %v882
      %v980 = vunpack.c.l.b16 %v883
      %v981 = vunpack.c.h.b16 %v883
      %v982 = vunpack.c.l.b16 %v884
      %v983 = vunpack.c.h.b16 %v884
      %v984 = vunpack.c.l.b16 %v885
      %v985 = vunpack.c.h.b16 %v885
      %v986 = vunpack.c.l.b16 %v886
      %v987 = vunpack.c.h.b16 %v886
      %v988 = vunpack.c.l.b16 %v887
      %v989 = vunpack.c.h.b16 %v887
      %v990 = vunpack.c.l.b16 %v888
      %v991 = vunpack.c.h.b16 %v888
      %v992 = vunpack.c.l.b16 %v889
      %v993 = vunpack.c.h.b16 %v889
      %v994 = vunpack.c.l.b16 %v890
      %v995 = vunpack.c.h.b16 %v890
      %v996 = vunpack.c.l.b16 %v891
      %v997 = vunpack.c.h.b16 %v891
      %v998 = vunpack.c.l.b16 %v892
      %v999 = vunpack.c.h.b16 %v892
      %v1000 = vunpack.c.l.b16 %v893
      %v1001 = vunpack.c.h.b16 %v893
      %v1002 = vunpack.c.l.b16 %v894
      %v1003 = vunpack.c.h.b16 %v894
      %v1004 = vunpack.c.l.b16 %v895
      %v1005 = vunpack.c.h.b16 %v895
      %v1006 = vpack.c.b16 %v944, %v942
      %v1007 = vpack.c.b16 %v945, %v943
      %v1008 = vpack.c.b16 %v948, %v946
      %v1009 = vpack.c.b16 %v949, %v947
      %v1010 = vpack.c.b16 %v952, %v950
      %v1011 = vpack.c.b16 %v953, %v951
      %v1012 = vpack.c.b16 %v956, %v954
      %v1013 = vpack.c.b16 %v957, %v955
      %v1014 = vpack.c.b16 %v960, %v958
      %v1015 = vpack.c.b16 %v961, %v959
      %v1016 = vpack.c.b16 %v964, %v962
      %v1017 = vpack.c.b16 %v965, %v963
      %v1018 = vpack.c.b16 %v968, %v966
      %v1019 = vpack.c.b16 %v969, %v967
      %v1020 = vpack.c.b16 %v972, %v970
      %v1021 = vpack.c.b16 %v973, %v971
      %v1022 = vpack.c.b16 %v976, %v974
      %v1023 = vpack.c.b16 %v977, %v975
      %v1024 = vpack.c.b16 %v980, %v978
      %v1025 = vpack.c.b16 %v981, %v979
      %v1026 = vpack.c.b16 %v984, %v982
      %v1027 = vpack.c.b16 %v985, %v983
      %v1028 = vpack.c.b16 %v988, %v986
      %v1029 = vpack.c.b16 %v989, %v987
      %v1030 = vpack.c.b16 %v992, %v990
      %v1031 = vpack.c.b16 %v993, %v991
      %v1032 = vpack.c.b16 %v996, %v994
      %v1033 = vpack.c.b16 %v997, %v995
      %v1034 = vpack.c.b16 %v1000, %v998
      %v1035 = vpack.c.b16 %v1001, %v999
      %v1036 = vpack.c.b16 %v1004, %v1002
      %v1037 = vpack.c.b16 %v1005, %v1003
      %1070 = vmatprep.subr.bf16.mxu0 %v1007
      %1071 = vmatpush1.bf16.msra.mxu0 %v1006
      %1072 = vmatprep.subr.bf16.mxu0 %v1009
      %1073 = vmatpush1.bf16.msra.mxu0 %v1008
      %1074 = vmatprep.subr.bf16.mxu0 %v1011
      %1075 = vmatpush1.bf16.msra.mxu0 %v1010
      %1076 = vmatprep.subr.bf16.mxu0 %v1013
      %1077 = vmatpush1.bf16.msra.mxu0 %v1012
      %1078 = vmatprep.subr.bf16.mxu0 %v1015
      %1079 = vmatpush1.bf16.msra.mxu0 %v1014
      %1080 = vmatprep.subr.bf16.mxu0 %v1017
      %1081 = vmatpush1.bf16.msra.mxu0 %v1016
      %1082 = vmatprep.subr.bf16.mxu0 %v1019
      %1083 = vmatpush1.bf16.msra.mxu0 %v1018
      %1084 = vmatprep.subr.bf16.mxu0 %v1021
      %1085 = vmatpush1.bf16.msra.mxu0 %v1020
      %1086 = vmatprep.subr.bf16.mxu0 %v1023
      %1087 = vmatpush1.bf16.msra.mxu0 %v1022
      %1088 = vmatprep.subr.bf16.mxu0 %v1025
      %1089 = vmatpush1.bf16.msra.mxu0 %v1024
      %1090 = vmatprep.subr.bf16.mxu0 %v1027
      %1091 = vmatpush1.bf16.msra.mxu0 %v1026
      %1092 = vmatprep.subr.bf16.mxu0 %v1029
      %1093 = vmatpush1.bf16.msra.mxu0 %v1028
      %1094 = vmatprep.subr.bf16.mxu0 %v1031
      %1095 = vmatpush1.bf16.msra.mxu0 %v1030
      %1096 = vmatprep.subr.bf16.mxu0 %v1033
      %1097 = vmatpush1.bf16.msra.mxu0 %v1032
      %1098 = vmatprep.subr.bf16.mxu0 %v1035
      %1099 = vmatpush1.bf16.msra.mxu0 %v1034
      %1100 = vmatprep.subr.bf16.mxu0 %v1037
      %1101 = vmatpush1.bf16.msra.mxu0 %v1036
      %1102 = vmatprep.mubr.bf16.mxu0 %v907
      %1103 = vmatmul.mubr.bf16.gmra.mrb[0].mxu0 %v904
      %v1104 = vpop.f32.mrb[0].mxu0
      %v1105 = vadd.f32 0.0, %v1104
      %v1106 = vpop.f32.mrb[0].mxu0
      %v1107 = vadd.f32 0.0, %v1106
      %v1108 = vpop.f32.mrb[0].mxu0
      %v1109 = vadd.f32 0.0, %v1108
      %v1110 = vpop.f32.mrb[0].mxu0
      %v1111 = vadd.f32 0.0, %v1110
      %1112 = vdwg.mxu0
      %v1113 = vadd.f32 %v855, %v1105
      %v1114 = vadd.f32 %v857, %v1107
      %v1115 = vadd.f32 %v859, %v1109
      %v1116 = vadd.f32 %v861, %v1111
      %v1117 = vld [vmem:[%s2] sm:$0x3]
      %v1119 = vlaneseq
      %v1120 = vshrl.u32 %v1119, 7
      %v1121 = vsub.s32 0, %v1120
      %v1122 = vrot.slane %v1117, %v1121
      %v1123 = vlaneseq
      %v1124 = vshrl.u32 %v1123, 7
      %v1125 = vsub.s32 1, %v1124
      %v1126 = vrot.slane %v1117, %v1125
      %v1129 = vmul.f32 %v1113, %v1122
      %v1130 = vmul.f32 %v1114, %v1126
      %v1131 = vmul.f32 %v1115, %v1122
      %v1132 = vmul.f32 %v1116, %v1126
      %v1133 = vld [vmem:[%s3] sm:$0x3]
      %v1135 = vlaneseq
      %v1136 = vshrl.u32 %v1135, 7
      %v1137 = vsub.s32 0, %v1136
      %v1138 = vrot.slane %v1133, %v1137
      %v1139 = vlaneseq
      %v1140 = vshrl.u32 %v1139, 7
      %v1141 = vsub.s32 1, %v1140
      %v1142 = vrot.slane %v1133, %v1141
      %v1145 = vadd.f32 %v1129, %v1138
      %v1146 = vadd.f32 %v1130, %v1142
      %v1147 = vadd.f32 %v1131, %v1138
      %v1148 = vadd.f32 %v1132, %v1142
      %v1149 = vmax.f32 %v1145, 0.0
      %v1150 = vmax.f32 %v1146, 0.0
      %v1151 = vmax.f32 %v1147, 0.0
      %v1152 = vmax.f32 %v1148, 0.0
      %v1153 = vld [vmem:[#allocation3] sm:$0x11]
      %v1154 = vsel %vm286, 0, %v1153
      %1155 = vst [vmem:[#allocation3] sm:$0x11] %v1154
      %v1156 = vld [vmem:[#allocation3 + $0x10] sm:$0x11]
      %v1157 = vsel %vm294, 0, %v1156
      %1158 = vst [vmem:[#allocation3 + $0x10] sm:$0x11] %v1157
      %v1159 = vpack.c.bf16 %v1151, %v1149
      %v1160 = vpack.c.bf16 %v1152, %v1150
      %v1163 = vunpack.c.l.b16 %v1159
      %v1164 = vunpack.c.l.b16 %v1160
      %v1165 = vunpack.c.h.b16 %v1159
      %v1166 = vunpack.c.h.b16 %v1160
      %v1167 = vpack.c.b16 %v1164, %v1163
      %v1168 = vpack.c.b16 %v1166, %v1165
      %v1170 = vshrl.u32 %v1167, 16
      %v1172 = vrot.slane %v1170, 7
      %v1173 = vshll.u32 %v1167, 16
      %v1175 = vor.u32 %v1172, %v1173
      %v1176 = vrot.slane %v1172, 4
      %v1178 = vshrl.u32 %v1168, 16
      %v1180 = vrot.slane %v1178, 7
      %v1181 = vshll.u32 %v1168, 16
      %v1183 = vor.u32 %v1180, %v1181
      %v1184 = vsel %vm313, %v1176, %v1183
      %v1185 = vrot.slane %v1180, 4
      %v1189 = vld [vmem:[#allocation3] sm:$0xff]
      %v1190 = vsel %vm338, %v1175, %v1189
      %1191 = vst [vmem:[#allocation3] sm:$0xff] %v1190
      %1192 = vst [vmem:[#allocation3 + $0x8] sm:$0xff] %v1184
      %v1193 = vld [vmem:[#allocation3 + $0x10] sm:$0x11]
      %v1194 = vsel %vm286, %v1185, %v1193
      %1195 = vst [vmem:[#allocation3 + $0x10] sm:$0x11] %v1194
      %v1196 = vld [vmem:[#allocation3] sm:$0xff]
      %v1197 = vld [vmem:[#allocation3 + $0x8] sm:$0xff]
      %v1198 = vld [vmem:[%s4] sm:$0xff]
      %v1199 = vld [vmem:[%s4 + $0x8] sm:$0xff]
      %v1200 = vld [vmem:[%s4 + $0x10] sm:$0xff]
      %v1201 = vld [vmem:[%s4 + $0x18] sm:$0xff]
      %v1202 = vld [vmem:[%s4 + $0x20] sm:$0xff]
      %v1203 = vld [vmem:[%s4 + $0x28] sm:$0xff]
      %v1204 = vld [vmem:[%s4 + $0x30] sm:$0xff]
      %v1205 = vld [vmem:[%s4 + $0x38] sm:$0xff]
      %v1206 = vld [vmem:[%s4 + $0x40] sm:$0xff]
      %v1207 = vld [vmem:[%s4 + $0x48] sm:$0xff]
      %v1208 = vld [vmem:[%s4 + $0x50] sm:$0xff]
      %v1209 = vld [vmem:[%s4 + $0x58] sm:$0xff]
      %v1210 = vld [vmem:[%s4 + $0x60] sm:$0xff]
      %v1211 = vld [vmem:[%s4 + $0x68] sm:$0xff]
      %v1212 = vld [vmem:[%s4 + $0x70] sm:$0xff]
      %v1213 = vld [vmem:[%s4 + $0x78] sm:$0xff]
      %v1214 = vld [vmem:[%s4 + $0x80] sm:$0xff]
      %v1215 = vld [vmem:[%s4 + $0x88] sm:$0xff]
      %v1216 = vld [vmem:[%s4 + $0x90] sm:$0xff]
      %v1217 = vld [vmem:[%s4 + $0x98] sm:$0xff]
      %v1218 = vld [vmem:[%s4 + $0xa0] sm:$0xff]
      %v1219 = vld [vmem:[%s4 + $0xa8] sm:$0xff]
      %v1220 = vld [vmem:[%s4 + $0xb0] sm:$0xff]
      %v1221 = vld [vmem:[%s4 + $0xb8] sm:$0xff]
      %v1222 = vld [vmem:[%s4 + $0xc0] sm:$0xff]
      %v1223 = vld [vmem:[%s4 + $0xc8] sm:$0xff]
      %v1224 = vld [vmem:[%s4 + $0xd0] sm:$0xff]
      %v1225 = vld [vmem:[%s4 + $0xd8] sm:$0xff]
      %v1226 = vld [vmem:[%s4 + $0xe0] sm:$0xff]
      %v1227 = vld [vmem:[%s4 + $0xe8] sm:$0xff]
      %v1228 = vld [vmem:[%s4 + $0xf0] sm:$0xff]
      %v1229 = vld [vmem:[%s4 + $0xf8] sm:$0xff]
      %v1230 = vld [vmem:[#allocation3 + $0x10] sm:$0x11]
      %s1231 = scalar_lea.vmem %s4, 256
      %v1232 = vld [vmem:[%s1231] sm:$0xff]
      %v1233 = vld [vmem:[%s1231 + $0x8] sm:$0xff]
      %v1234 = vld [vmem:[%s1231 + $0x10] sm:$0xff]
      %v1235 = vld [vmem:[%s1231 + $0x18] sm:$0xff]
      %v1236 = vld [vmem:[%s1231 + $0x20] sm:$0xff]
      %v1237 = vld [vmem:[%s1231 + $0x28] sm:$0xff]
      %v1238 = vld [vmem:[%s1231 + $0x30] sm:$0xff]
      %v1239 = vld [vmem:[%s1231 + $0x38] sm:$0xff]
      %v1240 = vld [vmem:[%s1231 + $0x40] sm:$0xff]
      %v1241 = vld [vmem:[%s1231 + $0x48] sm:$0xff]
      %v1242 = vld [vmem:[%s1231 + $0x50] sm:$0xff]
      %v1243 = vld [vmem:[%s1231 + $0x58] sm:$0xff]
      %v1244 = vld [vmem:[%s1231 + $0x60] sm:$0xff]
      %v1245 = vld [vmem:[%s1231 + $0x68] sm:$0xff]
      %v1246 = vld [vmem:[%s1231 + $0x70] sm:$0xff]
      %v1247 = vld [vmem:[%s1231 + $0x78] sm:$0xff]
      %v1248 = vld [vmem:[%s1231 + $0x80] sm:$0xff]
      %v1249 = vld [vmem:[%s1231 + $0x88] sm:$0xff]
      %v1250 = vld [vmem:[%s1231 + $0x90] sm:$0xff]
      %v1251 = vld [vmem:[%s1231 + $0x98] sm:$0xff]
      %v1252 = vld [vmem:[%s1231 + $0xa0] sm:$0xff]
      %v1253 = vld [vmem:[%s1231 + $0xa8] sm:$0xff]
      %v1254 = vld [vmem:[%s1231 + $0xb0] sm:$0xff]
      %v1255 = vld [vmem:[%s1231 + $0xb8] sm:$0xff]
      %v1256 = vld [vmem:[%s1231 + $0xc0] sm:$0xff]
      %v1257 = vld [vmem:[%s1231 + $0xc8] sm:$0xff]
      %v1258 = vld [vmem:[%s1231 + $0xd0] sm:$0xff]
      %v1259 = vld [vmem:[%s1231 + $0xd8] sm:$0xff]
      %v1260 = vld [vmem:[%s1231 + $0xe0] sm:$0xff]
      %v1261 = vld [vmem:[%s1231 + $0xe8] sm:$0xff]
      %v1262 = vld [vmem:[%s1231 + $0xf0] sm:$0xff]
      %v1263 = vld [vmem:[%s1231 + $0xf8] sm:$0xff]
      %v1267 = vunpack.c.l.b16 %v1196
      %v1268 = vunpack.c.h.b16 %v1196
      %v1269 = vunpack.c.l.b16 %v1197
      %v1270 = vunpack.c.h.b16 %v1197
      %v1271 = vunpack.c.l.b16 %v1230
      %v1272 = vunpack.c.h.b16 %v1230
      %v1273 = vpack.c.b16 %v1269, %v1267
      %v1274 = vpack.c.b16 %v1270, %v1268
      %v1275 = vpack.c.b16 %v1271, %v1271
      %v1276 = vpack.c.b16 %v1272, %v1272
      %v1278 = vshrl.u32 %v1273, 16
      %v1280 = vshll.u32 %v1273, 16
      %v1282 = vrot.slane %v1280, 1
      %v1283 = vor.u32 %v1278, %v1282
      %v1285 = vshll.u32 %v1275, 16
      %v1287 = vrot.slane %v1285, 1
      %v1288 = vsel %vm428, %v1283, %v1287
      %v1290 = vshrl.u32 %v1274, 16
      %v1292 = vshll.u32 %v1274, 16
      %v1294 = vrot.slane %v1292, 1
      %v1295 = vor.u32 %v1290, %v1294
      %v1297 = vshll.u32 %v1276, 16
      %v1299 = vrot.slane %v1297, 1
      %v1300 = vsel %vm428, %v1295, %v1299
      %v1335 = vunpack.c.l.b16 %v1232
      %v1336 = vunpack.c.h.b16 %v1232
      %v1337 = vunpack.c.l.b16 %v1233
      %v1338 = vunpack.c.h.b16 %v1233
      %v1339 = vunpack.c.l.b16 %v1234
      %v1340 = vunpack.c.h.b16 %v1234
      %v1341 = vunpack.c.l.b16 %v1235
      %v1342 = vunpack.c.h.b16 %v1235
      %v1343 = vunpack.c.l.b16 %v1236
      %v1344 = vunpack.c.h.b16 %v1236
      %v1345 = vunpack.c.l.b16 %v1237
      %v1346 = vunpack.c.h.b16 %v1237
      %v1347 = vunpack.c.l.b16 %v1238
      %v1348 = vunpack.c.h.b16 %v1238
      %v1349 = vunpack.c.l.b16 %v1239
      %v1350 = vunpack.c.h.b16 %v1239
      %v1351 = vunpack.c.l.b16 %v1240
      %v1352 = vunpack.c.h.b16 %v1240
      %v1353 = vunpack.c.l.b16 %v1241
      %v1354 = vunpack.c.h.b16 %v1241
      %v1355 = vunpack.c.l.b16 %v1242
      %v1356 = vunpack.c.h.b16 %v1242
      %v1357 = vunpack.c.l.b16 %v1243
      %v1358 = vunpack.c.h.b16 %v1243
      %v1359 = vunpack.c.l.b16 %v1244
      %v1360 = vunpack.c.h.b16 %v1244
      %v1361 = vunpack.c.l.b16 %v1245
      %v1362 = vunpack.c.h.b16 %v1245
      %v1363 = vunpack.c.l.b16 %v1246
      %v1364 = vunpack.c.h.b16 %v1246
      %v1365 = vunpack.c.l.b16 %v1247
      %v1366 = vunpack.c.h.b16 %v1247
      %v1367 = vunpack.c.l.b16 %v1248
      %v1368 = vunpack.c.h.b16 %v1248
      %v1369 = vunpack.c.l.b16 %v1249
      %v1370 = vunpack.c.h.b16 %v1249
      %v1371 = vunpack.c.l.b16 %v1250
      %v1372 = vunpack.c.h.b16 %v1250
      %v1373 = vunpack.c.l.b16 %v1251
      %v1374 = vunpack.c.h.b16 %v1251
      %v1375 = vunpack.c.l.b16 %v1252
      %v1376 = vunpack.c.h.b16 %v1252
      %v1377 = vunpack.c.l.b16 %v1253
      %v1378 = vunpack.c.h.b16 %v1253
      %v1379 = vunpack.c.l.b16 %v1254
      %v1380 = vunpack.c.h.b16 %v1254
      %v1381 = vunpack.c.l.b16 %v1255
      %v1382 = vunpack.c.h.b16 %v1255
      %v1383 = vunpack.c.l.b16 %v1256
      %v1384 = vunpack.c.h.b16 %v1256
      %v1385 = vunpack.c.l.b16 %v1257
      %v1386 = vunpack.c.h.b16 %v1257
      %v1387 = vunpack.c.l.b16 %v1258
      %v1388 = vunpack.c.h.b16 %v1258
      %v1389 = vunpack.c.l.b16 %v1259
      %v1390 = vunpack.c.h.b16 %v1259
      %v1391 = vunpack.c.l.b16 %v1260
      %v1392 = vunpack.c.h.b16 %v1260
      %v1393 = vunpack.c.l.b16 %v1261
      %v1394 = vunpack.c.h.b16 %v1261
      %v1395 = vunpack.c.l.b16 %v1262
      %v1396 = vunpack.c.h.b16 %v1262
      %v1397 = vunpack.c.l.b16 %v1263
      %v1398 = vunpack.c.h.b16 %v1263
      %v1399 = vpack.c.b16 %v1337, %v1335
      %v1400 = vpack.c.b16 %v1338, %v1336
      %v1401 = vpack.c.b16 %v1341, %v1339
      %v1402 = vpack.c.b16 %v1342, %v1340
      %v1403 = vpack.c.b16 %v1345, %v1343
      %v1404 = vpack.c.b16 %v1346, %v1344
      %v1405 = vpack.c.b16 %v1349, %v1347
      %v1406 = vpack.c.b16 %v1350, %v1348
      %v1407 = vpack.c.b16 %v1353, %v1351
      %v1408 = vpack.c.b16 %v1354, %v1352
      %v1409 = vpack.c.b16 %v1357, %v1355
      %v1410 = vpack.c.b16 %v1358, %v1356
      %v1411 = vpack.c.b16 %v1361, %v1359
      %v1412 = vpack.c.b16 %v1362, %v1360
      %v1413 = vpack.c.b16 %v1365, %v1363
      %v1414 = vpack.c.b16 %v1366, %v1364
      %v1415 = vpack.c.b16 %v1369, %v1367
      %v1416 = vpack.c.b16 %v1370, %v1368
      %v1417 = vpack.c.b16 %v1373, %v1371
      %v1418 = vpack.c.b16 %v1374, %v1372
      %v1419 = vpack.c.b16 %v1377, %v1375
      %v1420 = vpack.c.b16 %v1378, %v1376
      %v1421 = vpack.c.b16 %v1381, %v1379
      %v1422 = vpack.c.b16 %v1382, %v1380
      %v1423 = vpack.c.b16 %v1385, %v1383
      %v1424 = vpack.c.b16 %v1386, %v1384
      %v1425 = vpack.c.b16 %v1389, %v1387
      %v1426 = vpack.c.b16 %v1390, %v1388
      %v1427 = vpack.c.b16 %v1393, %v1391
      %v1428 = vpack.c.b16 %v1394, %v1392
      %v1429 = vpack.c.b16 %v1397, %v1395
      %v1430 = vpack.c.b16 %v1398, %v1396
      %1463 = vmatprep.subr.bf16.mxu0 %v1400
      %1464 = vmatpush1.bf16.msra.mxu0 %v1399
      %1465 = vmatprep.subr.bf16.mxu0 %v1402
      %1466 = vmatpush1.bf16.msra.mxu0 %v1401
      %1467 = vmatprep.subr.bf16.mxu0 %v1404
      %1468 = vmatpush1.bf16.msra.mxu0 %v1403
      %1469 = vmatprep.subr.bf16.mxu0 %v1406
      %1470 = vmatpush1.bf16.msra.mxu0 %v1405
      %1471 = vmatprep.subr.bf16.mxu0 %v1408
      %1472 = vmatpush1.bf16.msra.mxu0 %v1407
      %1473 = vmatprep.subr.bf16.mxu0 %v1410
      %1474 = vmatpush1.bf16.msra.mxu0 %v1409
      %1475 = vmatprep.subr.bf16.mxu0 %v1412
      %1476 = vmatpush1.bf16.msra.mxu0 %v1411
      %1477 = vmatprep.subr.bf16.mxu0 %v1414
      %1478 = vmatpush1.bf16.msra.mxu0 %v1413
      %1479 = vmatprep.subr.bf16.mxu0 %v1416
      %1480 = vmatpush1.bf16.msra.mxu0 %v1415
      %1481 = vmatprep.subr.bf16.mxu0 %v1418
      %1482 = vmatpush1.bf16.msra.mxu0 %v1417
      %1483 = vmatprep.subr.bf16.mxu0 %v1420
      %1484 = vmatpush1.bf16.msra.mxu0 %v1419
      %1485 = vmatprep.subr.bf16.mxu0 %v1422
      %1486 = vmatpush1.bf16.msra.mxu0 %v1421
      %1487 = vmatprep.subr.bf16.mxu0 %v1424
      %1488 = vmatpush1.bf16.msra.mxu0 %v1423
      %1489 = vmatprep.subr.bf16.mxu0 %v1426
      %1490 = vmatpush1.bf16.msra.mxu0 %v1425
      %1491 = vmatprep.subr.bf16.mxu0 %v1428
      %1492 = vmatpush1.bf16.msra.mxu0 %v1427
      %1493 = vmatprep.subr.bf16.mxu0 %v1430
      %1494 = vmatpush1.bf16.msra.mxu0 %v1429
      %1495 = vmatprep.mubr.bf16.mxu0 %v1300
      %1496 = vmatmul.mubr.bf16.gmra.mrb[0].mxu0 %v1288
      %v1497 = vpop.f32.mrb[0].mxu0
      %v1498 = vadd.f32 0.0, %v1497
      %v1499 = vpop.f32.mrb[0].mxu0
      %v1500 = vadd.f32 0.0, %v1499
      %v1501 = vpop.f32.mrb[0].mxu0
      %v1502 = vadd.f32 0.0, %v1501
      %v1503 = vpop.f32.mrb[0].mxu0
      %v1504 = vadd.f32 0.0, %v1503
      %1505 = vdwg.mxu0
      %v1540 = vunpack.c.l.b16 %v1198
      %v1541 = vunpack.c.h.b16 %v1198
      %v1542 = vunpack.c.l.b16 %v1199
      %v1543 = vunpack.c.h.b16 %v1199
      %v1544 = vunpack.c.l.b16 %v1200
      %v1545 = vunpack.c.h.b16 %v1200
      %v1546 = vunpack.c.l.b16 %v1201
      %v1547 = vunpack.c.h.b16 %v1201
      %v1548 = vunpack.c.l.b16 %v1202
      %v1549 = vunpack.c.h.b16 %v1202
      %v1550 = vunpack.c.l.b16 %v1203
      %v1551 = vunpack.c.h.b16 %v1203
      %v1552 = vunpack.c.l.b16 %v1204
      %v1553 = vunpack.c.h.b16 %v1204
      %v1554 = vunpack.c.l.b16 %v1205
      %v1555 = vunpack.c.h.b16 %v1205
      %v1556 = vunpack.c.l.b16 %v1206
      %v1557 = vunpack.c.h.b16 %v1206
      %v1558 = vunpack.c.l.b16 %v1207
      %v1559 = vunpack.c.h.b16 %v1207
      %v1560 = vunpack.c.l.b16 %v1208
      %v1561 = vunpack.c.h.b16 %v1208
      %v1562 = vunpack.c.l.b16 %v1209
      %v1563 = vunpack.c.h.b16 %v1209
      %v1564 = vunpack.c.l.b16 %v1210
      %v1565 = vunpack.c.h.b16 %v1210
      %v1566 = vunpack.c.l.b16 %v1211
      %v1567 = vunpack.c.h.b16 %v1211
      %v1568 = vunpack.c.l.b16 %v1212
      %v1569 = vunpack.c.h.b16 %v1212
      %v1570 = vunpack.c.l.b16 %v1213
      %v1571 = vunpack.c.h.b16 %v1213
      %v1572 = vunpack.c.l.b16 %v1214
      %v1573 = vunpack.c.h.b16 %v1214
      %v1574 = vunpack.c.l.b16 %v1215
      %v1575 = vunpack.c.h.b16 %v1215
      %v1576 = vunpack.c.l.b16 %v1216
      %v1577 = vunpack.c.h.b16 %v1216
      %v1578 = vunpack.c.l.b16 %v1217
      %v1579 = vunpack.c.h.b16 %v1217
      %v1580 = vunpack.c.l.b16 %v1218
      %v1581 = vunpack.c.h.b16 %v1218
      %v1582 = vunpack.c.l.b16 %v1219
      %v1583 = vunpack.c.h.b16 %v1219
      %v1584 = vunpack.c.l.b16 %v1220
      %v1585 = vunpack.c.h.b16 %v1220
      %v1586 = vunpack.c.l.b16 %v1221
      %v1587 = vunpack.c.h.b16 %v1221
      %v1588 = vunpack.c.l.b16 %v1222
      %v1589 = vunpack.c.h.b16 %v1222
      %v1590 = vunpack.c.l.b16 %v1223
      %v1591 = vunpack.c.h.b16 %v1223
      %v1592 = vunpack.c.l.b16 %v1224
      %v1593 = vunpack.c.h.b16 %v1224
      %v1594 = vunpack.c.l.b16 %v1225
      %v1595 = vunpack.c.h.b16 %v1225
      %v1596 = vunpack.c.l.b16 %v1226
      %v1597 = vunpack.c.h.b16 %v1226
      %v1598 = vunpack.c.l.b16 %v1227
      %v1599 = vunpack.c.h.b16 %v1227
      %v1600 = vunpack.c.l.b16 %v1228
      %v1601 = vunpack.c.h.b16 %v1228
      %v1602 = vunpack.c.l.b16 %v1229
      %v1603 = vunpack.c.h.b16 %v1229
      %v1604 = vpack.c.b16 %v1542, %v1540
      %v1605 = vpack.c.b16 %v1543, %v1541
      %v1606 = vpack.c.b16 %v1546, %v1544
      %v1607 = vpack.c.b16 %v1547, %v1545
      %v1608 = vpack.c.b16 %v1550, %v1548
      %v1609 = vpack.c.b16 %v1551, %v1549
      %v1610 = vpack.c.b16 %v1554, %v1552
      %v1611 = vpack.c.b16 %v1555, %v1553
      %v1612 = vpack.c.b16 %v1558, %v1556
      %v1613 = vpack.c.b16 %v1559, %v1557
      %v1614 = vpack.c.b16 %v1562, %v1560
      %v1615 = vpack.c.b16 %v1563, %v1561
      %v1616 = vpack.c.b16 %v1566, %v1564
      %v1617 = vpack.c.b16 %v1567, %v1565
      %v1618 = vpack.c.b16 %v1570, %v1568
      %v1619 = vpack.c.b16 %v1571, %v1569
      %v1620 = vpack.c.b16 %v1574, %v1572
      %v1621 = vpack.c.b16 %v1575, %v1573
      %v1622 = vpack.c.b16 %v1578, %v1576
      %v1623 = vpack.c.b16 %v1579, %v1577
      %v1624 = vpack.c.b16 %v1582, %v1580
      %v1625 = vpack.c.b16 %v1583, %v1581
      %v1626 = vpack.c.b16 %v1586, %v1584
      %v1627 = vpack.c.b16 %v1587, %v1585
      %v1628 = vpack.c.b16 %v1590, %v1588
      %v1629 = vpack.c.b16 %v1591, %v1589
      %v1630 = vpack.c.b16 %v1594, %v1592
      %v1631 = vpack.c.b16 %v1595, %v1593
      %v1632 = vpack.c.b16 %v1598, %v1596
      %v1633 = vpack.c.b16 %v1599, %v1597
      %v1634 = vpack.c.b16 %v1602, %v1600
      %v1635 = vpack.c.b16 %v1603, %v1601
      %1668 = vmatprep.subr.bf16.mxu0 %v1605
      %1669 = vmatpush1.bf16.msra.mxu0 %v1604
      %1670 = vmatprep.subr.bf16.mxu0 %v1607
      %1671 = vmatpush1.bf16.msra.mxu0 %v1606
      %1672 = vmatprep.subr.bf16.mxu0 %v1609
      %1673 = vmatpush1.bf16.msra.mxu0 %v1608
      %1674 = vmatprep.subr.bf16.mxu0 %v1611
      %1675 = vmatpush1.bf16.msra.mxu0 %v1610
      %1676 = vmatprep.subr.bf16.mxu0 %v1613
      %1677 = vmatpush1.bf16.msra.mxu0 %v1612
      %1678 = vmatprep.subr.bf16.mxu0 %v1615
      %1679 = vmatpush1.bf16.msra.mxu0 %v1614
      %1680 = vmatprep.subr.bf16.mxu0 %v1617
      %1681 = vmatpush1.bf16.msra.mxu0 %v1616
      %1682 = vmatprep.subr.bf16.mxu0 %v1619
      %1683 = vmatpush1.bf16.msra.mxu0 %v1618
      %1684 = vmatprep.subr.bf16.mxu0 %v1621
      %1685 = vmatpush1.bf16.msra.mxu0 %v1620
      %1686 = vmatprep.subr.bf16.mxu0 %v1623
      %1687 = vmatpush1.bf16.msra.mxu0 %v1622
      %1688 = vmatprep.subr.bf16.mxu0 %v1625
      %1689 = vmatpush1.bf16.msra.mxu0 %v1624
      %1690 = vmatprep.subr.bf16.mxu0 %v1627
      %1691 = vmatpush1.bf16.msra.mxu0 %v1626
      %1692 = vmatprep.subr.bf16.mxu0 %v1629
      %1693 = vmatpush1.bf16.msra.mxu0 %v1628
      %1694 = vmatprep.subr.bf16.mxu0 %v1631
      %1695 = vmatpush1.bf16.msra.mxu0 %v1630
      %1696 = vmatprep.subr.bf16.mxu0 %v1633
      %1697 = vmatpush1.bf16.msra.mxu0 %v1632
      %1698 = vmatprep.subr.bf16.mxu0 %v1635
      %1699 = vmatpush1.bf16.msra.mxu0 %v1634
      %1700 = vmatprep.mubr.bf16.mxu0 %v1274
      %1701 = vmatmul.mubr.bf16.gmra.mrb[0].mxu0 %v1273
      %v1702 = vpop.f32.mrb[0].mxu0
      %v1703 = vadd.f32 %v1498, %v1702
      %v1704 = vpop.f32.mrb[0].mxu0
      %v1705 = vadd.f32 %v1500, %v1704
      %v1706 = vpop.f32.mrb[0].mxu0
      %v1707 = vadd.f32 %v1502, %v1706
      %v1708 = vpop.f32.mrb[0].mxu0
      %v1709 = vadd.f32 %v1504, %v1708
      %1710 = vdwg.mxu0
      %v1711 = vld [vmem:[#allocation3] sm:$0xee]
      %s1712 = scalar_lea.vmem %s4, 512
      %v1713 = vld [vmem:[%s1712] sm:$0xff]
      %v1714 = vld [vmem:[%s1712 + $0x8] sm:$0xff]
      %v1715 = vld [vmem:[%s1712 + $0x10] sm:$0xff]
      %v1716 = vld [vmem:[%s1712 + $0x18] sm:$0xff]
      %v1717 = vld [vmem:[%s1712 + $0x20] sm:$0xff]
      %v1718 = vld [vmem:[%s1712 + $0x28] sm:$0xff]
      %v1719 = vld [vmem:[%s1712 + $0x30] sm:$0xff]
      %v1720 = vld [vmem:[%s1712 + $0x38] sm:$0xff]
      %v1721 = vld [vmem:[%s1712 + $0x40] sm:$0xff]
      %v1722 = vld [vmem:[%s1712 + $0x48] sm:$0xff]
      %v1723 = vld [vmem:[%s1712 + $0x50] sm:$0xff]
      %v1724 = vld [vmem:[%s1712 + $0x58] sm:$0xff]
      %v1725 = vld [vmem:[%s1712 + $0x60] sm:$0xff]
      %v1726 = vld [vmem:[%s1712 + $0x68] sm:$0xff]
      %v1727 = vld [vmem:[%s1712 + $0x70] sm:$0xff]
      %v1728 = vld [vmem:[%s1712 + $0x78] sm:$0xff]
      %v1729 = vld [vmem:[%s1712 + $0x80] sm:$0xff]
      %v1730 = vld [vmem:[%s1712 + $0x88] sm:$0xff]
      %v1731 = vld [vmem:[%s1712 + $0x90] sm:$0xff]
      %v1732 = vld [vmem:[%s1712 + $0x98] sm:$0xff]
      %v1733 = vld [vmem:[%s1712 + $0xa0] sm:$0xff]
      %v1734 = vld [vmem:[%s1712 + $0xa8] sm:$0xff]
      %v1735 = vld [vmem:[%s1712 + $0xb0] sm:$0xff]
      %v1736 = vld [vmem:[%s1712 + $0xb8] sm:$0xff]
      %v1737 = vld [vmem:[%s1712 + $0xc0] sm:$0xff]
      %v1738 = vld [vmem:[%s1712 + $0xc8] sm:$0xff]
      %v1739 = vld [vmem:[%s1712 + $0xd0] sm:$0xff]
      %v1740 = vld [vmem:[%s1712 + $0xd8] sm:$0xff]
      %v1741 = vld [vmem:[%s1712 + $0xe0] sm:$0xff]
      %v1742 = vld [vmem:[%s1712 + $0xe8] sm:$0xff]
      %v1743 = vld [vmem:[%s1712 + $0xf0] sm:$0xff]
      %v1744 = vld [vmem:[%s1712 + $0xf8] sm:$0xff]
      %v1746 = vunpack.c.l.b16 %v1711
      %v1747 = vunpack.c.h.b16 %v1711
      %v1748 = vpack.c.b16 %v1269, %v1746
      %v1749 = vpack.c.b16 %v1270, %v1747
      %v1750 = vrot.slane %v1748, 1
      %v1751 = vrot.slane %v1275, 1
      %v1752 = vsel %vm901, %v1750, %v1751
      %v1753 = vrot.slane %v1749, 1
      %v1754 = vrot.slane %v1276, 1
      %v1755 = vsel %vm901, %v1753, %v1754
      %v1790 = vunpack.c.l.b16 %v1713
      %v1791 = vunpack.c.h.b16 %v1713
      %v1792 = vunpack.c.l.b16 %v1714
      %v1793 = vunpack.c.h.b16 %v1714
      %v1794 = vunpack.c.l.b16 %v1715
      %v1795 = vunpack.c.h.b16 %v1715
      %v1796 = vunpack.c.l.b16 %v1716
      %v1797 = vunpack.c.h.b16 %v1716
      %v1798 = vunpack.c.l.b16 %v1717
      %v1799 = vunpack.c.h.b16 %v1717
      %v1800 = vunpack.c.l.b16 %v1718
      %v1801 = vunpack.c.h.b16 %v1718
      %v1802 = vunpack.c.l.b16 %v1719
      %v1803 = vunpack.c.h.b16 %v1719
      %v1804 = vunpack.c.l.b16 %v1720
      %v1805 = vunpack.c.h.b16 %v1720
      %v1806 = vunpack.c.l.b16 %v1721
      %v1807 = vunpack.c.h.b16 %v1721
      %v1808 = vunpack.c.l.b16 %v1722
      %v1809 = vunpack.c.h.b16 %v1722
      %v1810 = vunpack.c.l.b16 %v1723
      %v1811 = vunpack.c.h.b16 %v1723
      %v1812 = vunpack.c.l.b16 %v1724
      %v1813 = vunpack.c.h.b16 %v1724
      %v1814 = vunpack.c.l.b16 %v1725
      %v1815 = vunpack.c.h.b16 %v1725
      %v1816 = vunpack.c.l.b16 %v1726
      %v1817 = vunpack.c.h.b16 %v1726
      %v1818 = vunpack.c.l.b16 %v1727
      %v1819 = vunpack.c.h.b16 %v1727
      %v1820 = vunpack.c.l.b16 %v1728
      %v1821 = vunpack.c.h.b16 %v1728
      %v1822 = vunpack.c.l.b16 %v1729
      %v1823 = vunpack.c.h.b16 %v1729
      %v1824 = vunpack.c.l.b16 %v1730
      %v1825 = vunpack.c.h.b16 %v1730
      %v1826 = vunpack.c.l.b16 %v1731
      %v1827 = vunpack.c.h.b16 %v1731
      %v1828 = vunpack.c.l.b16 %v1732
      %v1829 = vunpack.c.h.b16 %v1732
      %v1830 = vunpack.c.l.b16 %v1733
      %v1831 = vunpack.c.h.b16 %v1733
      %v1832 = vunpack.c.l.b16 %v1734
      %v1833 = vunpack.c.h.b16 %v1734
      %v1834 = vunpack.c.l.b16 %v1735
      %v1835 = vunpack.c.h.b16 %v1735
      %v1836 = vunpack.c.l.b16 %v1736
      %v1837 = vunpack.c.h.b16 %v1736
      %v1838 = vunpack.c.l.b16 %v1737
      %v1839 = vunpack.c.h.b16 %v1737
      %v1840 = vunpack.c.l.b16 %v1738
      %v1841 = vunpack.c.h.b16 %v1738
      %v1842 = vunpack.c.l.b16 %v1739
      %v1843 = vunpack.c.h.b16 %v1739
      %v1844 = vunpack.c.l.b16 %v1740
      %v1845 = vunpack.c.h.b16 %v1740
      %v1846 = vunpack.c.l.b16 %v1741
      %v1847 = vunpack.c.h.b16 %v1741
      %v1848 = vunpack.c.l.b16 %v1742
      %v1849 = vunpack.c.h.b16 %v1742
      %v1850 = vunpack.c.l.b16 %v1743
      %v1851 = vunpack.c.h.b16 %v1743
      %v1852 = vunpack.c.l.b16 %v1744
      %v1853 = vunpack.c.h.b16 %v1744
      %v1854 = vpack.c.b16 %v1792, %v1790
      %v1855 = vpack.c.b16 %v1793, %v1791
      %v1856 = vpack.c.b16 %v1796, %v1794
      %v1857 = vpack.c.b16 %v1797, %v1795
      %v1858 = vpack.c.b16 %v1800, %v1798
      %v1859 = vpack.c.b16 %v1801, %v1799
      %v1860 = vpack.c.b16 %v1804, %v1802
      %v1861 = vpack.c.b16 %v1805, %v1803
      %v1862 = vpack.c.b16 %v1808, %v1806
      %v1863 = vpack.c.b16 %v1809, %v1807
      %v1864 = vpack.c.b16 %v1812, %v1810
      %v1865 = vpack.c.b16 %v1813, %v1811
      %v1866 = vpack.c.b16 %v1816, %v1814
      %v1867 = vpack.c.b16 %v1817, %v1815
      %v1868 = vpack.c.b16 %v1820, %v1818
      %v1869 = vpack.c.b16 %v1821, %v1819
      %v1870 = vpack.c.b16 %v1824, %v1822
      %v1871 = vpack.c.b16 %v1825, %v1823
      %v1872 = vpack.c.b16 %v1828, %v1826
      %v1873 = vpack.c.b16 %v1829, %v1827
      %v1874 = vpack.c.b16 %v1832, %v1830
      %v1875 = vpack.c.b16 %v1833, %v1831
      %v1876 = vpack.c.b16 %v1836, %v1834
      %v1877 = vpack.c.b16 %v1837, %v1835
      %v1878 = vpack.c.b16 %v1840, %v1838
      %v1879 = vpack.c.b16 %v1841, %v1839
      %v1880 = vpack.c.b16 %v1844, %v1842
      %v1881 = vpack.c.b16 %v1845, %v1843
      %v1882 = vpack.c.b16 %v1848, %v1846
      %v1883 = vpack.c.b16 %v1849, %v1847
      %v1884 = vpack.c.b16 %v1852, %v1850
      %v1885 = vpack.c.b16 %v1853, %v1851
      %1918 = vmatprep.subr.bf16.mxu0 %v1855
      %1919 = vmatpush1.bf16.msra.mxu0 %v1854
      %1920 = vmatprep.subr.bf16.mxu0 %v1857
      %1921 = vmatpush1.bf16.msra.mxu0 %v1856
      %1922 = vmatprep.subr.bf16.mxu0 %v1859
      %1923 = vmatpush1.bf16.msra.mxu0 %v1858
      %1924 = vmatprep.subr.bf16.mxu0 %v1861
      %1925 = vmatpush1.bf16.msra.mxu0 %v1860
      %1926 = vmatprep.subr.bf16.mxu0 %v1863
      %1927 = vmatpush1.bf16.msra.mxu0 %v1862
      %1928 = vmatprep.subr.bf16.mxu0 %v1865
      %1929 = vmatpush1.bf16.msra.mxu0 %v1864
      %1930 = vmatprep.subr.bf16.mxu0 %v1867
      %1931 = vmatpush1.bf16.msra.mxu0 %v1866
      %1932 = vmatprep.subr.bf16.mxu0 %v1869
      %1933 = vmatpush1.bf16.msra.mxu0 %v1868
      %1934 = vmatprep.subr.bf16.mxu0 %v1871
      %1935 = vmatpush1.bf16.msra.mxu0 %v1870
      %1936 = vmatprep.subr.bf16.mxu0 %v1873
      %1937 = vmatpush1.bf16.msra.mxu0 %v1872
      %1938 = vmatprep.subr.bf16.mxu0 %v1875
      %1939 = vmatpush1.bf16.msra.mxu0 %v1874
      %1940 = vmatprep.subr.bf16.mxu0 %v1877
      %1941 = vmatpush1.bf16.msra.mxu0 %v1876
      %1942 = vmatprep.subr.bf16.mxu0 %v1879
      %1943 = vmatpush1.bf16.msra.mxu0 %v1878
      %1944 = vmatprep.subr.bf16.mxu0 %v1881
      %1945 = vmatpush1.bf16.msra.mxu0 %v1880
      %1946 = vmatprep.subr.bf16.mxu0 %v1883
      %1947 = vmatpush1.bf16.msra.mxu0 %v1882
      %1948 = vmatprep.subr.bf16.mxu0 %v1885
      %1949 = vmatpush1.bf16.msra.mxu0 %v1884
      %1950 = vmatprep.mubr.bf16.mxu0 %v1755
      %1951 = vmatmul.mubr.bf16.gmra.mrb[0].mxu0 %v1752
      %v1952 = vpop.f32.mrb[0].mxu0
      %v1953 = vadd.f32 0.0, %v1952
      %v1954 = vpop.f32.mrb[0].mxu0
      %v1955 = vadd.f32 0.0, %v1954
      %v1956 = vpop.f32.mrb[0].mxu0
      %v1957 = vadd.f32 0.0, %v1956
      %v1958 = vpop.f32.mrb[0].mxu0
      %v1959 = vadd.f32 0.0, %v1958
      %1960 = vdwg.mxu0
      %v1961 = vadd.f32 %v1703, %v1953
      %v1962 = vadd.f32 %v1705, %v1955
      %v1963 = vadd.f32 %v1707, %v1957
      %v1964 = vadd.f32 %v1709, %v1959
      %v1965 = vld [vmem:[%s5] sm:$0x3]
      %v1967 = vlaneseq
      %v1968 = vshrl.u32 %v1967, 7
      %v1969 = vsub.s32 0, %v1968
      %v1970 = vrot.slane %v1965, %v1969
      %v1971 = vlaneseq
      %v1972 = vshrl.u32 %v1971, 7
      %v1973 = vsub.s32 1, %v1972
      %v1974 = vrot.slane %v1965, %v1973
      %v1977 = vmul.f32 %v1961, %v1970
      %v1978 = vmul.f32 %v1962, %v1974
      %v1979 = vmul.f32 %v1963, %v1970
      %v1980 = vmul.f32 %v1964, %v1974
      %v1981 = vld [vmem:[%s6] sm:$0x3]
      %v1983 = vlaneseq
      %v1984 = vshrl.u32 %v1983, 7
      %v1985 = vsub.s32 0, %v1984
      %v1986 = vrot.slane %v1981, %v1985
      %v1987 = vlaneseq
      %v1988 = vshrl.u32 %v1987, 7
      %v1989 = vsub.s32 1, %v1988
      %v1990 = vrot.slane %v1981, %v1989
      %v1993 = vadd.f32 %v1977, %v1986
      %v1994 = vadd.f32 %v1978, %v1990
      %v1995 = vadd.f32 %v1979, %v1986
      %v1996 = vadd.f32 %v1980, %v1990
      %v1997 = vld [vmem:[%s273] sm:$0xff]
      %v1998 = vld [vmem:[%s273 + $0x8] sm:$0xff]
      %v1999 = vld [vmem:[%s273 + $0x10] sm:$0xff]
      %v2000 = vld [vmem:[%s273 + $0x18] sm:$0xff]
      %v2001 = vadd.f32 %v1993, %v1997
      %v2002 = vadd.f32 %v1994, %v1998
      %v2003 = vadd.f32 %v1995, %v1999
      %v2004 = vadd.f32 %v1996, %v2000
      %v2005 = vmax.f32 %v2001, 0.0
      %v2006 = vmax.f32 %v2002, 0.0
      %v2007 = vmax.f32 %v2003, 0.0
      %v2008 = vmax.f32 %v2004, 0.0
      %2009 = vst [vmem:[%s278] sm:$0xff] %v2005
      %2010 = vst [vmem:[%s278 + $0x8] sm:$0xff] %v2006
      %2011 = vst [vmem:[%s278 + $0x10] sm:$0xff] %v2007
      %2012 = vst [vmem:[%s278 + $0x18] sm:$0xff] %v2008
      %p2013 = scmp.lt.s32.totalorder %s18, 1
      %s2014 = scalar_select %p2013, %s18, 1
      %s2015 = smul.addr %s2014, 4
      %s2016 = smul.addr %s2015, 8
      %s2017 = scalar_lea.vmem %s7, %s2016
      // Predicated region
      $region49: #{fwd.2} parent=47 // pred_check
        %p2018 = pneg %p188
      $region50: #{fwd.2} parent=47 // pred_check_branch
        %2020 = sbr.rel (%p2018) target = $region52
      $region51: #{fwd.2} parent=47 // pred_region
        _
      $region52: #{fwd.2} parent=47 // pred_fallthru
        _
    $region48: #{fwd.2} parent=5 // pred_fallthru
      _
    %p2021 = scmp.le.s32.totalorder 2, %s13
    // Predicated region
    $region53: #{fwd.2} parent=5 // pred_check
      %p2022 = pneg %p2021
    $region54: #{fwd.2} parent=5 // pred_check_branch
      %2024 = sbr.rel (%p2022) target = $region56
    $region55: #{fwd.2} parent=5 // pred_region
      %s2025 = ssub.s32 %s13, 2
      // Predicated region
      $region57: #{fwd.2} parent=55 // pred_check
        %p2026 = pneg %p194
      $region58: #{fwd.2} parent=55 // pred_check_branch
        %2028 = sbr.rel (%p2026) target = $region60
      $region59: #{fwd.2} parent=55 // pred_region
        %p2029 = scmp.lt.s32.totalorder %s19, 1
        %s2030 = scalar_select %p2029, %s19, 1
        %s2031 = smul.addr %s2030, 4
        %s2032 = smul.addr %s2031, 8
        %s2033 = scalar_lea.vmem %s7, %s2032
      $region60: #{fwd.2} parent=55 // pred_fallthru
        _
    $region56: #{fwd.2} parent=5 // pred_fallthru
      _
  $region6: #{fwd.2} parent=0 // loop_footer
    %s17 = sadd.s32 1, %s13
  $region7: #{fwd.2} parent=0 // loop_footer_branch
    %12 = sbr.rel target = $region3
  $region8: #{fwd.2} parent=0 // loop_exit
    _

// kernel: fwd.3
$region0: #{fwd.3}
  #allocation0 [shape = 'u32[]', space=smem, size = 0x4, offset = 0x4, fixed_abs, tag = 'smem constant byte address 0x4 - core index']
  #allocation1 [shape = 'u32[144,128]{1,0:T(1,128)}', space=vmem, size = 0x12000, scoped, tag = 'internal scratch']
  #allocation2 [shape = 'bf16[8,256]{1,0:T(8,128)(2,1)}', space=vmem, size = 0x1000, scoped, tag = 'scratch operand']
  #allocation3 [shape = 'bf16[9,256]{1,0:T(8,128)(2,1)}', space=vmem, size = 0x2000, scoped, tag = 'scratch operand']
  #allocation4 [shape = 'bf16[10,256]{1,0:T(8,128)(2,1)}', space=vmem, size = 0x2000, scoped, tag = 'scratch operand']
  %s0 = inlined_call_operand.vmem [shape: f32[2,8,256], index: 0, kind: input, shape index: {}]
  %s1 = inlined_call_operand.vmem [shape: f32[2,8,256], index: 1, kind: input, shape index: {}]
  %s2 = inlined_call_operand.vmem [shape: bf16[3,256,256], index: 2, kind: input, shape index: {}]
  %s3 = inlined_call_operand.vmem [shape: f32[1,256], index: 3, kind: input, shape index: {}]
  %s4 = inlined_call_operand.vmem [shape: f32[1,256], index: 4, kind: input, shape index: {}]
  %s5 = inlined_call_operand.vmem [shape: bf16[3,256,256], index: 5, kind: input, shape index: {}]
  %s6 = inlined_call_operand.vmem [shape: f32[1,256], index: 6, kind: input, shape index: {}]
  %s7 = inlined_call_operand.vmem [shape: f32[1,256], index: 7, kind: input, shape index: {}]
  %s8 = inlined_call_operand.vmem [shape: bf16[256,256], index: 8, kind: input, shape index: {}]
  %s9 = inlined_call_operand.vmem [shape: f32[1,256], index: 9, kind: input, shape index: {}]
  %s10 = inlined_call_operand.vmem [shape: f32[1,256], index: 10, kind: input, shape index: {}]
  %s11 = inlined_call_operand.vmem [shape: f32[2,8,256], index: 11, kind: output, shape index: {}]
  %s12 = sld [smem:[#allocation0]]
  $region77: #{fwd.3} parent=0
    _
  %s14 = ssub.s32 1, %s12
  %s15 = scalar_select 0, %s14, %s12
  loop: start=0, step=1, limit=4
  $region2: #{fwd.3} parent=0 // loop_pre_header
    _
  $region3: #{fwd.3} parent=0 // loop_header
    %s17 = sphi 0, %s21
    %p18 = scmp.ge.s32.totalorder %s17, 4
    %s27 = sphi 0, %s29
    %s30 = sphi 0, %s27
    %s31 = sphi 0, %s30
    %s47 = sphi 0, %s31
    %s53 = sphi 0, %s55
    %s56 = sphi 0, %s53
    %s57 = sphi 0, %s56
    %s73 = sphi 0, %s57
    %s77 = sphi 0, %s77
    %s79 = sphi 0, %s77
    %s80 = sphi 0, %s79
    %s94 = sphi 0, %s80
    %s98 = sphi 0, %s98
    %s100 = sphi 0, %s98
    %s101 = sphi 0, %s100
    %s115 = sphi 0, %s101
    %s119 = sphi 0, %s119
    %s121 = sphi 0, %s119
    %s122 = sphi 0, %s121
    %s136 = sphi 0, %s122
    %s140 = sphi 0, %s140
    %s142 = sphi 0, %s140
    %s143 = sphi 0, %s142
    %s157 = sphi 0, %s143
    %s161 = sphi 0, %s161
    %s163 = sphi 0, %s161
    %s164 = sphi 0, %s163
    %s178 = sphi 0, %s164
    %s182 = sphi 0, %s182
    %s184 = sphi 0, %s182
    %s185 = sphi 0, %s184
    %s199 = sphi 0, %s185
    %s203 = sphi 0, %s203
    %s205 = sphi 0, %s203
    %s206 = sphi 0, %s205
    %s220 = sphi 0, %s206
    %s224 = sphi 0, %s224
    %s226 = sphi 0, %s224
    %s227 = sphi 0, %s226
    %s241 = sphi 0, %s227
    %s245 = sphi 0, %s245
    %s247 = sphi 0, %s245
    %s248 = sphi 0, %s247
    %s262 = sphi 0, %s248
    %s268 = sphi 0, %s270
    %s271 = sphi 0, %s268
    %s272 = sphi 0, %s271
    %s288 = sphi 0, %s272
  $region4: #{fwd.3} parent=0 // loop_header_branch
    %20 = sbr.rel (%p18) target = $region8
  $region5: #{fwd.3} parent=0 // loop_body
    %s22 = ssub.s32 %s17, 1
    %s23 = ssub.s32 %s17, 2
    %s24 = sadd.s32 %s17, 1
    %s25 = ssub.s32 %s17, %s24
    %p26 = scmp.eq.s32.totalorder %s25, 0
    %s28 = sadd.s32 %s27, 1
    %s29 = scalar_select %p26, %s27, %s28
    %p32 = pneg %p26
    %p33 = scmp.eq.s32.totalorder %s17, 1
    %p34 = por %p32, %p33
    %p35 = scmp.ne.s32.totalorder %s27, %s30
    %p36 = scmp.eq.s32.totalorder %s17, 0
    %p37 = por %p35, %p36
    %p38 = scmp.ne.s32.totalorder %s27, %s30
    %p39 = scmp.eq.s32.totalorder %s22, 1
    %p40 = por %p38, %p39
    %p41 = scmp.ne.s32.totalorder %s30, %s31
    %p42 = scmp.eq.s32.totalorder %s22, 0
    %p43 = por %p41, %p42
    %p44 = scmp.ne.s32.totalorder %s30, %s31
    %p45 = scmp.eq.s32.totalorder %s23, 1
    %p46 = por %p44, %p45
    %p48 = scmp.ne.s32.totalorder %s31, %s47
    %p49 = scmp.eq.s32.totalorder %s23, 0
    %p50 = por %p48, %p49
    %s51 = ssub.s32 %s17, %s24
    %p52 = scmp.eq.s32.totalorder %s51, 0
    %s54 = sadd.s32 %s53, 1
    %s55 = scalar_select %p52, %s53, %s54
    %p58 = pneg %p52
    %p59 = scmp.eq.s32.totalorder %s17, 1
    %p60 = por %p58, %p59
    %p61 = scmp.ne.s32.totalorder %s53, %s56
    %p62 = scmp.eq.s32.totalorder %s17, 0
    %p63 = por %p61, %p62
    %p64 = scmp.ne.s32.totalorder %s53, %s56
    %p65 = scmp.eq.s32.totalorder %s22, 1
    %p66 = por %p64, %p65
    %p67 = scmp.ne.s32.totalorder %s56, %s57
    %p68 = scmp.eq.s32.totalorder %s22, 0
    %p69 = por %p67, %p68
    %p70 = scmp.ne.s32.totalorder %s56, %s57
    %p71 = scmp.eq.s32.totalorder %s23, 1
    %p72 = por %p70, %p71
    %p74 = scmp.ne.s32.totalorder %s57, %s73
    %p75 = scmp.eq.s32.totalorder %s23, 0
    %p76 = por %p74, %p75
    %s78 = sadd.s32 %s77, 1
    %p81 = scmp.eq.s32.totalorder %s17, 1
    %p82 = scmp.ne.s32.totalorder %s77, %s79
    %p83 = scmp.eq.s32.totalorder %s17, 0
    %p84 = por %p82, %p83
    %p85 = scmp.ne.s32.totalorder %s77, %s79
    %p86 = scmp.eq.s32.totalorder %s22, 1
    %p87 = por %p85, %p86
    %p88 = scmp.ne.s32.totalorder %s79, %s80
    %p89 = scmp.eq.s32.totalorder %s22, 0
    %p90 = por %p88, %p89
    %p91 = scmp.ne.s32.totalorder %s79, %s80
    %p92 = scmp.eq.s32.totalorder %s23, 1
    %p93 = por %p91, %p92
    %p95 = scmp.ne.s32.totalorder %s80, %s94
    %p96 = scmp.eq.s32.totalorder %s23, 0
    %p97 = por %p95, %p96
    %s99 = sadd.s32 %s98, 1
    %p102 = scmp.eq.s32.totalorder %s17, 1
    %p103 = scmp.ne.s32.totalorder %s98, %s100
    %p104 = scmp.eq.s32.totalorder %s17, 0
    %p105 = por %p103, %p104
    %p106 = scmp.ne.s32.totalorder %s98, %s100
    %p107 = scmp.eq.s32.totalorder %s22, 1
    %p108 = por %p106, %p107
    %p109 = scmp.ne.s32.totalorder %s100, %s101
    %p110 = scmp.eq.s32.totalorder %s22, 0
    %p111 = por %p109, %p110
    %p112 = scmp.ne.s32.totalorder %s100, %s101
    %p113 = scmp.eq.s32.totalorder %s23, 1
    %p114 = por %p112, %p113
    %p116 = scmp.ne.s32.totalorder %s101, %s115
    %p117 = scmp.eq.s32.totalorder %s23, 0
    %p118 = por %p116, %p117
    %s120 = sadd.s32 %s119, 1
    %p123 = scmp.eq.s32.totalorder %s17, 1
    %p124 = scmp.ne.s32.totalorder %s119, %s121
    %p125 = scmp.eq.s32.totalorder %s17, 0
    %p126 = por %p124, %p125
    %p127 = scmp.ne.s32.totalorder %s119, %s121
    %p128 = scmp.eq.s32.totalorder %s22, 1
    %p129 = por %p127, %p128
    %p130 = scmp.ne.s32.totalorder %s121, %s122
    %p131 = scmp.eq.s32.totalorder %s22, 0
    %p132 = por %p130, %p131
    %p133 = scmp.ne.s32.totalorder %s121, %s122
    %p134 = scmp.eq.s32.totalorder %s23, 1
    %p135 = por %p133, %p134
    %p137 = scmp.ne.s32.totalorder %s122, %s136
    %p138 = scmp.eq.s32.totalorder %s23, 0
    %p139 = por %p137, %p138
    %s141 = sadd.s32 %s140, 1
    %p144 = scmp.eq.s32.totalorder %s17, 1
    %p145 = scmp.ne.s32.totalorder %s140, %s142
    %p146 = scmp.eq.s32.totalorder %s17, 0
    %p147 = por %p145, %p146
    %p148 = scmp.ne.s32.totalorder %s140, %s142
    %p149 = scmp.eq.s32.totalorder %s22, 1
    %p150 = por %p148, %p149
    %p151 = scmp.ne.s32.totalorder %s142, %s143
    %p152 = scmp.eq.s32.totalorder %s22, 0
    %p153 = por %p151, %p152
    %p154 = scmp.ne.s32.totalorder %s142, %s143
    %p155 = scmp.eq.s32.totalorder %s23, 1
    %p156 = por %p154, %p155
    %p158 = scmp.ne.s32.totalorder %s143, %s157
    %p159 = scmp.eq.s32.totalorder %s23, 0
    %p160 = por %p158, %p159
    %s162 = sadd.s32 %s161, 1
    %p165 = scmp.eq.s32.totalorder %s17, 1
    %p166 = scmp.ne.s32.totalorder %s161, %s163
    %p167 = scmp.eq.s32.totalorder %s17, 0
    %p168 = por %p166, %p167
    %p169 = scmp.ne.s32.totalorder %s161, %s163
    %p170 = scmp.eq.s32.totalorder %s22, 1
    %p171 = por %p169, %p170
    %p172 = scmp.ne.s32.totalorder %s163, %s164
    %p173 = scmp.eq.s32.totalorder %s22, 0
    %p174 = por %p172, %p173
    %p175 = scmp.ne.s32.totalorder %s163, %s164
    %p176 = scmp.eq.s32.totalorder %s23, 1
    %p177 = por %p175, %p176
    %p179 = scmp.ne.s32.totalorder %s164, %s178
    %p180 = scmp.eq.s32.totalorder %s23, 0
    %p181 = por %p179, %p180
    %s183 = sadd.s32 %s182, 1
    %p186 = scmp.eq.s32.totalorder %s17, 1
    %p187 = scmp.ne.s32.totalorder %s182, %s184
    %p188 = scmp.eq.s32.totalorder %s17, 0
    %p189 = por %p187, %p188
    %p190 = scmp.ne.s32.totalorder %s182, %s184
    %p191 = scmp.eq.s32.totalorder %s22, 1
    %p192 = por %p190, %p191
    %p193 = scmp.ne.s32.totalorder %s184, %s185
    %p194 = scmp.eq.s32.totalorder %s22, 0
    %p195 = por %p193, %p194
    %p196 = scmp.ne.s32.totalorder %s184, %s185
    %p197 = scmp.eq.s32.totalorder %s23, 1
    %p198 = por %p196, %p197
    %p200 = scmp.ne.s32.totalorder %s185, %s199
    %p201 = scmp.eq.s32.totalorder %s23, 0
    %p202 = por %p200, %p201
    %s204 = sadd.s32 %s203, 1
    %p207 = scmp.eq.s32.totalorder %s17, 1
    %p208 = scmp.ne.s32.totalorder %s203, %s205
    %p209 = scmp.eq.s32.totalorder %s17, 0
    %p210 = por %p208, %p209
    %p211 = scmp.ne.s32.totalorder %s203, %s205
    %p212 = scmp.eq.s32.totalorder %s22, 1
    %p213 = por %p211, %p212
    %p214 = scmp.ne.s32.totalorder %s205, %s206
    %p215 = scmp.eq.s32.totalorder %s22, 0
    %p216 = por %p214, %p215
    %p217 = scmp.ne.s32.totalorder %s205, %s206
    %p218 = scmp.eq.s32.totalorder %s23, 1
    %p219 = por %p217, %p218
    %p221 = scmp.ne.s32.totalorder %s206, %s220
    %p222 = scmp.eq.s32.totalorder %s23, 0
    %p223 = por %p221, %p222
    %s225 = sadd.s32 %s224, 1
    %p228 = scmp.eq.s32.totalorder %s17, 1
    %p229 = scmp.ne.s32.totalorder %s224, %s226
    %p230 = scmp.eq.s32.totalorder %s17, 0
    %p231 = por %p229, %p230
    %p232 = scmp.ne.s32.totalorder %s224, %s226
    %p233 = scmp.eq.s32.totalorder %s22, 1
    %p234 = por %p232, %p233
    %p235 = scmp.ne.s32.totalorder %s226, %s227
    %p236 = scmp.eq.s32.totalorder %s22, 0
    %p237 = por %p235, %p236
    %p238 = scmp.ne.s32.totalorder %s226, %s227
    %p239 = scmp.eq.s32.totalorder %s23, 1
    %p240 = por %p238, %p239
    %p242 = scmp.ne.s32.totalorder %s227, %s241
    %p243 = scmp.eq.s32.totalorder %s23, 0
    %p244 = por %p242, %p243
    %s246 = sadd.s32 %s245, 1
    %p249 = scmp.eq.s32.totalorder %s17, 1
    %p250 = scmp.ne.s32.totalorder %s245, %s247
    %p251 = scmp.eq.s32.totalorder %s17, 0
    %p252 = por %p250, %p251
    %p253 = scmp.ne.s32.totalorder %s245, %s247
    %p254 = scmp.eq.s32.totalorder %s22, 1
    %p255 = por %p253, %p254
    %p256 = scmp.ne.s32.totalorder %s247, %s248
    %p257 = scmp.eq.s32.totalorder %s22, 0
    %p258 = por %p256, %p257
    %p259 = scmp.ne.s32.totalorder %s247, %s248
    %p260 = scmp.eq.s32.totalorder %s23, 1
    %p261 = por %p259, %p260
    %p263 = scmp.ne.s32.totalorder %s248, %s262
    %p264 = scmp.eq.s32.totalorder %s23, 0
    %p265 = por %p263, %p264
    %s266 = ssub.s32 %s17, %s24
    %p267 = scmp.eq.s32.totalorder %s266, 0
    %s269 = sadd.s32 %s268, 1
    %s270 = scalar_select %p267, %s268, %s269
    %p273 = pneg %p267
    %p274 = scmp.eq.s32.totalorder %s17, 1
    %p275 = por %p273, %p274
    %p276 = scmp.ne.s32.totalorder %s268, %s271
    %p277 = scmp.eq.s32.totalorder %s17, 0
    %p278 = por %p276, %p277
    %p279 = scmp.ne.s32.totalorder %s268, %s271
    %p280 = scmp.eq.s32.totalorder %s22, 1
    %p281 = por %p279, %p280
    %p282 = scmp.ne.s32.totalorder %s271, %s272
    %p283 = scmp.eq.s32.totalorder %s22, 0
    %p284 = por %p282, %p283
    %p285 = scmp.ne.s32.totalorder %s271, %s272
    %p286 = scmp.eq.s32.totalorder %s23, 1
    %p287 = por %p285, %p286
    %p289 = scmp.ne.s32.totalorder %s272, %s288
    %p290 = scmp.eq.s32.totalorder %s23, 0
    %p291 = por %p289, %p290
    %p292 = scmp.le.s32.totalorder 1, %s17
    %p293 = scmp.lt.s32.totalorder %s17, 3
    %p294 = pnand %p292, %p293
    %p295 = pneg %p294
    // Predicated region
    $region9: #{fwd.3} parent=5 // pred_check
      _
    $region10: #{fwd.3} parent=5 // pred_check_branch
      %297 = sbr.rel (%p294) target = $region12
    $region11: #{fwd.3} parent=5 // pred_region
      %s298 = ssub.s32 %s17, 1
      // Predicated region
      $region13: #{fwd.3} parent=11 // pred_check
        %p299 = pneg %p90
      $region14: #{fwd.3} parent=11 // pred_check_branch
        %301 = sbr.rel (%p299) target = $region16
      $region15: #{fwd.3} parent=11 // pred_region
        _
      $region16: #{fwd.3} parent=11 // pred_fallthru
        _
      // Predicated region
      $region17: #{fwd.3} parent=11 // pred_check
        %p302 = pneg %p111
      $region18: #{fwd.3} parent=11 // pred_check_branch
        %304 = sbr.rel (%p302) target = $region20
      $region19: #{fwd.3} parent=11 // pred_region
        _
      $region20: #{fwd.3} parent=11 // pred_fallthru
        _
      // Predicated region
      $region21: #{fwd.3} parent=11 // pred_check
        %p305 = pneg %p132
      $region22: #{fwd.3} parent=11 // pred_check_branch
        %307 = sbr.rel (%p305) target = $region24
      $region23: #{fwd.3} parent=11 // pred_region
        _
      $region24: #{fwd.3} parent=11 // pred_fallthru
        _
      // Predicated region
      $region25: #{fwd.3} parent=11 // pred_check
        %p308 = pneg %p153
      $region26: #{fwd.3} parent=11 // pred_check_branch
        %310 = sbr.rel (%p308) target = $region28
      $region27: #{fwd.3} parent=11 // pred_region
        _
      $region28: #{fwd.3} parent=11 // pred_fallthru
        _
      // Predicated region
      $region29: #{fwd.3} parent=11 // pred_check
        %p311 = pneg %p174
      $region30: #{fwd.3} parent=11 // pred_check_branch
        %313 = sbr.rel (%p311) target = $region32
      $region31: #{fwd.3} parent=11 // pred_region
        _
      $region32: #{fwd.3} parent=11 // pred_fallthru
        _
      // Predicated region
      $region33: #{fwd.3} parent=11 // pred_check
        %p314 = pneg %p195
      $region34: #{fwd.3} parent=11 // pred_check_branch
        %316 = sbr.rel (%p314) target = $region36
      $region35: #{fwd.3} parent=11 // pred_region
        _
      $region36: #{fwd.3} parent=11 // pred_fallthru
        _
      // Predicated region
      $region37: #{fwd.3} parent=11 // pred_check
        %p317 = pneg %p216
      $region38: #{fwd.3} parent=11 // pred_check_branch
        %319 = sbr.rel (%p317) target = $region40
      $region39: #{fwd.3} parent=11 // pred_region
        _
      $region40: #{fwd.3} parent=11 // pred_fallthru
        _
      // Predicated region
      $region41: #{fwd.3} parent=11 // pred_check
        %p320 = pneg %p237
      $region42: #{fwd.3} parent=11 // pred_check_branch
        %322 = sbr.rel (%p320) target = $region44
      $region43: #{fwd.3} parent=11 // pred_region
        _
      $region44: #{fwd.3} parent=11 // pred_fallthru
        _
      // Predicated region
      $region45: #{fwd.3} parent=11 // pred_check
        %p323 = pneg %p258
      $region46: #{fwd.3} parent=11 // pred_check_branch
        %325 = sbr.rel (%p323) target = $region48
      $region47: #{fwd.3} parent=11 // pred_region
        _
      $region48: #{fwd.3} parent=11 // pred_fallthru
        _
    $region12: #{fwd.3} parent=5 // pred_fallthru
      _
    %p326 = scmp.lt.s32.totalorder %s17, 2
    // Predicated region
    $region49: #{fwd.3} parent=5 // pred_check
      %p327 = pneg %p326
    $region50: #{fwd.3} parent=5 // pred_check_branch
      %329 = sbr.rel (%p327) target = $region52
    $region51: #{fwd.3} parent=5 // pred_region
      // Predicated region
      $region53: #{fwd.3} parent=51 // pred_check
        %p330 = pneg %p37
      $region54: #{fwd.3} parent=51 // pred_check_branch
        %332 = sbr.rel (%p330) target = $region56
      $region55: #{fwd.3} parent=51 // pred_region
        %p333 = scmp.lt.s32.totalorder %s17, 1
        %s334 = scalar_select %p333, %s17, 1
        %s335 = smul.addr %s334, 2
        %s336 = smul.addr %s335, 8
        %s337 = scalar_lea.vmem %s0, %s336
      $region56: #{fwd.3} parent=51 // pred_fallthru
        _
      // Predicated region
      $region57: #{fwd.3} parent=51 // pred_check
        %p338 = pneg %p63
      $region58: #{fwd.3} parent=51 // pred_check_branch
        %340 = sbr.rel (%p338) target = $region60
      $region59: #{fwd.3} parent=51 // pred_region
        %p341 = scmp.lt.s32.totalorder %s17, 1
        %s342 = scalar_select %p341, %s17, 1
        %s343 = smul.addr %s342, 2
        %s344 = smul.addr %s343, 8
        %s345 = scalar_lea.vmem %s1, %s344
      $region60: #{fwd.3} parent=51 // pred_fallthru
        _
    $region52: #{fwd.3} parent=5 // pred_fallthru
      _
    %p346 = scmp.le.s32.totalorder 1, %s17
    %p347 = scmp.lt.s32.totalorder %s17, 3
    %p348 = pnand %p346, %p347
    %p349 = pneg %p348
    // Predicated region
    $region61: #{fwd.3} parent=5 // pred_check
      _
    $region62: #{fwd.3} parent=5 // pred_check_branch
      %351 = sbr.rel (%p348) target = $region64
    $region63: #{fwd.3} parent=5 // pred_region
      %s352 = ssub.s32 %s17, 1
      %p353 = scmp.lt.s32.totalorder %s22, 1
      %s354 = scalar_select %p353, %s22, 1
      %s355 = smul.addr %s354, 2
      %s356 = smul.addr %s355, 8
      %s357 = scalar_lea.vmem %s0, %s356
      %p358 = pneg %p43
      %p359 = pneg %p40
      %p360 = scmp.lt.s32.totalorder %s22, 1
      %s361 = scalar_select %p360, %s22, 1
      %s362 = smul.addr %s361, 2
      %s363 = smul.addr %s362, 8
      %s364 = scalar_lea.vmem %s1, %s363
      %p365 = pneg %p69
      %p366 = pneg %p66
      %p367 = pneg %p90
      %p368 = pneg %p87
      %p369 = pneg %p111
      %p370 = pneg %p108
      %p371 = pneg %p132
      %p372 = pneg %p129
      %p373 = pneg %p153
      %p374 = pneg %p150
      %p375 = pneg %p174
      %p376 = pneg %p171
      %p377 = pneg %p195
      %p378 = pneg %p192
      %p379 = pneg %p216
      %p380 = pneg %p213
      %p381 = pneg %p237
      %p382 = pneg %p234
      %p383 = pneg %p258
      %p384 = pneg %p255
      %p385 = pneg %p284
      %p386 = pneg %p281
      %p387 = scmp.lt.s32.totalorder %s22, 1
      %s388 = scalar_select %p387, %s22, 1
      %s389 = smul.addr %s388, 2
      %s390 = smul.addr %s389, 8
      %s391 = scalar_lea.vmem %s11, %s390
      %p392 = scmp.lt.s32.totalorder %s22, 1
      %s393 = scalar_select %p392, %s22, 1
      %s394 = smul.addr %s393, 2
      %s395 = smul.addr %s394, 8
      %s396 = scalar_lea.vmem %s0, %s395
      %p397 = scmp.lt.s32.totalorder %s22, 1
      %s398 = scalar_select %p397, %s22, 1
      %s399 = smul.addr %s398, 2
      %s400 = smul.addr %s399, 8
      %s401 = scalar_lea.vmem %s1, %s400
      %p402 = scmp.lt.s32.totalorder %s22, 1
      %s403 = scalar_select %p402, %s22, 1
      %s404 = smul.addr %s403, 2
      %s405 = smul.addr %s404, 8
      %s406 = scalar_lea.vmem %s11, %s405
      %v408 = vld [vmem:[%s396] sm:$0xff]
      %v409 = vld [vmem:[%s396 + $0x8] sm:$0xff]
      %v410 = vpack.c.bf16 %v408, %v408
      %v411 = vpack.c.bf16 %v409, %v409
      %v414 = vunpack.c.l.b16 %v410
      %v415 = vunpack.c.l.b16 %v411
      %v416 = vpack.c.b16 %v415, %v414
      %418 = vst [vmem:[#allocation2] sm:$0xff] %v416
      %vm419 = vcmask 1040384
      %vm420 = vsmask.f32 256
      %vm421 = vmand %vm419, %vm420
      %vm422 = vcmask 1044484
      %vm423 = vsmask.f32 4352
      %vm424 = vmand %vm422, %vm423
      %vm425 = vmor %vm424, %vm421
      %v426 = vld [vmem:[#allocation3] sm:$0x11]
      %v427 = vsel %vm425, 0, %v426
      %428 = vst [vmem:[#allocation3] sm:$0x11] %v427
      %v429 = vld [vmem:[%s401] sm:$0xff]
      %v430 = vld [vmem:[%s401 + $0x8] sm:$0xff]
      %v431 = vpack.c.bf16 %v429, %v429
      %v432 = vpack.c.bf16 %v430, %v430
      %v435 = vunpack.c.l.b16 %v431
      %v436 = vunpack.c.l.b16 %v432
      %v437 = vpack.c.b16 %v436, %v435
      %v439 = vshrl.u32 %v437, 16
      %v441 = vrot.slane %v439, 7
      %v442 = vshll.u32 %v437, 16
      %v444 = vor.u32 %v441, %v442
      %v445 = vrot.slane %v441, 4
      %vm448 = vcmask 1043456
      %vm449 = vsmask.f32 7938
      %vm450 = vmand %vm448, %vm449
      %vm451 = vcmask 1047556
      %vm452 = vsmask.f32 7954
      %vm453 = vmand %vm451, %vm452
      %vm454 = vmor %vm453, %vm450
      %v455 = vld [vmem:[#allocation3] sm:$0xff]
      %v456 = vsel %vm454, %v444, %v455
      %457 = vst [vmem:[#allocation3] sm:$0xff] %v456
      %v458 = vld [vmem:[#allocation3 + $0x8] sm:$0x11]
      %v459 = vsel %vm425, %v445, %v458
      %460 = vst [vmem:[#allocation3 + $0x8] sm:$0x11] %v459
      %v461 = vld [vmem:[#allocation3] sm:$0xff]
      %v462 = vld [vmem:[#allocation2] sm:$0xff]
      %v463 = vld [vmem:[#allocation3 + $0x8] sm:$0x11]
      %v464 = vld [vmem:[%s2] sm:$0xff]
      %v465 = vld [vmem:[%s2 + $0x8] sm:$0xff]
      %v466 = vld [vmem:[%s2 + $0x10] sm:$0xff]
      %v467 = vld [vmem:[%s2 + $0x18] sm:$0xff]
      %v468 = vld [vmem:[%s2 + $0x20] sm:$0xff]
      %v469 = vld [vmem:[%s2 + $0x28] sm:$0xff]
      %v470 = vld [vmem:[%s2 + $0x30] sm:$0xff]
      %v471 = vld [vmem:[%s2 + $0x38] sm:$0xff]
      %v472 = vld [vmem:[%s2 + $0x40] sm:$0xff]
      %v473 = vld [vmem:[%s2 + $0x48] sm:$0xff]
      %v474 = vld [vmem:[%s2 + $0x50] sm:$0xff]
      %v475 = vld [vmem:[%s2 + $0x58] sm:$0xff]
      %v476 = vld [vmem:[%s2 + $0x60] sm:$0xff]
      %v477 = vld [vmem:[%s2 + $0x68] sm:$0xff]
      %v478 = vld [vmem:[%s2 + $0x70] sm:$0xff]
      %v479 = vld [vmem:[%s2 + $0x78] sm:$0xff]
      %v480 = vld [vmem:[%s2 + $0x80] sm:$0xff]
      %v481 = vld [vmem:[%s2 + $0x88] sm:$0xff]
      %v482 = vld [vmem:[%s2 + $0x90] sm:$0xff]
      %v483 = vld [vmem:[%s2 + $0x98] sm:$0xff]
      %v484 = vld [vmem:[%s2 + $0xa0] sm:$0xff]
      %v485 = vld [vmem:[%s2 + $0xa8] sm:$0xff]
      %v486 = vld [vmem:[%s2 + $0xb0] sm:$0xff]
      %v487 = vld [vmem:[%s2 + $0xb8] sm:$0xff]
      %v488 = vld [vmem:[%s2 + $0xc0] sm:$0xff]
      %v489 = vld [vmem:[%s2 + $0xc8] sm:$0xff]
      %v490 = vld [vmem:[%s2 + $0xd0] sm:$0xff]
      %v491 = vld [vmem:[%s2 + $0xd8] sm:$0xff]
      %v492 = vld [vmem:[%s2 + $0xe0] sm:$0xff]
      %v493 = vld [vmem:[%s2 + $0xe8] sm:$0xff]
      %v494 = vld [vmem:[%s2 + $0xf0] sm:$0xff]
      %v495 = vld [vmem:[%s2 + $0xf8] sm:$0xff]
      %s496 = scalar_lea.vmem %s2, 256
      %v497 = vld [vmem:[%s496] sm:$0xff]
      %v498 = vld [vmem:[%s496 + $0x8] sm:$0xff]
      %v499 = vld [vmem:[%s496 + $0x10] sm:$0xff]
      %v500 = vld [vmem:[%s496 + $0x18] sm:$0xff]
      %v501 = vld [vmem:[%s496 + $0x20] sm:$0xff]
      %v502 = vld [vmem:[%s496 + $0x28] sm:$0xff]
      %v503 = vld [vmem:[%s496 + $0x30] sm:$0xff]
      %v504 = vld [vmem:[%s496 + $0x38] sm:$0xff]
      %v505 = vld [vmem:[%s496 + $0x40] sm:$0xff]
      %v506 = vld [vmem:[%s496 + $0x48] sm:$0xff]
      %v507 = vld [vmem:[%s496 + $0x50] sm:$0xff]
      %v508 = vld [vmem:[%s496 + $0x58] sm:$0xff]
      %v509 = vld [vmem:[%s496 + $0x60] sm:$0xff]
      %v510 = vld [vmem:[%s496 + $0x68] sm:$0xff]
      %v511 = vld [vmem:[%s496 + $0x70] sm:$0xff]
      %v512 = vld [vmem:[%s496 + $0x78] sm:$0xff]
      %v513 = vld [vmem:[%s496 + $0x80] sm:$0xff]
      %v514 = vld [vmem:[%s496 + $0x88] sm:$0xff]
      %v515 = vld [vmem:[%s496 + $0x90] sm:$0xff]
      %v516 = vld [vmem:[%s496 + $0x98] sm:$0xff]
      %v517 = vld [vmem:[%s496 + $0xa0] sm:$0xff]
      %v518 = vld [vmem:[%s496 + $0xa8] sm:$0xff]
      %v519 = vld [vmem:[%s496 + $0xb0] sm:$0xff]
      %v520 = vld [vmem:[%s496 + $0xb8] sm:$0xff]
      %v521 = vld [vmem:[%s496 + $0xc0] sm:$0xff]
      %v522 = vld [vmem:[%s496 + $0xc8] sm:$0xff]
      %v523 = vld [vmem:[%s496 + $0xd0] sm:$0xff]
      %v524 = vld [vmem:[%s496 + $0xd8] sm:$0xff]
      %v525 = vld [vmem:[%s496 + $0xe0] sm:$0xff]
      %v526 = vld [vmem:[%s496 + $0xe8] sm:$0xff]
      %v527 = vld [vmem:[%s496 + $0xf0] sm:$0xff]
      %v528 = vld [vmem:[%s496 + $0xf8] sm:$0xff]
      %v530 = vunpack.c.l.b16 %v462
      %v531 = vunpack.c.h.b16 %v462
      %v532 = vpack.c.b16 %v530, %v530
      %v533 = vpack.c.b16 %v531, %v531
      %v568 = vunpack.c.l.b16 %v497
      %v569 = vunpack.c.h.b16 %v497
      %v570 = vunpack.c.l.b16 %v498
      %v571 = vunpack.c.h.b16 %v498
      %v572 = vunpack.c.l.b16 %v499
      %v573 = vunpack.c.h.b16 %v499
      %v574 = vunpack.c.l.b16 %v500
      %v575 = vunpack.c.h.b16 %v500
      %v576 = vunpack.c.l.b16 %v501
      %v577 = vunpack.c.h.b16 %v501
      %v578 = vunpack.c.l.b16 %v502
      %v579 = vunpack.c.h.b16 %v502
      %v580 = vunpack.c.l.b16 %v503
      %v581 = vunpack.c.h.b16 %v503
      %v582 = vunpack.c.l.b16 %v504
      %v583 = vunpack.c.h.b16 %v504
      %v584 = vunpack.c.l.b16 %v505
      %v585 = vunpack.c.h.b16 %v505
      %v586 = vunpack.c.l.b16 %v506
      %v587 = vunpack.c.h.b16 %v506
      %v588 = vunpack.c.l.b16 %v507
      %v589 = vunpack.c.h.b16 %v507
      %v590 = vunpack.c.l.b16 %v508
      %v591 = vunpack.c.h.b16 %v508
      %v592 = vunpack.c.l.b16 %v509
      %v593 = vunpack.c.h.b16 %v509
      %v594 = vunpack.c.l.b16 %v510
      %v595 = vunpack.c.h.b16 %v510
      %v596 = vunpack.c.l.b16 %v511
      %v597 = vunpack.c.h.b16 %v511
      %v598 = vunpack.c.l.b16 %v512
      %v599 = vunpack.c.h.b16 %v512
      %v600 = vunpack.c.l.b16 %v513
      %v601 = vunpack.c.h.b16 %v513
      %v602 = vunpack.c.l.b16 %v514
      %v603 = vunpack.c.h.b16 %v514
      %v604 = vunpack.c.l.b16 %v515
      %v605 = vunpack.c.h.b16 %v515
      %v606 = vunpack.c.l.b16 %v516
      %v607 = vunpack.c.h.b16 %v516
      %v608 = vunpack.c.l.b16 %v517
      %v609 = vunpack.c.h.b16 %v517
      %v610 = vunpack.c.l.b16 %v518
      %v611 = vunpack.c.h.b16 %v518
      %v612 = vunpack.c.l.b16 %v519
      %v613 = vunpack.c.h.b16 %v519
      %v614 = vunpack.c.l.b16 %v520
      %v615 = vunpack.c.h.b16 %v520
      %v616 = vunpack.c.l.b16 %v521
      %v617 = vunpack.c.h.b16 %v521
      %v618 = vunpack.c.l.b16 %v522
      %v619 = vunpack.c.h.b16 %v522
      %v620 = vunpack.c.l.b16 %v523
      %v621 = vunpack.c.h.b16 %v523
      %v622 = vunpack.c.l.b16 %v524
      %v623 = vunpack.c.h.b16 %v524
      %v624 = vunpack.c.l.b16 %v525
      %v625 = vunpack.c.h.b16 %v525
      %v626 = vunpack.c.l.b16 %v526
      %v627 = vunpack.c.h.b16 %v526
      %v628 = vunpack.c.l.b16 %v527
      %v629 = vunpack.c.h.b16 %v527
      %v630 = vunpack.c.l.b16 %v528
      %v631 = vunpack.c.h.b16 %v528
      %v632 = vpack.c.b16 %v570, %v568
      %v633 = vpack.c.b16 %v571, %v569
      %v634 = vpack.c.b16 %v574, %v572
      %v635 = vpack.c.b16 %v575, %v573
      %v636 = vpack.c.b16 %v578, %v576
      %v637 = vpack.c.b16 %v579, %v577
      %v638 = vpack.c.b16 %v582, %v580
      %v639 = vpack.c.b16 %v583, %v581
      %v640 = vpack.c.b16 %v586, %v584
      %v641 = vpack.c.b16 %v587, %v585
      %v642 = vpack.c.b16 %v590, %v588
      %v643 = vpack.c.b16 %v591, %v589
      %v644 = vpack.c.b16 %v594, %v592
      %v645 = vpack.c.b16 %v595, %v593
      %v646 = vpack.c.b16 %v598, %v596
      %v647 = vpack.c.b16 %v599, %v597
      %v648 = vpack.c.b16 %v602, %v600
      %v649 = vpack.c.b16 %v603, %v601
      %v650 = vpack.c.b16 %v606, %v604
      %v651 = vpack.c.b16 %v607, %v605
      %v652 = vpack.c.b16 %v610, %v608
      %v653 = vpack.c.b16 %v611, %v609
      %v654 = vpack.c.b16 %v614, %v612
      %v655 = vpack.c.b16 %v615, %v613
      %v656 = vpack.c.b16 %v618, %v616
      %v657 = vpack.c.b16 %v619, %v617
      %v658 = vpack.c.b16 %v622, %v620
      %v659 = vpack.c.b16 %v623, %v621
      %v660 = vpack.c.b16 %v626, %v624
      %v661 = vpack.c.b16 %v627, %v625
      %v662 = vpack.c.b16 %v630, %v628
      %v663 = vpack.c.b16 %v631, %v629
      %696 = vmatprep.subr.bf16.mxu0 %v633
      %697 = vmatpush1.bf16.msra.mxu0 %v632
      %698 = vmatprep.subr.bf16.mxu0 %v635
      %699 = vmatpush1.bf16.msra.mxu0 %v634
      %700 = vmatprep.subr.bf16.mxu0 %v637
      %701 = vmatpush1.bf16.msra.mxu0 %v636
      %702 = vmatprep.subr.bf16.mxu0 %v639
      %703 = vmatpush1.bf16.msra.mxu0 %v638
      %704 = vmatprep.subr.bf16.mxu0 %v641
      %705 = vmatpush1.bf16.msra.mxu0 %v640
      %706 = vmatprep.subr.bf16.mxu0 %v643
      %707 = vmatpush1.bf16.msra.mxu0 %v642
      %708 = vmatprep.subr.bf16.mxu0 %v645
      %709 = vmatpush1.bf16.msra.mxu0 %v644
      %710 = vmatprep.subr.bf16.mxu0 %v647
      %711 = vmatpush1.bf16.msra.mxu0 %v646
      %712 = vmatprep.subr.bf16.mxu0 %v649
      %713 = vmatpush1.bf16.msra.mxu0 %v648
      %714 = vmatprep.subr.bf16.mxu0 %v651
      %715 = vmatpush1.bf16.msra.mxu0 %v650
      %716 = vmatprep.subr.bf16.mxu0 %v653
      %717 = vmatpush1.bf16.msra.mxu0 %v652
      %718 = vmatprep.subr.bf16.mxu0 %v655
      %719 = vmatpush1.bf16.msra.mxu0 %v654
      %720 = vmatprep.subr.bf16.mxu0 %v657
      %721 = vmatpush1.bf16.msra.mxu0 %v656
      %722 = vmatprep.subr.bf16.mxu0 %v659
      %723 = vmatpush1.bf16.msra.mxu0 %v658
      %724 = vmatprep.subr.bf16.mxu0 %v661
      %725 = vmatpush1.bf16.msra.mxu0 %v660
      %726 = vmatprep.subr.bf16.mxu0 %v663
      %727 = vmatpush1.bf16.msra.mxu0 %v662
      %728 = vmatprep.mubr.bf16.mxu0 %v533
      %729 = vmatmul.mubr.bf16.gmra.mrb[0].mxu0 %v532
      %v730 = vpop.f32.mrb[0].mxu0
      %v731 = vadd.f32 0.0, %v730
      %v732 = vpop.f32.mrb[0].mxu0
      %v733 = vadd.f32 0.0, %v732
      %v734 = vpop.f32.mrb[0].mxu0
      %v735 = vpop.f32.mrb[0].mxu0
      %736 = vdwg.mxu0
      %v738 = vunpack.c.l.b16 %v461
      %v739 = vunpack.c.h.b16 %v461
      %v740 = vpack.c.b16 %v738, %v738
      %v741 = vpack.c.b16 %v739, %v739
      %v776 = vunpack.c.l.b16 %v464
      %v777 = vunpack.c.h.b16 %v464
      %v778 = vunpack.c.l.b16 %v465
      %v779 = vunpack.c.h.b16 %v465
      %v780 = vunpack.c.l.b16 %v466
      %v781 = vunpack.c.h.b16 %v466
      %v782 = vunpack.c.l.b16 %v467
      %v783 = vunpack.c.h.b16 %v467
      %v784 = vunpack.c.l.b16 %v468
      %v785 = vunpack.c.h.b16 %v468
      %v786 = vunpack.c.l.b16 %v469
      %v787 = vunpack.c.h.b16 %v469
      %v788 = vunpack.c.l.b16 %v470
      %v789 = vunpack.c.h.b16 %v470
      %v790 = vunpack.c.l.b16 %v471
      %v791 = vunpack.c.h.b16 %v471
      %v792 = vunpack.c.l.b16 %v472
      %v793 = vunpack.c.h.b16 %v472
      %v794 = vunpack.c.l.b16 %v473
      %v795 = vunpack.c.h.b16 %v473
      %v796 = vunpack.c.l.b16 %v474
      %v797 = vunpack.c.h.b16 %v474
      %v798 = vunpack.c.l.b16 %v475
      %v799 = vunpack.c.h.b16 %v475
      %v800 = vunpack.c.l.b16 %v476
      %v801 = vunpack.c.h.b16 %v476
      %v802 = vunpack.c.l.b16 %v477
      %v803 = vunpack.c.h.b16 %v477
      %v804 = vunpack.c.l.b16 %v478
      %v805 = vunpack.c.h.b16 %v478
      %v806 = vunpack.c.l.b16 %v479
      %v807 = vunpack.c.h.b16 %v479
      %v808 = vunpack.c.l.b16 %v480
      %v809 = vunpack.c.h.b16 %v480
      %v810 = vunpack.c.l.b16 %v481
      %v811 = vunpack.c.h.b16 %v481
      %v812 = vunpack.c.l.b16 %v482
      %v813 = vunpack.c.h.b16 %v482
      %v814 = vunpack.c.l.b16 %v483
      %v815 = vunpack.c.h.b16 %v483
      %v816 = vunpack.c.l.b16 %v484
      %v817 = vunpack.c.h.b16 %v484
      %v818 = vunpack.c.l.b16 %v485
      %v819 = vunpack.c.h.b16 %v485
      %v820 = vunpack.c.l.b16 %v486
      %v821 = vunpack.c.h.b16 %v486
      %v822 = vunpack.c.l.b16 %v487
      %v823 = vunpack.c.h.b16 %v487
      %v824 = vunpack.c.l.b16 %v488
      %v825 = vunpack.c.h.b16 %v488
      %v826 = vunpack.c.l.b16 %v489
      %v827 = vunpack.c.h.b16 %v489
      %v828 = vunpack.c.l.b16 %v490
      %v829 = vunpack.c.h.b16 %v490
      %v830 = vunpack.c.l.b16 %v491
      %v831 = vunpack.c.h.b16 %v491
      %v832 = vunpack.c.l.b16 %v492
      %v833 = vunpack.c.h.b16 %v492
      %v834 = vunpack.c.l.b16 %v493
      %v835 = vunpack.c.h.b16 %v493
      %v836 = vunpack.c.l.b16 %v494
      %v837 = vunpack.c.h.b16 %v494
      %v838 = vunpack.c.l.b16 %v495
      %v839 = vunpack.c.h.b16 %v495
      %v840 = vpack.c.b16 %v778, %v776
      %v841 = vpack.c.b16 %v779, %v777
      %v842 = vpack.c.b16 %v782, %v780
      %v843 = vpack.c.b16 %v783, %v781
      %v844 = vpack.c.b16 %v786, %v784
      %v845 = vpack.c.b16 %v787, %v785
      %v846 = vpack.c.b16 %v790, %v788
      %v847 = vpack.c.b16 %v791, %v789
      %v848 = vpack.c.b16 %v794, %v792
      %v849 = vpack.c.b16 %v795, %v793
      %v850 = vpack.c.b16 %v798, %v796
      %v851 = vpack.c.b16 %v799, %v797
      %v852 = vpack.c.b16 %v802, %v800
      %v853 = vpack.c.b16 %v803, %v801
      %v854 = vpack.c.b16 %v806, %v804
      %v855 = vpack.c.b16 %v807, %v805
      %v856 = vpack.c.b16 %v810, %v808
      %v857 = vpack.c.b16 %v811, %v809
      %v858 = vpack.c.b16 %v814, %v812
      %v859 = vpack.c.b16 %v815, %v813
      %v860 = vpack.c.b16 %v818, %v816
      %v861 = vpack.c.b16 %v819, %v817
      %v862 = vpack.c.b16 %v822, %v820
      %v863 = vpack.c.b16 %v823, %v821
      %v864 = vpack.c.b16 %v826, %v824
      %v865 = vpack.c.b16 %v827, %v825
      %v866 = vpack.c.b16 %v830, %v828
      %v867 = vpack.c.b16 %v831, %v829
      %v868 = vpack.c.b16 %v834, %v832
      %v869 = vpack.c.b16 %v835, %v833
      %v870 = vpack.c.b16 %v838, %v836
      %v871 = vpack.c.b16 %v839, %v837
      %904 = vmatprep.subr.bf16.mxu0 %v841
      %905 = vmatpush1.bf16.msra.mxu0 %v840
      %906 = vmatprep.subr.bf16.mxu0 %v843
      %907 = vmatpush1.bf16.msra.mxu0 %v842
      %908 = vmatprep.subr.bf16.mxu0 %v845
      %909 = vmatpush1.bf16.msra.mxu0 %v844
      %910 = vmatprep.subr.bf16.mxu0 %v847
      %911 = vmatpush1.bf16.msra.mxu0 %v846
      %912 = vmatprep.subr.bf16.mxu0 %v849
      %913 = vmatpush1.bf16.msra.mxu0 %v848
      %914 = vmatprep.subr.bf16.mxu0 %v851
      %915 = vmatpush1.bf16.msra.mxu0 %v850
      %916 = vmatprep.subr.bf16.mxu0 %v853
      %917 = vmatpush1.bf16.msra.mxu0 %v852
      %918 = vmatprep.subr.bf16.mxu0 %v855
      %919 = vmatpush1.bf16.msra.mxu0 %v854
      %920 = vmatprep.subr.bf16.mxu0 %v857
      %921 = vmatpush1.bf16.msra.mxu0 %v856
      %922 = vmatprep.subr.bf16.mxu0 %v859
      %923 = vmatpush1.bf16.msra.mxu0 %v858
      %924 = vmatprep.subr.bf16.mxu0 %v861
      %925 = vmatpush1.bf16.msra.mxu0 %v860
      %926 = vmatprep.subr.bf16.mxu0 %v863
      %927 = vmatpush1.bf16.msra.mxu0 %v862
      %928 = vmatprep.subr.bf16.mxu0 %v865
      %929 = vmatpush1.bf16.msra.mxu0 %v864
      %930 = vmatprep.subr.bf16.mxu0 %v867
      %931 = vmatpush1.bf16.msra.mxu0 %v866
      %932 = vmatprep.subr.bf16.mxu0 %v869
      %933 = vmatpush1.bf16.msra.mxu0 %v868
      %934 = vmatprep.subr.bf16.mxu0 %v871
      %935 = vmatpush1.bf16.msra.mxu0 %v870
      %936 = vmatprep.mubr.bf16.mxu0 %v741
      %937 = vmatmul.mubr.bf16.gmra.mrb[0].mxu0 %v740
      %v938 = vpop.f32.mrb[0].mxu0
      %v939 = vadd.f32 %v731, %v938
      %v940 = vpop.f32.mrb[0].mxu0
      %v941 = vadd.f32 %v733, %v940
      %v942 = vpop.f32.mrb[0].mxu0
      %v943 = vpop.f32.mrb[0].mxu0
      %944 = vdwg.mxu0
      %s945 = scalar_lea.vmem %s2, 512
      %v946 = vld [vmem:[%s945] sm:$0xff]
      %v947 = vld [vmem:[%s945 + $0x8] sm:$0xff]
      %v948 = vld [vmem:[%s945 + $0x10] sm:$0xff]
      %v949 = vld [vmem:[%s945 + $0x18] sm:$0xff]
      %v950 = vld [vmem:[%s945 + $0x20] sm:$0xff]
      %v951 = vld [vmem:[%s945 + $0x28] sm:$0xff]
      %v952 = vld [vmem:[%s945 + $0x30] sm:$0xff]
      %v953 = vld [vmem:[%s945 + $0x38] sm:$0xff]
      %v954 = vld [vmem:[%s945 + $0x40] sm:$0xff]
      %v955 = vld [vmem:[%s945 + $0x48] sm:$0xff]
      %v956 = vld [vmem:[%s945 + $0x50] sm:$0xff]
      %v957 = vld [vmem:[%s945 + $0x58] sm:$0xff]
      %v958 = vld [vmem:[%s945 + $0x60] sm:$0xff]
      %v959 = vld [vmem:[%s945 + $0x68] sm:$0xff]
      %v960 = vld [vmem:[%s945 + $0x70] sm:$0xff]
      %v961 = vld [vmem:[%s945 + $0x78] sm:$0xff]
      %v962 = vld [vmem:[%s945 + $0x80] sm:$0xff]
      %v963 = vld [vmem:[%s945 + $0x88] sm:$0xff]
      %v964 = vld [vmem:[%s945 + $0x90] sm:$0xff]
      %v965 = vld [vmem:[%s945 + $0x98] sm:$0xff]
      %v966 = vld [vmem:[%s945 + $0xa0] sm:$0xff]
      %v967 = vld [vmem:[%s945 + $0xa8] sm:$0xff]
      %v968 = vld [vmem:[%s945 + $0xb0] sm:$0xff]
      %v969 = vld [vmem:[%s945 + $0xb8] sm:$0xff]
      %v970 = vld [vmem:[%s945 + $0xc0] sm:$0xff]
      %v971 = vld [vmem:[%s945 + $0xc8] sm:$0xff]
      %v972 = vld [vmem:[%s945 + $0xd0] sm:$0xff]
      %v973 = vld [vmem:[%s945 + $0xd8] sm:$0xff]
      %v974 = vld [vmem:[%s945 + $0xe0] sm:$0xff]
      %v975 = vld [vmem:[%s945 + $0xe8] sm:$0xff]
      %v976 = vld [vmem:[%s945 + $0xf0] sm:$0xff]
      %v977 = vld [vmem:[%s945 + $0xf8] sm:$0xff]
      %v979 = vunpack.c.l.b16 %v463
      %v980 = vunpack.c.h.b16 %v463
      %v981 = vpack.c.b16 %v979, %v738
      %v982 = vpack.c.b16 %v980, %v739
      %v984 = vshrl.u32 %v981, 16
      %v986 = vshll.u32 %v981, 16
      %v988 = vrot.slane %v986, 1
      %v989 = vor.u32 %v984, %v988
      %v991 = vshrl.u32 %v982, 16
      %v993 = vshll.u32 %v982, 16
      %v995 = vrot.slane %v993, 1
      %v996 = vor.u32 %v991, %v995
      %v1031 = vunpack.c.l.b16 %v946
      %v1032 = vunpack.c.h.b16 %v946
      %v1033 = vunpack.c.l.b16 %v947
      %v1034 = vunpack.c.h.b16 %v947
      %v1035 = vunpack.c.l.b16 %v948
      %v1036 = vunpack.c.h.b16 %v948
      %v1037 = vunpack.c.l.b16 %v949
      %v1038 = vunpack.c.h.b16 %v949
      %v1039 = vunpack.c.l.b16 %v950
      %v1040 = vunpack.c.h.b16 %v950
      %v1041 = vunpack.c.l.b16 %v951
      %v1042 = vunpack.c.h.b16 %v951
      %v1043 = vunpack.c.l.b16 %v952
      %v1044 = vunpack.c.h.b16 %v952
      %v1045 = vunpack.c.l.b16 %v953
      %v1046 = vunpack.c.h.b16 %v953
      %v1047 = vunpack.c.l.b16 %v954
      %v1048 = vunpack.c.h.b16 %v954
      %v1049 = vunpack.c.l.b16 %v955
      %v1050 = vunpack.c.h.b16 %v955
      %v1051 = vunpack.c.l.b16 %v956
      %v1052 = vunpack.c.h.b16 %v956
      %v1053 = vunpack.c.l.b16 %v957
      %v1054 = vunpack.c.h.b16 %v957
      %v1055 = vunpack.c.l.b16 %v958
      %v1056 = vunpack.c.h.b16 %v958
      %v1057 = vunpack.c.l.b16 %v959
      %v1058 = vunpack.c.h.b16 %v959
      %v1059 = vunpack.c.l.b16 %v960
      %v1060 = vunpack.c.h.b16 %v960
      %v1061 = vunpack.c.l.b16 %v961
      %v1062 = vunpack.c.h.b16 %v961
      %v1063 = vunpack.c.l.b16 %v962
      %v1064 = vunpack.c.h.b16 %v962
      %v1065 = vunpack.c.l.b16 %v963
      %v1066 = vunpack.c.h.b16 %v963
      %v1067 = vunpack.c.l.b16 %v964
      %v1068 = vunpack.c.h.b16 %v964
      %v1069 = vunpack.c.l.b16 %v965
      %v1070 = vunpack.c.h.b16 %v965
      %v1071 = vunpack.c.l.b16 %v966
      %v1072 = vunpack.c.h.b16 %v966
      %v1073 = vunpack.c.l.b16 %v967
      %v1074 = vunpack.c.h.b16 %v967
      %v1075 = vunpack.c.l.b16 %v968
      %v1076 = vunpack.c.h.b16 %v968
      %v1077 = vunpack.c.l.b16 %v969
      %v1078 = vunpack.c.h.b16 %v969
      %v1079 = vunpack.c.l.b16 %v970
      %v1080 = vunpack.c.h.b16 %v970
      %v1081 = vunpack.c.l.b16 %v971
      %v1082 = vunpack.c.h.b16 %v971
      %v1083 = vunpack.c.l.b16 %v972
      %v1084 = vunpack.c.h.b16 %v972
      %v1085 = vunpack.c.l.b16 %v973
      %v1086 = vunpack.c.h.b16 %v973
      %v1087 = vunpack.c.l.b16 %v974
      %v1088 = vunpack.c.h.b16 %v974
      %v1089 = vunpack.c.l.b16 %v975
      %v1090 = vunpack.c.h.b16 %v975
      %v1091 = vunpack.c.l.b16 %v976
      %v1092 = vunpack.c.h.b16 %v976
      %v1093 = vunpack.c.l.b16 %v977
      %v1094 = vunpack.c.h.b16 %v977
      %v1095 = vpack.c.b16 %v1033, %v1031
      %v1096 = vpack.c.b16 %v1034, %v1032
      %v1097 = vpack.c.b16 %v1037, %v1035
      %v1098 = vpack.c.b16 %v1038, %v1036
      %v1099 = vpack.c.b16 %v1041, %v1039
      %v1100 = vpack.c.b16 %v1042, %v1040
      %v1101 = vpack.c.b16 %v1045, %v1043
      %v1102 = vpack.c.b16 %v1046, %v1044
      %v1103 = vpack.c.b16 %v1049, %v1047
      %v1104 = vpack.c.b16 %v1050, %v1048
      %v1105 = vpack.c.b16 %v1053, %v1051
      %v1106 = vpack.c.b16 %v1054, %v1052
      %v1107 = vpack.c.b16 %v1057, %v1055
      %v1108 = vpack.c.b16 %v1058, %v1056
      %v1109 = vpack.c.b16 %v1061, %v1059
      %v1110 = vpack.c.b16 %v1062, %v1060
      %v1111 = vpack.c.b16 %v1065, %v1063
      %v1112 = vpack.c.b16 %v1066, %v1064
      %v1113 = vpack.c.b16 %v1069, %v1067
      %v1114 = vpack.c.b16 %v1070, %v1068
      %v1115 = vpack.c.b16 %v1073, %v1071
      %v1116 = vpack.c.b16 %v1074, %v1072
      %v1117 = vpack.c.b16 %v1077, %v1075
      %v1118 = vpack.c.b16 %v1078, %v1076
      %v1119 = vpack.c.b16 %v1081, %v1079
      %v1120 = vpack.c.b16 %v1082, %v1080
      %v1121 = vpack.c.b16 %v1085, %v1083
      %v1122 = vpack.c.b16 %v1086, %v1084
      %v1123 = vpack.c.b16 %v1089, %v1087
      %v1124 = vpack.c.b16 %v1090, %v1088
      %v1125 = vpack.c.b16 %v1093, %v1091
      %v1126 = vpack.c.b16 %v1094, %v1092
      %1159 = vmatprep.subr.bf16.mxu0 %v1096
      %1160 = vmatpush1.bf16.msra.mxu0 %v1095
      %1161 = vmatprep.subr.bf16.mxu0 %v1098
      %1162 = vmatpush1.bf16.msra.mxu0 %v1097
      %1163 = vmatprep.subr.bf16.mxu0 %v1100
      %1164 = vmatpush1.bf16.msra.mxu0 %v1099
      %1165 = vmatprep.subr.bf16.mxu0 %v1102
      %1166 = vmatpush1.bf16.msra.mxu0 %v1101
      %1167 = vmatprep.subr.bf16.mxu0 %v1104
      %1168 = vmatpush1.bf16.msra.mxu0 %v1103
      %1169 = vmatprep.subr.bf16.mxu0 %v1106
      %1170 = vmatpush1.bf16.msra.mxu0 %v1105
      %1171 = vmatprep.subr.bf16.mxu0 %v1108
      %1172 = vmatpush1.bf16.msra.mxu0 %v1107
      %1173 = vmatprep.subr.bf16.mxu0 %v1110
      %1174 = vmatpush1.bf16.msra.mxu0 %v1109
      %1175 = vmatprep.subr.bf16.mxu0 %v1112
      %1176 = vmatpush1.bf16.msra.mxu0 %v1111
      %1177 = vmatprep.subr.bf16.mxu0 %v1114
      %1178 = vmatpush1.bf16.msra.mxu0 %v1113
      %1179 = vmatprep.subr.bf16.mxu0 %v1116
      %1180 = vmatpush1.bf16.msra.mxu0 %v1115
      %1181 = vmatprep.subr.bf16.mxu0 %v1118
      %1182 = vmatpush1.bf16.msra.mxu0 %v1117
      %1183 = vmatprep.subr.bf16.mxu0 %v1120
      %1184 = vmatpush1.bf16.msra.mxu0 %v1119
      %1185 = vmatprep.subr.bf16.mxu0 %v1122
      %1186 = vmatpush1.bf16.msra.mxu0 %v1121
      %1187 = vmatprep.subr.bf16.mxu0 %v1124
      %1188 = vmatpush1.bf16.msra.mxu0 %v1123
      %1189 = vmatprep.subr.bf16.mxu0 %v1126
      %1190 = vmatpush1.bf16.msra.mxu0 %v1125
      %1191 = vmatprep.mubr.bf16.mxu0 %v996
      %1192 = vmatmul.mubr.bf16.gmra.mrb[0].mxu0 %v989
      %v1193 = vpop.f32.mrb[0].mxu0
      %v1194 = vadd.f32 0.0, %v1193
      %v1195 = vpop.f32.mrb[0].mxu0
      %v1196 = vadd.f32 0.0, %v1195
      %v1197 = vpop.f32.mrb[0].mxu0
      %v1198 = vpop.f32.mrb[0].mxu0
      %1199 = vdwg.mxu0
      %v1200 = vadd.f32 %v939, %v1194
      %v1201 = vadd.f32 %v941, %v1196
      %v1202 = vld [vmem:[%s3] sm:$0x3]
      %v1204 = vlaneseq
      %v1205 = vshrl.u32 %v1204, 7
      %v1206 = vsub.s32 0, %v1205
      %v1207 = vrot.slane %v1202, %v1206
      %v1208 = vlaneseq
      %v1209 = vshrl.u32 %v1208, 7
      %v1210 = vsub.s32 1, %v1209
      %v1211 = vrot.slane %v1202, %v1210
      %v1214 = vmul.f32 %v1200, %v1207
      %v1215 = vmul.f32 %v1201, %v1211
      %v1216 = vld [vmem:[%s4] sm:$0x3]
      %v1218 = vlaneseq
      %v1219 = vshrl.u32 %v1218, 7
      %v1220 = vsub.s32 0, %v1219
      %v1221 = vrot.slane %v1216, %v1220
      %v1222 = vlaneseq
      %v1223 = vshrl.u32 %v1222, 7
      %v1224 = vsub.s32 1, %v1223
      %v1225 = vrot.slane %v1216, %v1224
      %v1228 = vadd.f32 %v1214, %v1221
      %v1229 = vadd.f32 %v1215, %v1225
      %v1230 = vmax.f32 %v1228, 0.0
      %v1231 = vmax.f32 %v1229, 0.0
      %v1232 = vld [vmem:[#allocation4] sm:$0x11]
      %v1233 = vsel %vm425, 0, %v1232
      %1234 = vst [vmem:[#allocation4] sm:$0x11] %v1233
      %vm1235 = vmand %vm419, %vm449
      %vm1236 = vmand %vm422, %vm452
      %vm1237 = vmor %vm1236, %vm1235
      %v1238 = vld [vmem:[#allocation4 + $0x8] sm:$0x11]
      %v1239 = vsel %vm1237, 0, %v1238
      %1240 = vst [vmem:[#allocation4 + $0x8] sm:$0x11] %v1239
      %v1241 = vpack.c.bf16 %v1230, %v1230
      %v1242 = vpack.c.bf16 %v1231, %v1231
      %v1245 = vunpack.c.l.b16 %v1241
      %v1246 = vunpack.c.l.b16 %v1242
      %v1247 = vpack.c.b16 %v1246, %v1245
      %v1249 = vshrl.u32 %v1247, 16
      %v1251 = vrot.slane %v1249, 7
      %v1252 = vshll.u32 %v1247, 16
      %v1254 = vor.u32 %v1251, %v1252
      %v1255 = vrot.slane %v1251, 4
      %v1258 = vld [vmem:[#allocation4] sm:$0xff]
      %v1259 = vsel %vm454, %v1254, %v1258
      %1260 = vst [vmem:[#allocation4] sm:$0xff] %v1259
      %v1261 = vld [vmem:[#allocation4 + $0x8] sm:$0x11]
      %v1262 = vsel %vm425, %v1255, %v1261
      %1263 = vst [vmem:[#allocation4 + $0x8] sm:$0x11] %v1262
      %v1264 = vld [vmem:[#allocation4] sm:$0xff]
      %v1265 = vld [vmem:[%s5] sm:$0xff]
      %v1266 = vld [vmem:[%s5 + $0x8] sm:$0xff]
      %v1267 = vld [vmem:[%s5 + $0x10] sm:$0xff]
      %v1268 = vld [vmem:[%s5 + $0x18] sm:$0xff]
      %v1269 = vld [vmem:[%s5 + $0x20] sm:$0xff]
      %v1270 = vld [vmem:[%s5 + $0x28] sm:$0xff]
      %v1271 = vld [vmem:[%s5 + $0x30] sm:$0xff]
      %v1272 = vld [vmem:[%s5 + $0x38] sm:$0xff]
      %v1273 = vld [vmem:[%s5 + $0x40] sm:$0xff]
      %v1274 = vld [vmem:[%s5 + $0x48] sm:$0xff]
      %v1275 = vld [vmem:[%s5 + $0x50] sm:$0xff]
      %v1276 = vld [vmem:[%s5 + $0x58] sm:$0xff]
      %v1277 = vld [vmem:[%s5 + $0x60] sm:$0xff]
      %v1278 = vld [vmem:[%s5 + $0x68] sm:$0xff]
      %v1279 = vld [vmem:[%s5 + $0x70] sm:$0xff]
      %v1280 = vld [vmem:[%s5 + $0x78] sm:$0xff]
      %v1281 = vld [vmem:[%s5 + $0x80] sm:$0xff]
      %v1282 = vld [vmem:[%s5 + $0x88] sm:$0xff]
      %v1283 = vld [vmem:[%s5 + $0x90] sm:$0xff]
      %v1284 = vld [vmem:[%s5 + $0x98] sm:$0xff]
      %v1285 = vld [vmem:[%s5 + $0xa0] sm:$0xff]
      %v1286 = vld [vmem:[%s5 + $0xa8] sm:$0xff]
      %v1287 = vld [vmem:[%s5 + $0xb0] sm:$0xff]
      %v1288 = vld [vmem:[%s5 + $0xb8] sm:$0xff]
      %v1289 = vld [vmem:[%s5 + $0xc0] sm:$0xff]
      %v1290 = vld [vmem:[%s5 + $0xc8] sm:$0xff]
      %v1291 = vld [vmem:[%s5 + $0xd0] sm:$0xff]
      %v1292 = vld [vmem:[%s5 + $0xd8] sm:$0xff]
      %v1293 = vld [vmem:[%s5 + $0xe0] sm:$0xff]
      %v1294 = vld [vmem:[%s5 + $0xe8] sm:$0xff]
      %v1295 = vld [vmem:[%s5 + $0xf0] sm:$0xff]
      %v1296 = vld [vmem:[%s5 + $0xf8] sm:$0xff]
      %v1297 = vld [vmem:[#allocation4 + $0x8] sm:$0x11]
      %s1298 = scalar_lea.vmem %s5, 256
      %v1299 = vld [vmem:[%s1298] sm:$0xff]
      %v1300 = vld [vmem:[%s1298 + $0x8] sm:$0xff]
      %v1301 = vld [vmem:[%s1298 + $0x10] sm:$0xff]
      %v1302 = vld [vmem:[%s1298 + $0x18] sm:$0xff]
      %v1303 = vld [vmem:[%s1298 + $0x20] sm:$0xff]
      %v1304 = vld [vmem:[%s1298 + $0x28] sm:$0xff]
      %v1305 = vld [vmem:[%s1298 + $0x30] sm:$0xff]
      %v1306 = vld [vmem:[%s1298 + $0x38] sm:$0xff]
      %v1307 = vld [vmem:[%s1298 + $0x40] sm:$0xff]
      %v1308 = vld [vmem:[%s1298 + $0x48] sm:$0xff]
      %v1309 = vld [vmem:[%s1298 + $0x50] sm:$0xff]
      %v1310 = vld [vmem:[%s1298 + $0x58] sm:$0xff]
      %v1311 = vld [vmem:[%s1298 + $0x60] sm:$0xff]
      %v1312 = vld [vmem:[%s1298 + $0x68] sm:$0xff]
      %v1313 = vld [vmem:[%s1298 + $0x70] sm:$0xff]
      %v1314 = vld [vmem:[%s1298 + $0x78] sm:$0xff]
      %v1315 = vld [vmem:[%s1298 + $0x80] sm:$0xff]
      %v1316 = vld [vmem:[%s1298 + $0x88] sm:$0xff]
      %v1317 = vld [vmem:[%s1298 + $0x90] sm:$0xff]
      %v1318 = vld [vmem:[%s1298 + $0x98] sm:$0xff]
      %v1319 = vld [vmem:[%s1298 + $0xa0] sm:$0xff]
      %v1320 = vld [vmem:[%s1298 + $0xa8] sm:$0xff]
      %v1321 = vld [vmem:[%s1298 + $0xb0] sm:$0xff]
      %v1322 = vld [vmem:[%s1298 + $0xb8] sm:$0xff]
      %v1323 = vld [vmem:[%s1298 + $0xc0] sm:$0xff]
      %v1324 = vld [vmem:[%s1298 + $0xc8] sm:$0xff]
      %v1325 = vld [vmem:[%s1298 + $0xd0] sm:$0xff]
      %v1326 = vld [vmem:[%s1298 + $0xd8] sm:$0xff]
      %v1327 = vld [vmem:[%s1298 + $0xe0] sm:$0xff]
      %v1328 = vld [vmem:[%s1298 + $0xe8] sm:$0xff]
      %v1329 = vld [vmem:[%s1298 + $0xf0] sm:$0xff]
      %v1330 = vld [vmem:[%s1298 + $0xf8] sm:$0xff]
      %v1333 = vunpack.c.l.b16 %v1264
      %v1334 = vunpack.c.h.b16 %v1264
      %v1335 = vunpack.c.l.b16 %v1297
      %v1336 = vunpack.c.h.b16 %v1297
      %v1337 = vpack.c.b16 %v1335, %v1333
      %v1338 = vpack.c.b16 %v1336, %v1334
      %v1340 = vshrl.u32 %v1337, 16
      %v1342 = vshll.u32 %v1337, 16
      %v1344 = vrot.slane %v1342, 1
      %v1345 = vor.u32 %v1340, %v1344
      %v1347 = vshrl.u32 %v1338, 16
      %v1349 = vshll.u32 %v1338, 16
      %v1351 = vrot.slane %v1349, 1
      %v1352 = vor.u32 %v1347, %v1351
      %v1387 = vunpack.c.l.b16 %v1299
      %v1388 = vunpack.c.h.b16 %v1299
      %v1389 = vunpack.c.l.b16 %v1300
      %v1390 = vunpack.c.h.b16 %v1300
      %v1391 = vunpack.c.l.b16 %v1301
      %v1392 = vunpack.c.h.b16 %v1301
      %v1393 = vunpack.c.l.b16 %v1302
      %v1394 = vunpack.c.h.b16 %v1302
      %v1395 = vunpack.c.l.b16 %v1303
      %v1396 = vunpack.c.h.b16 %v1303
      %v1397 = vunpack.c.l.b16 %v1304
      %v1398 = vunpack.c.h.b16 %v1304
      %v1399 = vunpack.c.l.b16 %v1305
      %v1400 = vunpack.c.h.b16 %v1305
      %v1401 = vunpack.c.l.b16 %v1306
      %v1402 = vunpack.c.h.b16 %v1306
      %v1403 = vunpack.c.l.b16 %v1307
      %v1404 = vunpack.c.h.b16 %v1307
      %v1405 = vunpack.c.l.b16 %v1308
      %v1406 = vunpack.c.h.b16 %v1308
      %v1407 = vunpack.c.l.b16 %v1309
      %v1408 = vunpack.c.h.b16 %v1309
      %v1409 = vunpack.c.l.b16 %v1310
      %v1410 = vunpack.c.h.b16 %v1310
      %v1411 = vunpack.c.l.b16 %v1311
      %v1412 = vunpack.c.h.b16 %v1311
      %v1413 = vunpack.c.l.b16 %v1312
      %v1414 = vunpack.c.h.b16 %v1312
      %v1415 = vunpack.c.l.b16 %v1313
      %v1416 = vunpack.c.h.b16 %v1313
      %v1417 = vunpack.c.l.b16 %v1314
      %v1418 = vunpack.c.h.b16 %v1314
      %v1419 = vunpack.c.l.b16 %v1315
      %v1420 = vunpack.c.h.b16 %v1315
      %v1421 = vunpack.c.l.b16 %v1316
      %v1422 = vunpack.c.h.b16 %v1316
      %v1423 = vunpack.c.l.b16 %v1317
      %v1424 = vunpack.c.h.b16 %v1317
      %v1425 = vunpack.c.l.b16 %v1318
      %v1426 = vunpack.c.h.b16 %v1318
      %v1427 = vunpack.c.l.b16 %v1319
      %v1428 = vunpack.c.h.b16 %v1319
      %v1429 = vunpack.c.l.b16 %v1320
      %v1430 = vunpack.c.h.b16 %v1320
      %v1431 = vunpack.c.l.b16 %v1321
      %v1432 = vunpack.c.h.b16 %v1321
      %v1433 = vunpack.c.l.b16 %v1322
      %v1434 = vunpack.c.h.b16 %v1322
      %v1435 = vunpack.c.l.b16 %v1323
      %v1436 = vunpack.c.h.b16 %v1323
      %v1437 = vunpack.c.l.b16 %v1324
      %v1438 = vunpack.c.h.b16 %v1324
      %v1439 = vunpack.c.l.b16 %v1325
      %v1440 = vunpack.c.h.b16 %v1325
      %v1441 = vunpack.c.l.b16 %v1326
      %v1442 = vunpack.c.h.b16 %v1326
      %v1443 = vunpack.c.l.b16 %v1327
      %v1444 = vunpack.c.h.b16 %v1327
      %v1445 = vunpack.c.l.b16 %v1328
      %v1446 = vunpack.c.h.b16 %v1328
      %v1447 = vunpack.c.l.b16 %v1329
      %v1448 = vunpack.c.h.b16 %v1329
      %v1449 = vunpack.c.l.b16 %v1330
      %v1450 = vunpack.c.h.b16 %v1330
      %v1451 = vpack.c.b16 %v1389, %v1387
      %v1452 = vpack.c.b16 %v1390, %v1388
      %v1453 = vpack.c.b16 %v1393, %v1391
      %v1454 = vpack.c.b16 %v1394, %v1392
      %v1455 = vpack.c.b16 %v1397, %v1395
      %v1456 = vpack.c.b16 %v1398, %v1396
      %v1457 = vpack.c.b16 %v1401, %v1399
      %v1458 = vpack.c.b16 %v1402, %v1400
      %v1459 = vpack.c.b16 %v1405, %v1403
      %v1460 = vpack.c.b16 %v1406, %v1404
      %v1461 = vpack.c.b16 %v1409, %v1407
      %v1462 = vpack.c.b16 %v1410, %v1408
      %v1463 = vpack.c.b16 %v1413, %v1411
      %v1464 = vpack.c.b16 %v1414, %v1412
      %v1465 = vpack.c.b16 %v1417, %v1415
      %v1466 = vpack.c.b16 %v1418, %v1416
      %v1467 = vpack.c.b16 %v1421, %v1419
      %v1468 = vpack.c.b16 %v1422, %v1420
      %v1469 = vpack.c.b16 %v1425, %v1423
      %v1470 = vpack.c.b16 %v1426, %v1424
      %v1471 = vpack.c.b16 %v1429, %v1427
      %v1472 = vpack.c.b16 %v1430, %v1428
      %v1473 = vpack.c.b16 %v1433, %v1431
      %v1474 = vpack.c.b16 %v1434, %v1432
      %v1475 = vpack.c.b16 %v1437, %v1435
      %v1476 = vpack.c.b16 %v1438, %v1436
      %v1477 = vpack.c.b16 %v1441, %v1439
      %v1478 = vpack.c.b16 %v1442, %v1440
      %v1479 = vpack.c.b16 %v1445, %v1443
      %v1480 = vpack.c.b16 %v1446, %v1444
      %v1481 = vpack.c.b16 %v1449, %v1447
      %v1482 = vpack.c.b16 %v1450, %v1448
      %1515 = vmatprep.subr.bf16.mxu0 %v1452
      %1516 = vmatpush1.bf16.msra.mxu0 %v1451
      %1517 = vmatprep.subr.bf16.mxu0 %v1454
      %1518 = vmatpush1.bf16.msra.mxu0 %v1453
      %1519 = vmatprep.subr.bf16.mxu0 %v1456
      %1520 = vmatpush1.bf16.msra.mxu0 %v1455
      %1521 = vmatprep.subr.bf16.mxu0 %v1458
      %1522 = vmatpush1.bf16.msra.mxu0 %v1457
      %1523 = vmatprep.subr.bf16.mxu0 %v1460
      %1524 = vmatpush1.bf16.msra.mxu0 %v1459
      %1525 = vmatprep.subr.bf16.mxu0 %v1462
      %1526 = vmatpush1.bf16.msra.mxu0 %v1461
      %1527 = vmatprep.subr.bf16.mxu0 %v1464
      %1528 = vmatpush1.bf16.msra.mxu0 %v1463
      %1529 = vmatprep.subr.bf16.mxu0 %v1466
      %1530 = vmatpush1.bf16.msra.mxu0 %v1465
      %1531 = vmatprep.subr.bf16.mxu0 %v1468
      %1532 = vmatpush1.bf16.msra.mxu0 %v1467
      %1533 = vmatprep.subr.bf16.mxu0 %v1470
      %1534 = vmatpush1.bf16.msra.mxu0 %v1469
      %1535 = vmatprep.subr.bf16.mxu0 %v1472
      %1536 = vmatpush1.bf16.msra.mxu0 %v1471
      %1537 = vmatprep.subr.bf16.mxu0 %v1474
      %1538 = vmatpush1.bf16.msra.mxu0 %v1473
      %1539 = vmatprep.subr.bf16.mxu0 %v1476
      %1540 = vmatpush1.bf16.msra.mxu0 %v1475
      %1541 = vmatprep.subr.bf16.mxu0 %v1478
      %1542 = vmatpush1.bf16.msra.mxu0 %v1477
      %1543 = vmatprep.subr.bf16.mxu0 %v1480
      %1544 = vmatpush1.bf16.msra.mxu0 %v1479
      %1545 = vmatprep.subr.bf16.mxu0 %v1482
      %1546 = vmatpush1.bf16.msra.mxu0 %v1481
      %1547 = vmatprep.mubr.bf16.mxu0 %v1352
      %1548 = vmatmul.mubr.bf16.gmra.mrb[0].mxu0 %v1345
      %v1549 = vpop.f32.mrb[0].mxu0
      %v1550 = vadd.f32 0.0, %v1549
      %v1551 = vpop.f32.mrb[0].mxu0
      %v1552 = vadd.f32 0.0, %v1551
      %v1553 = vpop.f32.mrb[0].mxu0
      %v1554 = vpop.f32.mrb[0].mxu0
      %1555 = vdwg.mxu0
      %v1556 = vpack.c.b16 %v1333, %v1333
      %v1557 = vpack.c.b16 %v1334, %v1334
      %v1592 = vunpack.c.l.b16 %v1265
      %v1593 = vunpack.c.h.b16 %v1265
      %v1594 = vunpack.c.l.b16 %v1266
      %v1595 = vunpack.c.h.b16 %v1266
      %v1596 = vunpack.c.l.b16 %v1267
      %v1597 = vunpack.c.h.b16 %v1267
      %v1598 = vunpack.c.l.b16 %v1268
      %v1599 = vunpack.c.h.b16 %v1268
      %v1600 = vunpack.c.l.b16 %v1269
      %v1601 = vunpack.c.h.b16 %v1269
      %v1602 = vunpack.c.l.b16 %v1270
      %v1603 = vunpack.c.h.b16 %v1270
      %v1604 = vunpack.c.l.b16 %v1271
      %v1605 = vunpack.c.h.b16 %v1271
      %v1606 = vunpack.c.l.b16 %v1272
      %v1607 = vunpack.c.h.b16 %v1272
      %v1608 = vunpack.c.l.b16 %v1273
      %v1609 = vunpack.c.h.b16 %v1273
      %v1610 = vunpack.c.l.b16 %v1274
      %v1611 = vunpack.c.h.b16 %v1274
      %v1612 = vunpack.c.l.b16 %v1275
      %v1613 = vunpack.c.h.b16 %v1275
      %v1614 = vunpack.c.l.b16 %v1276
      %v1615 = vunpack.c.h.b16 %v1276
      %v1616 = vunpack.c.l.b16 %v1277
      %v1617 = vunpack.c.h.b16 %v1277
      %v1618 = vunpack.c.l.b16 %v1278
      %v1619 = vunpack.c.h.b16 %v1278
      %v1620 = vunpack.c.l.b16 %v1279
      %v1621 = vunpack.c.h.b16 %v1279
      %v1622 = vunpack.c.l.b16 %v1280
      %v1623 = vunpack.c.h.b16 %v1280
      %v1624 = vunpack.c.l.b16 %v1281
      %v1625 = vunpack.c.h.b16 %v1281
      %v1626 = vunpack.c.l.b16 %v1282
      %v1627 = vunpack.c.h.b16 %v1282
      %v1628 = vunpack.c.l.b16 %v1283
      %v1629 = vunpack.c.h.b16 %v1283
      %v1630 = vunpack.c.l.b16 %v1284
      %v1631 = vunpack.c.h.b16 %v1284
      %v1632 = vunpack.c.l.b16 %v1285
      %v1633 = vunpack.c.h.b16 %v1285
      %v1634 = vunpack.c.l.b16 %v1286
      %v1635 = vunpack.c.h.b16 %v1286
      %v1636 = vunpack.c.l.b16 %v1287
      %v1637 = vunpack.c.h.b16 %v1287
      %v1638 = vunpack.c.l.b16 %v1288
      %v1639 = vunpack.c.h.b16 %v1288
      %v1640 = vunpack.c.l.b16 %v1289
      %v1641 = vunpack.c.h.b16 %v1289
      %v1642 = vunpack.c.l.b16 %v1290
      %v1643 = vunpack.c.h.b16 %v1290
      %v1644 = vunpack.c.l.b16 %v1291
      %v1645 = vunpack.c.h.b16 %v1291
      %v1646 = vunpack.c.l.b16 %v1292
      %v1647 = vunpack.c.h.b16 %v1292
      %v1648 = vunpack.c.l.b16 %v1293
      %v1649 = vunpack.c.h.b16 %v1293
      %v1650 = vunpack.c.l.b16 %v1294
      %v1651 = vunpack.c.h.b16 %v1294
      %v1652 = vunpack.c.l.b16 %v1295
      %v1653 = vunpack.c.h.b16 %v1295
      %v1654 = vunpack.c.l.b16 %v1296
      %v1655 = vunpack.c.h.b16 %v1296
      %v1656 = vpack.c.b16 %v1594, %v1592
      %v1657 = vpack.c.b16 %v1595, %v1593
      %v1658 = vpack.c.b16 %v1598, %v1596
      %v1659 = vpack.c.b16 %v1599, %v1597
      %v1660 = vpack.c.b16 %v1602, %v1600
      %v1661 = vpack.c.b16 %v1603, %v1601
      %v1662 = vpack.c.b16 %v1606, %v1604
      %v1663 = vpack.c.b16 %v1607, %v1605
      %v1664 = vpack.c.b16 %v1610, %v1608
      %v1665 = vpack.c.b16 %v1611, %v1609
      %v1666 = vpack.c.b16 %v1614, %v1612
      %v1667 = vpack.c.b16 %v1615, %v1613
      %v1668 = vpack.c.b16 %v1618, %v1616
      %v1669 = vpack.c.b16 %v1619, %v1617
      %v1670 = vpack.c.b16 %v1622, %v1620
      %v1671 = vpack.c.b16 %v1623, %v1621
      %v1672 = vpack.c.b16 %v1626, %v1624
      %v1673 = vpack.c.b16 %v1627, %v1625
      %v1674 = vpack.c.b16 %v1630, %v1628
      %v1675 = vpack.c.b16 %v1631, %v1629
      %v1676 = vpack.c.b16 %v1634, %v1632
      %v1677 = vpack.c.b16 %v1635, %v1633
      %v1678 = vpack.c.b16 %v1638, %v1636
      %v1679 = vpack.c.b16 %v1639, %v1637
      %v1680 = vpack.c.b16 %v1642, %v1640
      %v1681 = vpack.c.b16 %v1643, %v1641
      %v1682 = vpack.c.b16 %v1646, %v1644
      %v1683 = vpack.c.b16 %v1647, %v1645
      %v1684 = vpack.c.b16 %v1650, %v1648
      %v1685 = vpack.c.b16 %v1651, %v1649
      %v1686 = vpack.c.b16 %v1654, %v1652
      %v1687 = vpack.c.b16 %v1655, %v1653
      %1720 = vmatprep.subr.bf16.mxu0 %v1657
      %1721 = vmatpush1.bf16.msra.mxu0 %v1656
      %1722 = vmatprep.subr.bf16.mxu0 %v1659
      %1723 = vmatpush1.bf16.msra.mxu0 %v1658
      %1724 = vmatprep.subr.bf16.mxu0 %v1661
      %1725 = vmatpush1.bf16.msra.mxu0 %v1660
      %1726 = vmatprep.subr.bf16.mxu0 %v1663
      %1727 = vmatpush1.bf16.msra.mxu0 %v1662
      %1728 = vmatprep.subr.bf16.mxu0 %v1665
      %1729 = vmatpush1.bf16.msra.mxu0 %v1664
      %1730 = vmatprep.subr.bf16.mxu0 %v1667
      %1731 = vmatpush1.bf16.msra.mxu0 %v1666
      %1732 = vmatprep.subr.bf16.mxu0 %v1669
      %1733 = vmatpush1.bf16.msra.mxu0 %v1668
      %1734 = vmatprep.subr.bf16.mxu0 %v1671
      %1735 = vmatpush1.bf16.msra.mxu0 %v1670
      %1736 = vmatprep.subr.bf16.mxu0 %v1673
      %1737 = vmatpush1.bf16.msra.mxu0 %v1672
      %1738 = vmatprep.subr.bf16.mxu0 %v1675
      %1739 = vmatpush1.bf16.msra.mxu0 %v1674
      %1740 = vmatprep.subr.bf16.mxu0 %v1677
      %1741 = vmatpush1.bf16.msra.mxu0 %v1676
      %1742 = vmatprep.subr.bf16.mxu0 %v1679
      %1743 = vmatpush1.bf16.msra.mxu0 %v1678
      %1744 = vmatprep.subr.bf16.mxu0 %v1681
      %1745 = vmatpush1.bf16.msra.mxu0 %v1680
      %1746 = vmatprep.subr.bf16.mxu0 %v1683
      %1747 = vmatpush1.bf16.msra.mxu0 %v1682
      %1748 = vmatprep.subr.bf16.mxu0 %v1685
      %1749 = vmatpush1.bf16.msra.mxu0 %v1684
      %1750 = vmatprep.subr.bf16.mxu0 %v1687
      %1751 = vmatpush1.bf16.msra.mxu0 %v1686
      %1752 = vmatprep.mubr.bf16.mxu0 %v1557
      %1753 = vmatmul.mubr.bf16.gmra.mrb[0].mxu0 %v1556
      %v1754 = vpop.f32.mrb[0].mxu0
      %v1755 = vadd.f32 %v1550, %v1754
      %v1756 = vpop.f32.mrb[0].mxu0
      %v1757 = vadd.f32 %v1552, %v1756
      %v1758 = vpop.f32.mrb[0].mxu0
      %v1759 = vpop.f32.mrb[0].mxu0
      %1760 = vdwg.mxu0
      %v1761 = vld [vmem:[#allocation4] sm:$0xee]
      %s1762 = scalar_lea.vmem %s5, 512
      %v1763 = vld [vmem:[%s1762] sm:$0xff]
      %v1764 = vld [vmem:[%s1762 + $0x8] sm:$0xff]
      %v1765 = vld [vmem:[%s1762 + $0x10] sm:$0xff]
      %v1766 = vld [vmem:[%s1762 + $0x18] sm:$0xff]
      %v1767 = vld [vmem:[%s1762 + $0x20] sm:$0xff]
      %v1768 = vld [vmem:[%s1762 + $0x28] sm:$0xff]
      %v1769 = vld [vmem:[%s1762 + $0x30] sm:$0xff]
      %v1770 = vld [vmem:[%s1762 + $0x38] sm:$0xff]
      %v1771 = vld [vmem:[%s1762 + $0x40] sm:$0xff]
      %v1772 = vld [vmem:[%s1762 + $0x48] sm:$0xff]
      %v1773 = vld [vmem:[%s1762 + $0x50] sm:$0xff]
      %v1774 = vld [vmem:[%s1762 + $0x58] sm:$0xff]
      %v1775 = vld [vmem:[%s1762 + $0x60] sm:$0xff]
      %v1776 = vld [vmem:[%s1762 + $0x68] sm:$0xff]
      %v1777 = vld [vmem:[%s1762 + $0x70] sm:$0xff]
      %v1778 = vld [vmem:[%s1762 + $0x78] sm:$0xff]
      %v1779 = vld [vmem:[%s1762 + $0x80] sm:$0xff]
      %v1780 = vld [vmem:[%s1762 + $0x88] sm:$0xff]
      %v1781 = vld [vmem:[%s1762 + $0x90] sm:$0xff]
      %v1782 = vld [vmem:[%s1762 + $0x98] sm:$0xff]
      %v1783 = vld [vmem:[%s1762 + $0xa0] sm:$0xff]
      %v1784 = vld [vmem:[%s1762 + $0xa8] sm:$0xff]
      %v1785 = vld [vmem:[%s1762 + $0xb0] sm:$0xff]
      %v1786 = vld [vmem:[%s1762 + $0xb8] sm:$0xff]
      %v1787 = vld [vmem:[%s1762 + $0xc0] sm:$0xff]
      %v1788 = vld [vmem:[%s1762 + $0xc8] sm:$0xff]
      %v1789 = vld [vmem:[%s1762 + $0xd0] sm:$0xff]
      %v1790 = vld [vmem:[%s1762 + $0xd8] sm:$0xff]
      %v1791 = vld [vmem:[%s1762 + $0xe0] sm:$0xff]
      %v1792 = vld [vmem:[%s1762 + $0xe8] sm:$0xff]
      %v1793 = vld [vmem:[%s1762 + $0xf0] sm:$0xff]
      %v1794 = vld [vmem:[%s1762 + $0xf8] sm:$0xff]
      %v1796 = vunpack.c.l.b16 %v1761
      %v1797 = vunpack.c.h.b16 %v1761
      %v1798 = vpack.c.b16 %v1335, %v1796
      %v1799 = vpack.c.b16 %v1336, %v1797
      %v1800 = vrot.slane %v1798, 1
      %v1801 = vrot.slane %v1799, 1
      %v1836 = vunpack.c.l.b16 %v1763
      %v1837 = vunpack.c.h.b16 %v1763
      %v1838 = vunpack.c.l.b16 %v1764
      %v1839 = vunpack.c.h.b16 %v1764
      %v1840 = vunpack.c.l.b16 %v1765
      %v1841 = vunpack.c.h.b16 %v1765
      %v1842 = vunpack.c.l.b16 %v1766
      %v1843 = vunpack.c.h.b16 %v1766
      %v1844 = vunpack.c.l.b16 %v1767
      %v1845 = vunpack.c.h.b16 %v1767
      %v1846 = vunpack.c.l.b16 %v1768
      %v1847 = vunpack.c.h.b16 %v1768
      %v1848 = vunpack.c.l.b16 %v1769
      %v1849 = vunpack.c.h.b16 %v1769
      %v1850 = vunpack.c.l.b16 %v1770
      %v1851 = vunpack.c.h.b16 %v1770
      %v1852 = vunpack.c.l.b16 %v1771
      %v1853 = vunpack.c.h.b16 %v1771
      %v1854 = vunpack.c.l.b16 %v1772
      %v1855 = vunpack.c.h.b16 %v1772
      %v1856 = vunpack.c.l.b16 %v1773
      %v1857 = vunpack.c.h.b16 %v1773
      %v1858 = vunpack.c.l.b16 %v1774
      %v1859 = vunpack.c.h.b16 %v1774
      %v1860 = vunpack.c.l.b16 %v1775
      %v1861 = vunpack.c.h.b16 %v1775
      %v1862 = vunpack.c.l.b16 %v1776
      %v1863 = vunpack.c.h.b16 %v1776
      %v1864 = vunpack.c.l.b16 %v1777
      %v1865 = vunpack.c.h.b16 %v1777
      %v1866 = vunpack.c.l.b16 %v1778
      %v1867 = vunpack.c.h.b16 %v1778
      %v1868 = vunpack.c.l.b16 %v1779
      %v1869 = vunpack.c.h.b16 %v1779
      %v1870 = vunpack.c.l.b16 %v1780
      %v1871 = vunpack.c.h.b16 %v1780
      %v1872 = vunpack.c.l.b16 %v1781
      %v1873 = vunpack.c.h.b16 %v1781
      %v1874 = vunpack.c.l.b16 %v1782
      %v1875 = vunpack.c.h.b16 %v1782
      %v1876 = vunpack.c.l.b16 %v1783
      %v1877 = vunpack.c.h.b16 %v1783
      %v1878 = vunpack.c.l.b16 %v1784
      %v1879 = vunpack.c.h.b16 %v1784
      %v1880 = vunpack.c.l.b16 %v1785
      %v1881 = vunpack.c.h.b16 %v1785
      %v1882 = vunpack.c.l.b16 %v1786
      %v1883 = vunpack.c.h.b16 %v1786
      %v1884 = vunpack.c.l.b16 %v1787
      %v1885 = vunpack.c.h.b16 %v1787
      %v1886 = vunpack.c.l.b16 %v1788
      %v1887 = vunpack.c.h.b16 %v1788
      %v1888 = vunpack.c.l.b16 %v1789
      %v1889 = vunpack.c.h.b16 %v1789
      %v1890 = vunpack.c.l.b16 %v1790
      %v1891 = vunpack.c.h.b16 %v1790
      %v1892 = vunpack.c.l.b16 %v1791
      %v1893 = vunpack.c.h.b16 %v1791
      %v1894 = vunpack.c.l.b16 %v1792
      %v1895 = vunpack.c.h.b16 %v1792
      %v1896 = vunpack.c.l.b16 %v1793
      %v1897 = vunpack.c.h.b16 %v1793
      %v1898 = vunpack.c.l.b16 %v1794
      %v1899 = vunpack.c.h.b16 %v1794
      %v1900 = vpack.c.b16 %v1838, %v1836
      %v1901 = vpack.c.b16 %v1839, %v1837
      %v1902 = vpack.c.b16 %v1842, %v1840
      %v1903 = vpack.c.b16 %v1843, %v1841
      %v1904 = vpack.c.b16 %v1846, %v1844
      %v1905 = vpack.c.b16 %v1847, %v1845
      %v1906 = vpack.c.b16 %v1850, %v1848
      %v1907 = vpack.c.b16 %v1851, %v1849
      %v1908 = vpack.c.b16 %v1854, %v1852
      %v1909 = vpack.c.b16 %v1855, %v1853
      %v1910 = vpack.c.b16 %v1858, %v1856
      %v1911 = vpack.c.b16 %v1859, %v1857
      %v1912 = vpack.c.b16 %v1862, %v1860
      %v1913 = vpack.c.b16 %v1863, %v1861
      %v1914 = vpack.c.b16 %v1866, %v1864
      %v1915 = vpack.c.b16 %v1867, %v1865
      %v1916 = vpack.c.b16 %v1870, %v1868
      %v1917 = vpack.c.b16 %v1871, %v1869
      %v1918 = vpack.c.b16 %v1874, %v1872
      %v1919 = vpack.c.b16 %v1875, %v1873
      %v1920 = vpack.c.b16 %v1878, %v1876
      %v1921 = vpack.c.b16 %v1879, %v1877
      %v1922 = vpack.c.b16 %v1882, %v1880
      %v1923 = vpack.c.b16 %v1883, %v1881
      %v1924 = vpack.c.b16 %v1886, %v1884
      %v1925 = vpack.c.b16 %v1887, %v1885
      %v1926 = vpack.c.b16 %v1890, %v1888
      %v1927 = vpack.c.b16 %v1891, %v1889
      %v1928 = vpack.c.b16 %v1894, %v1892
      %v1929 = vpack.c.b16 %v1895, %v1893
      %v1930 = vpack.c.b16 %v1898, %v1896
      %v1931 = vpack.c.b16 %v1899, %v1897
      %1964 = vmatprep.subr.bf16.mxu0 %v1901
      %1965 = vmatpush1.bf16.msra.mxu0 %v1900
      %1966 = vmatprep.subr.bf16.mxu0 %v1903
      %1967 = vmatpush1.bf16.msra.mxu0 %v1902
      %1968 = vmatprep.subr.bf16.mxu0 %v1905
      %1969 = vmatpush1.bf16.msra.mxu0 %v1904
      %1970 = vmatprep.subr.bf16.mxu0 %v1907
      %1971 = vmatpush1.bf16.msra.mxu0 %v1906
      %1972 = vmatprep.subr.bf16.mxu0 %v1909
      %1973 = vmatpush1.bf16.msra.mxu0 %v1908
      %1974 = vmatprep.subr.bf16.mxu0 %v1911
      %1975 = vmatpush1.bf16.msra.mxu0 %v1910
      %1976 = vmatprep.subr.bf16.mxu0 %v1913
      %1977 = vmatpush1.bf16.msra.mxu0 %v1912
      %1978 = vmatprep.subr.bf16.mxu0 %v1915
      %1979 = vmatpush1.bf16.msra.mxu0 %v1914
      %1980 = vmatprep.subr.bf16.mxu0 %v1917
      %1981 = vmatpush1.bf16.msra.mxu0 %v1916
      %1982 = vmatprep.subr.bf16.mxu0 %v1919
      %1983 = vmatpush1.bf16.msra.mxu0 %v1918
      %1984 = vmatprep.subr.bf16.mxu0 %v1921
      %1985 = vmatpush1.bf16.msra.mxu0 %v1920
      %1986 = vmatprep.subr.bf16.mxu0 %v1923
      %1987 = vmatpush1.bf16.msra.mxu0 %v1922
      %1988 = vmatprep.subr.bf16.mxu0 %v1925
      %1989 = vmatpush1.bf16.msra.mxu0 %v1924
      %1990 = vmatprep.subr.bf16.mxu0 %v1927
      %1991 = vmatpush1.bf16.msra.mxu0 %v1926
      %1992 = vmatprep.subr.bf16.mxu0 %v1929
      %1993 = vmatpush1.bf16.msra.mxu0 %v1928
      %1994 = vmatprep.subr.bf16.mxu0 %v1931
      %1995 = vmatpush1.bf16.msra.mxu0 %v1930
      %1996 = vmatprep.mubr.bf16.mxu0 %v1801
      %1997 = vmatmul.mubr.bf16.gmra.mrb[0].mxu0 %v1800
      %v1998 = vpop.f32.mrb[0].mxu0
      %v1999 = vadd.f32 0.0, %v1998
      %v2000 = vpop.f32.mrb[0].mxu0
      %v2001 = vadd.f32 0.0, %v2000
      %v2002 = vpop.f32.mrb[0].mxu0
      %v2003 = vpop.f32.mrb[0].mxu0
      %2004 = vdwg.mxu0
      %v2005 = vadd.f32 %v1755, %v1999
      %v2006 = vadd.f32 %v1757, %v2001
      %v2007 = vld [vmem:[%s6] sm:$0x3]
      %v2009 = vlaneseq
      %v2010 = vshrl.u32 %v2009, 7
      %v2011 = vsub.s32 0, %v2010
      %v2012 = vrot.slane %v2007, %v2011
      %v2013 = vlaneseq
      %v2014 = vshrl.u32 %v2013, 7
      %v2015 = vsub.s32 1, %v2014
      %v2016 = vrot.slane %v2007, %v2015
      %v2019 = vmul.f32 %v2005, %v2012
      %v2020 = vmul.f32 %v2006, %v2016
      %v2021 = vld [vmem:[%s7] sm:$0x3]
      %v2023 = vlaneseq
      %v2024 = vshrl.u32 %v2023, 7
      %v2025 = vsub.s32 0, %v2024
      %v2026 = vrot.slane %v2021, %v2025
      %v2027 = vlaneseq
      %v2028 = vshrl.u32 %v2027, 7
      %v2029 = vsub.s32 1, %v2028
      %v2030 = vrot.slane %v2021, %v2029
      %v2033 = vadd.f32 %v2019, %v2026
      %v2034 = vadd.f32 %v2020, %v2030
      %v2035 = vld [vmem:[%s8] sm:$0xff]
      %v2036 = vld [vmem:[%s8 + $0x8] sm:$0xff]
      %v2037 = vld [vmem:[%s8 + $0x10] sm:$0xff]
      %v2038 = vld [vmem:[%s8 + $0x18] sm:$0xff]
      %v2039 = vld [vmem:[%s8 + $0x20] sm:$0xff]
      %v2040 = vld [vmem:[%s8 + $0x28] sm:$0xff]
      %v2041 = vld [vmem:[%s8 + $0x30] sm:$0xff]
      %v2042 = vld [vmem:[%s8 + $0x38] sm:$0xff]
      %v2043 = vld [vmem:[%s8 + $0x40] sm:$0xff]
      %v2044 = vld [vmem:[%s8 + $0x48] sm:$0xff]
      %v2045 = vld [vmem:[%s8 + $0x50] sm:$0xff]
      %v2046 = vld [vmem:[%s8 + $0x58] sm:$0xff]
      %v2047 = vld [vmem:[%s8 + $0x60] sm:$0xff]
      %v2048 = vld [vmem:[%s8 + $0x68] sm:$0xff]
      %v2049 = vld [vmem:[%s8 + $0x70] sm:$0xff]
      %v2050 = vld [vmem:[%s8 + $0x78] sm:$0xff]
      %v2051 = vld [vmem:[%s8 + $0x80] sm:$0xff]
      %v2052 = vld [vmem:[%s8 + $0x88] sm:$0xff]
      %v2053 = vld [vmem:[%s8 + $0x90] sm:$0xff]
      %v2054 = vld [vmem:[%s8 + $0x98] sm:$0xff]
      %v2055 = vld [vmem:[%s8 + $0xa0] sm:$0xff]
      %v2056 = vld [vmem:[%s8 + $0xa8] sm:$0xff]
      %v2057 = vld [vmem:[%s8 + $0xb0] sm:$0xff]
      %v2058 = vld [vmem:[%s8 + $0xb8] sm:$0xff]
      %v2059 = vld [vmem:[%s8 + $0xc0] sm:$0xff]
      %v2060 = vld [vmem:[%s8 + $0xc8] sm:$0xff]
      %v2061 = vld [vmem:[%s8 + $0xd0] sm:$0xff]
      %v2062 = vld [vmem:[%s8 + $0xd8] sm:$0xff]
      %v2063 = vld [vmem:[%s8 + $0xe0] sm:$0xff]
      %v2064 = vld [vmem:[%s8 + $0xe8] sm:$0xff]
      %v2065 = vld [vmem:[%s8 + $0xf0] sm:$0xff]
      %v2066 = vld [vmem:[%s8 + $0xf8] sm:$0xff]
      %v2099 = vunpack.c.l.b16 %v2035
      %v2100 = vunpack.c.h.b16 %v2035
      %v2101 = vunpack.c.l.b16 %v2036
      %v2102 = vunpack.c.h.b16 %v2036
      %v2103 = vunpack.c.l.b16 %v2037
      %v2104 = vunpack.c.h.b16 %v2037
      %v2105 = vunpack.c.l.b16 %v2038
      %v2106 = vunpack.c.h.b16 %v2038
      %v2107 = vunpack.c.l.b16 %v2039
      %v2108 = vunpack.c.h.b16 %v2039
      %v2109 = vunpack.c.l.b16 %v2040
      %v2110 = vunpack.c.h.b16 %v2040
      %v2111 = vunpack.c.l.b16 %v2041
      %v2112 = vunpack.c.h.b16 %v2041
      %v2113 = vunpack.c.l.b16 %v2042
      %v2114 = vunpack.c.h.b16 %v2042
      %v2115 = vunpack.c.l.b16 %v2043
      %v2116 = vunpack.c.h.b16 %v2043
      %v2117 = vunpack.c.l.b16 %v2044
      %v2118 = vunpack.c.h.b16 %v2044
      %v2119 = vunpack.c.l.b16 %v2045
      %v2120 = vunpack.c.h.b16 %v2045
      %v2121 = vunpack.c.l.b16 %v2046
      %v2122 = vunpack.c.h.b16 %v2046
      %v2123 = vunpack.c.l.b16 %v2047
      %v2124 = vunpack.c.h.b16 %v2047
      %v2125 = vunpack.c.l.b16 %v2048
      %v2126 = vunpack.c.h.b16 %v2048
      %v2127 = vunpack.c.l.b16 %v2049
      %v2128 = vunpack.c.h.b16 %v2049
      %v2129 = vunpack.c.l.b16 %v2050
      %v2130 = vunpack.c.h.b16 %v2050
      %v2131 = vunpack.c.l.b16 %v2051
      %v2132 = vunpack.c.h.b16 %v2051
      %v2133 = vunpack.c.l.b16 %v2052
      %v2134 = vunpack.c.h.b16 %v2052
      %v2135 = vunpack.c.l.b16 %v2053
      %v2136 = vunpack.c.h.b16 %v2053
      %v2137 = vunpack.c.l.b16 %v2054
      %v2138 = vunpack.c.h.b16 %v2054
      %v2139 = vunpack.c.l.b16 %v2055
      %v2140 = vunpack.c.h.b16 %v2055
      %v2141 = vunpack.c.l.b16 %v2056
      %v2142 = vunpack.c.h.b16 %v2056
      %v2143 = vunpack.c.l.b16 %v2057
      %v2144 = vunpack.c.h.b16 %v2057
      %v2145 = vunpack.c.l.b16 %v2058
      %v2146 = vunpack.c.h.b16 %v2058
      %v2147 = vunpack.c.l.b16 %v2059
      %v2148 = vunpack.c.h.b16 %v2059
      %v2149 = vunpack.c.l.b16 %v2060
      %v2150 = vunpack.c.h.b16 %v2060
      %v2151 = vunpack.c.l.b16 %v2061
      %v2152 = vunpack.c.h.b16 %v2061
      %v2153 = vunpack.c.l.b16 %v2062
      %v2154 = vunpack.c.h.b16 %v2062
      %v2155 = vunpack.c.l.b16 %v2063
      %v2156 = vunpack.c.h.b16 %v2063
      %v2157 = vunpack.c.l.b16 %v2064
      %v2158 = vunpack.c.h.b16 %v2064
      %v2159 = vunpack.c.l.b16 %v2065
      %v2160 = vunpack.c.h.b16 %v2065
      %v2161 = vunpack.c.l.b16 %v2066
      %v2162 = vunpack.c.h.b16 %v2066
      %v2163 = vpack.c.b16 %v2101, %v2099
      %v2164 = vpack.c.b16 %v2102, %v2100
      %v2165 = vpack.c.b16 %v2105, %v2103
      %v2166 = vpack.c.b16 %v2106, %v2104
      %v2167 = vpack.c.b16 %v2109, %v2107
      %v2168 = vpack.c.b16 %v2110, %v2108
      %v2169 = vpack.c.b16 %v2113, %v2111
      %v2170 = vpack.c.b16 %v2114, %v2112
      %v2171 = vpack.c.b16 %v2117, %v2115
      %v2172 = vpack.c.b16 %v2118, %v2116
      %v2173 = vpack.c.b16 %v2121, %v2119
      %v2174 = vpack.c.b16 %v2122, %v2120
      %v2175 = vpack.c.b16 %v2125, %v2123
      %v2176 = vpack.c.b16 %v2126, %v2124
      %v2177 = vpack.c.b16 %v2129, %v2127
      %v2178 = vpack.c.b16 %v2130, %v2128
      %v2179 = vpack.c.b16 %v2133, %v2131
      %v2180 = vpack.c.b16 %v2134, %v2132
      %v2181 = vpack.c.b16 %v2137, %v2135
      %v2182 = vpack.c.b16 %v2138, %v2136
      %v2183 = vpack.c.b16 %v2141, %v2139
      %v2184 = vpack.c.b16 %v2142, %v2140
      %v2185 = vpack.c.b16 %v2145, %v2143
      %v2186 = vpack.c.b16 %v2146, %v2144
      %v2187 = vpack.c.b16 %v2149, %v2147
      %v2188 = vpack.c.b16 %v2150, %v2148
      %v2189 = vpack.c.b16 %v2153, %v2151
      %v2190 = vpack.c.b16 %v2154, %v2152
      %v2191 = vpack.c.b16 %v2157, %v2155
      %v2192 = vpack.c.b16 %v2158, %v2156
      %v2193 = vpack.c.b16 %v2161, %v2159
      %v2194 = vpack.c.b16 %v2162, %v2160
      %2227 = vmatprep.subr.bf16.mxu0 %v2164
      %2228 = vmatpush1.bf16.msra.mxu0 %v2163
      %2229 = vmatprep.subr.bf16.mxu0 %v2166
      %2230 = vmatpush1.bf16.msra.mxu0 %v2165
      %2231 = vmatprep.subr.bf16.mxu0 %v2168
      %2232 = vmatpush1.bf16.msra.mxu0 %v2167
      %2233 = vmatprep.subr.bf16.mxu0 %v2170
      %2234 = vmatpush1.bf16.msra.mxu0 %v2169
      %2235 = vmatprep.subr.bf16.mxu0 %v2172
      %2236 = vmatpush1.bf16.msra.mxu0 %v2171
      %2237 = vmatprep.subr.bf16.mxu0 %v2174
      %2238 = vmatpush1.bf16.msra.mxu0 %v2173
      %2239 = vmatprep.subr.bf16.mxu0 %v2176
      %2240 = vmatpush1.bf16.msra.mxu0 %v2175
      %2241 = vmatprep.subr.bf16.mxu0 %v2178
      %2242 = vmatpush1.bf16.msra.mxu0 %v2177
      %2243 = vmatprep.subr.bf16.mxu0 %v2180
      %2244 = vmatpush1.bf16.msra.mxu0 %v2179
      %2245 = vmatprep.subr.bf16.mxu0 %v2182
      %2246 = vmatpush1.bf16.msra.mxu0 %v2181
      %2247 = vmatprep.subr.bf16.mxu0 %v2184
      %2248 = vmatpush1.bf16.msra.mxu0 %v2183
      %2249 = vmatprep.subr.bf16.mxu0 %v2186
      %2250 = vmatpush1.bf16.msra.mxu0 %v2185
      %2251 = vmatprep.subr.bf16.mxu0 %v2188
      %2252 = vmatpush1.bf16.msra.mxu0 %v2187
      %2253 = vmatprep.subr.bf16.mxu0 %v2190
      %2254 = vmatpush1.bf16.msra.mxu0 %v2189
      %2255 = vmatprep.subr.bf16.mxu0 %v2192
      %2256 = vmatpush1.bf16.msra.mxu0 %v2191
      %2257 = vmatprep.subr.bf16.mxu0 %v2194
      %2258 = vmatpush1.bf16.msra.mxu0 %v2193
      %2259 = vmatprep.mubr.bf16.mxu0 %v533
      %2260 = vmatmul.mubr.bf16.gmra.mrb[0].mxu0 %v532
      %v2261 = vpop.f32.mrb[0].mxu0
      %v2262 = vadd.f32 0.0, %v2261
      %v2263 = vpop.f32.mrb[0].mxu0
      %v2264 = vadd.f32 0.0, %v2263
      %v2265 = vpop.f32.mrb[0].mxu0
      %v2266 = vpop.f32.mrb[0].mxu0
      %2267 = vdwg.mxu0
      %v2268 = vld [vmem:[%s9] sm:$0x3]
      %v2270 = vlaneseq
      %v2271 = vshrl.u32 %v2270, 7
      %v2272 = vsub.s32 0, %v2271
      %v2273 = vrot.slane %v2268, %v2272
      %v2274 = vlaneseq
      %v2275 = vshrl.u32 %v2274, 7
      %v2276 = vsub.s32 1, %v2275
      %v2277 = vrot.slane %v2268, %v2276
      %v2280 = vmul.f32 %v2262, %v2273
      %v2281 = vmul.f32 %v2264, %v2277
      %v2282 = vld [vmem:[%s10] sm:$0x3]
      %v2284 = vlaneseq
      %v2285 = vshrl.u32 %v2284, 7
      %v2286 = vsub.s32 0, %v2285
      %v2287 = vrot.slane %v2282, %v2286
      %v2288 = vlaneseq
      %v2289 = vshrl.u32 %v2288, 7
      %v2290 = vsub.s32 1, %v2289
      %v2291 = vrot.slane %v2282, %v2290
      %v2294 = vadd.f32 %v2280, %v2287
      %v2295 = vadd.f32 %v2281, %v2291
      %v2296 = vadd.f32 %v2033, %v2294
      %v2297 = vadd.f32 %v2034, %v2295
      %v2298 = vmax.f32 %v2296, 0.0
      %v2299 = vmax.f32 %v2297, 0.0
      %2300 = vst [vmem:[%s406] sm:$0xff] %v2298
      %2301 = vst [vmem:[%s406 + $0x8] sm:$0xff] %v2299
      %p2302 = scmp.lt.s32.totalorder %s22, 1
      %s2303 = scalar_select %p2302, %s22, 1
      %s2304 = smul.addr %s2303, 2
      %s2305 = smul.addr %s2304, 8
      %s2306 = scalar_lea.vmem %s11, %s2305
      // Predicated region
      $region65: #{fwd.3} parent=63 // pred_check
        %p2307 = pneg %p281
      $region66: #{fwd.3} parent=63 // pred_check_branch
        %2309 = sbr.rel (%p2307) target = $region68
      $region67: #{fwd.3} parent=63 // pred_region
        _
      $region68: #{fwd.3} parent=63 // pred_fallthru
        _
    $region64: #{fwd.3} parent=5 // pred_fallthru
      _
    %p2310 = scmp.le.s32.totalorder 2, %s17
    // Predicated region
    $region69: #{fwd.3} parent=5 // pred_check
      %p2311 = pneg %p2310
    $region70: #{fwd.3} parent=5 // pred_check_branch
      %2313 = sbr.rel (%p2311) target = $region72
    $region71: #{fwd.3} parent=5 // pred_region
      %s2314 = ssub.s32 %s17, 2
      // Predicated region
      $region73: #{fwd.3} parent=71 // pred_check
        %p2315 = pneg %p287
      $region74: #{fwd.3} parent=71 // pred_check_branch
        %2317 = sbr.rel (%p2315) target = $region76
      $region75: #{fwd.3} parent=71 // pred_region
        %p2318 = scmp.lt.s32.totalorder %s23, 1
        %s2319 = scalar_select %p2318, %s23, 1
        %s2320 = smul.addr %s2319, 2
        %s2321 = smul.addr %s2320, 8
        %s2322 = scalar_lea.vmem %s11, %s2321
      $region76: #{fwd.3} parent=71 // pred_fallthru
        _
    $region72: #{fwd.3} parent=5 // pred_fallthru
      _
  $region6: #{fwd.3} parent=0 // loop_footer
    %s21 = sadd.s32 1, %s17
  $region7: #{fwd.3} parent=0 // loop_footer_branch
    %16 = sbr.rel target = $region3
  $region8: #{fwd.3} parent=0 // loop_exit
    _

</llo_original>
